<compile_context>
chip_gen: v7x
topology: tpu7x:2x2x1
jax: 0.10.0
libtpu: 0.0.40
codegen_flags: <defaults>
</compile_context>

<pallas_src>
import jax
import jax.numpy as jnp
from jax.experimental import pallas as pl
from jax.experimental.pallas import tpu as pltpu


# ---------------------------------------------------------------------------
# Kernel
# ---------------------------------------------------------------------------
def _elu(x):
    # ELU(alpha=1). Clamp the exp argument so the discarded branch never produces inf.
    # TODO(synk): switch to jnp.expm1 for exact-near-zero parity once confirmed in the
    # Mosaic elementwise set; exp(xn)-1 differs by <1e-7 abs in f32 here.
    xn = jnp.minimum(x, 0.0)
    return jnp.where(x > 0, x, jnp.exp(xn) - 1.0)


def _sigmoid(x):
    # sigmoid(x) == 0.5*(tanh(x/2)+1): one EUP op per element (vs exp + reciprocal).
    return 0.5 * (jnp.tanh(0.5 * x) + 1.0)


def autoencoder_kernel(
    x_ref,
    w1_ref, b1_ref, w2_ref, b2_ref, w3_ref, b3_ref,
    w4_ref, b4_ref, w5_ref, b5_ref, w6_ref, b6_ref,
    out_ref, h_ref,
):
    def dense(a, w_ref, b_ref):
        # Cast the activation to this layer's weight dtype on the VPU (no-op for f32
        # weights); MXU matmul accumulates in f32; bias add stays f32.
        return (
            jnp.dot(a.astype(w_ref.dtype), w_ref[...],
                    preferred_element_type=jnp.float32)
            + b_ref[...]
        )

    x = x_ref[...]

    # ----- encoder -----
    a = _elu(dense(x, w1_ref, b1_ref))
    a = _elu(dense(a, w2_ref, b2_ref))
    h = dense(a, w3_ref, b3_ref)            # (tb, hidden_dim), f32

    # ----- decoder -----
    d = _elu(dense(h, w4_ref, b4_ref))
    d = _elu(dense(d, w5_ref, b5_ref))
    y = _sigmoid(dense(d, w6_ref, b6_ref))

    out_ref[...] = y.astype(out_ref.dtype)
    h_ref[...] = h.astype(h_ref.dtype)
    # TODO(synk): if EUP remains the critical slot on v7x after the tanh-sigmoid
    # change, compute the ELU exp in bf16 there (keep f32 on v5e: no bf16 EUP).


# ---------------------------------------------------------------------------
# Wrapper
# ---------------------------------------------------------------------------
def _choose_batch_tile(B):
    """Largest tile dividing B while keeping >=2 grid steps (>=4 for tiles >=128) so
    the 'parallel' batch axis can shard across both v7x TensorCores and the
    ~0.35us/step pipeline overhead stays amortized."""
    if B <= 8:
        return B
    candidates = (2048, 1024, 512, 256, 128, 64, 32, 16, 8)
    for c in candidates:                      # prefer big tiles with >=4 steps
        if c >= 128 and B % c == 0 and B // c >= 4:
            return c
    for c in candidates:                      # otherwise settle for >=2 steps
        if B % c == 0 and B // c >= 2:
            return c
    return B


def _vmem_estimate_bytes(tb, input_dim, output_dim, hidden_dim,
                         ws, bs, x_itemsize, y_itemsize, h_itemsize, weight_buffers):
    # The pipeline double-buffers the batch-tiled x / y / h blocks.
    io_bytes = 2 * tb * (input_dim * x_itemsize
                         + output_dim * y_itemsize
                         + hidden_dim * h_itemsize)
    w_bytes = weight_buffers * (sum(a.size * a.dtype.itemsize for a in ws)
                                + sum(a.size * a.dtype.itemsize for a in bs))
    # Generous bound on the f32 layer temporaries the compiler keeps live in VMEM.
    temp_bytes = 2 * 4 * tb * (input_dim + 2 * 128 + 2 * 64 + hidden_dim + output_dim)
    return io_bytes + w_bytes + temp_bytes


def autoencoder_forward(
    x,
    params,
    *,
    tb=None,
    compute_dtype=jnp.bfloat16,      # MXU operand dtype (f32 also supported)
    latent_full_precision=True,      # keep enc3 weights f32 so h stays high-fidelity
    y_dtype=jnp.float32,             # bf16 halves the largest writeback stream
    h_dtype=jnp.float32,
    single_buffer_weights=True,
):
    """x: [B, input_dim] float32.  params: dict of (w [in,out], b [1,out]) per layer.

    Returns (y [B, output_dim] y_dtype, h [B, hidden_dim] h_dtype), matching
    AutoEncoderMNIST.forward (y = decoder(h), h = encoder(x))."""
    B, input_dim = x.shape
    (w1, b1), (w2, b2), (w3, b3) = params["enc1"], params["enc2"], params["enc3"]
    (w4, b4), (w5, b5), (w6, b6) = params["dec1"], params["dec2"], params["dec3"]
    hidden_dim = w3.shape[1]
    output_dim = w6.shape[1]

    cdt = jnp.dtype(compute_dtype)
    w3_dt = jnp.float32 if latent_full_precision else cdt
    ws = [w1.astype(cdt), w2.astype(cdt), w3.astype(w3_dt),
          w4.astype(cdt), w5.astype(cdt), w6.astype(cdt)]
    bs = [b.astype(jnp.float32) for b in (b1, b2, b3, b4, b5, b6)]
    # NOTE: x is intentionally NOT cast here; the kernel casts it in VMEM so x only
    # crosses HBM once (removes a separate XLA read+write pass over x).

    # ---- batch tiling -------------------------------------------------------
    if tb is None:
        tb = _choose_batch_tile(B)
    assert B % tb == 0, "batch must be divisible by tile size tb"

    weight_buffers = 1 if single_buffer_weights else 2
    y_isz = jnp.dtype(y_dtype).itemsize
    h_isz = jnp.dtype(h_dtype).itemsize
    budget = 40 << 20  # conservative against v7x's 64 MiB physical VMEM per TC
    while (tb >= 16 and tb % 16 == 0
           and _vmem_estimate_bytes(tb, input_dim, output_dim, hidden_dim, ws, bs,
                                    x.dtype.itemsize, y_isz, h_isz,
                                    weight_buffers) > budget):
        tb //= 2
    grid = (B // tb,)

    est = _vmem_estimate_bytes(tb, input_dim, output_dim, hidden_dim, ws, bs,
                               x.dtype.itemsize, y_isz, h_isz, weight_buffers)
    vmem_limit = int(min(max(2 * est, 16 << 20), 48 << 20))

    # ---- advisory cost estimate for the XLA scheduler ----------------------
    dims = [input_dim, 128, 64, hidden_dim, 64, 128, output_dim]
    flops = 2 * B * sum(a * b for a, b in zip(dims[:-1], dims[1:]))
    transcendentals = B * (128 + 64 + 64 + 128 + output_dim)  # 4 ELU exps + 1 tanh
    bytes_accessed = (
        x.size * x.dtype.itemsize
        + sum(a.size * a.dtype.itemsize for a in ws)
        + sum(a.size * a.dtype.itemsize for a in bs)
        + B * output_dim * y_isz
        + B * hidden_dim * h_isz
    )
    cost = pl.CostEstimate(flops=flops, transcendentals=transcendentals,
                           bytes_accessed=bytes_accessed)

    # ---- specs / pallas_call ------------------------------------------------
    def full_spec(arr, pipeline_mode):
        ndim = arr.ndim
        if pipeline_mode is None:
            return pl.BlockSpec(arr.shape, lambda i, _n=ndim: (0,) * _n)
        return pl.BlockSpec(arr.shape, lambda i, _n=ndim: (0,) * _n,
                            pipeline_mode=pipeline_mode)

    def build(weight_pipeline_mode):
        in_specs = [pl.BlockSpec((tb, input_dim), lambda i: (i, 0))]
        for w, b in zip(ws, bs):
            in_specs += [full_spec(w, weight_pipeline_mode),
                         full_spec(b, weight_pipeline_mode)]
        out_specs = [
            pl.BlockSpec((tb, output_dim), lambda i: (i, 0)),
            pl.BlockSpec((tb, hidden_dim), lambda i: (i, 0)),  # unpadded masked store
        ]
        out_shape = [
            jax.ShapeDtypeStruct((B, output_dim), y_dtype),
            jax.ShapeDtypeStruct((B, hidden_dim), h_dtype),
        ]
        return pl.pallas_call(
            autoencoder_kernel,
            out_shape=out_shape,
            grid_spec=pltpu.PrefetchScalarGridSpec(
                num_scalar_prefetch=0,
                grid=grid,
                in_specs=in_specs,
                out_specs=out_specs,
            ),
            compiler_params=pltpu.CompilerParams(
                dimension_semantics=("parallel",),
                vmem_limit_bytes=vmem_limit,
            ),
            cost_estimate=cost,
        )

    operands = [x]
    for w, b in zip(ws, bs):
        operands += [w, b]

    if single_buffer_weights:
        try:
            # Constant index_maps -> double-buffering these only duplicates VMEM.
            return build(pl.Buffered(1))(*operands)
        except Exception:
            # TODO(synk): pipeline_mode=pl.Buffered(1) unsupported on this jax/Mosaic
            # build; fall back to default double buffering (~200-400 KB extra VMEM).
            pass
    return build(None)(*operands)


# ---------------------------------------------------------------------------
# Parameter init + pure-JAX reference (mirrors the PyTorch module).
# ---------------------------------------------------------------------------
def init_linear(key, fan_in, fan_out):
    kw, kb = jax.random.split(key)
    bound = 1.0 / (fan_in ** 0.5)
    w = jax.random.uniform(kw, (fan_in, fan_out), jnp.float32, -bound, bound)
    b = jax.random.uniform(kb, (1, fan_out), jnp.float32, -bound, bound)
    return w, b


def make_params(key, input_dim, output_dim, hidden_dim):
    keys = jax.random.split(key, 6)
    return {
        "enc1": init_linear(keys[0], input_dim, 128),
        "enc2": init_linear(keys[1], 128, 64),
        "enc3": init_linear(keys[2], 64, hidden_dim),
        "dec1": init_linear(keys[3], hidden_dim, 64),
        "dec2": init_linear(keys[4], 64, 128),
        "dec3": init_linear(keys[5], 128, output_dim),
    }


def reference_forward(x, params):
    def lin(a, wb):
        w, b = wb
        return a @ w + b

    a = jax.nn.elu(lin(x, params["enc1"]))
    a = jax.nn.elu(lin(a, params["enc2"]))
    h = lin(a, params["enc3"])
    d = jax.nn.elu(lin(h, params["dec1"]))
    d = jax.nn.elu(lin(d, params["dec2"]))
    y = jax.nn.sigmoid(lin(d, params["dec3"]))
    return y, h


if __name__ == "__main__":
    key = jax.random.PRNGKey(0)
    k_x, k_p = jax.random.split(key)

    # Small shapes consistent with the module's forward (flattened images).
    batch = 16
    input_dim = 256
    output_dim = 256
    hidden_dim = 32

    x = jax.random.uniform(k_x, (batch, input_dim), jnp.float32)
    params = make_params(k_p, input_dim, output_dim, hidden_dim)

    y_ref, h_ref = reference_forward(x, params)

    # 1) Full-f32 path: tight parity with the PyTorch forward (exact sigmoid form).
    y32, h32 = autoencoder_forward(x, params, compute_dtype=jnp.float32)
    y32 = jax.block_until_ready(y32)
    h32 = jax.block_until_ready(h32)
    assert y32.shape == (batch, output_dim) and h32.shape == (batch, hidden_dim)
    assert jnp.allclose(h32, h_ref, atol=1e-5, rtol=1e-5)
    assert jnp.allclose(y32, y_ref, atol=5e-4, rtol=5e-4)

    # 2) Default path: bf16 matmul operands (MXU-native on all generations), f32
    #    accumulation/elementwise, enc3 weights kept f32 for latent fidelity.
    y16, h16 = autoencoder_forward(x, params)
    y16 = jax.block_until_ready(y16)
    h16 = jax.block_until_ready(h16)
    assert jnp.allclose(h16, h_ref, atol=5e-2, rtol=5e-2)
    assert jnp.allclose(y16, y_ref, atol=5e-2, rtol=5e-2)

    # 3) Writeback-trimmed path: bf16 y/h outputs (halves the dominant HBM write).
    ybf, hbf = autoencoder_forward(x, params,
                                   y_dtype=jnp.bfloat16, h_dtype=jnp.bfloat16)
    ybf = jax.block_until_ready(ybf)
    hbf = jax.block_until_ready(hbf)
    assert ybf.dtype == jnp.bfloat16 and hbf.dtype == jnp.bfloat16
    assert jnp.allclose(ybf.astype(jnp.float32), y_ref, atol=1e-1, rtol=1e-1)

    print("KERNEL_OK")
</pallas_src>

<mosaic_0001>
module attributes {stable_mosaic.version = 11 : i64} {
  func.func @autoencoder_kernel(%arg0: i32, %arg1: memref<8x256xf32, #tpu.memory_space<vmem>>, %arg2: memref<256x128xf32, #tpu.memory_space<vmem>>, %arg3: memref<1x128xf32, #tpu.memory_space<vmem>>, %arg4: memref<128x64xf32, #tpu.memory_space<vmem>>, %arg5: memref<1x64xf32, #tpu.memory_space<vmem>>, %arg6: memref<64x32xf32, #tpu.memory_space<vmem>>, %arg7: memref<1x32xf32, #tpu.memory_space<vmem>>, %arg8: memref<32x64xf32, #tpu.memory_space<vmem>>, %arg9: memref<1x64xf32, #tpu.memory_space<vmem>>, %arg10: memref<64x128xf32, #tpu.memory_space<vmem>>, %arg11: memref<1x128xf32, #tpu.memory_space<vmem>>, %arg12: memref<128x256xf32, #tpu.memory_space<vmem>>, %arg13: memref<1x256xf32, #tpu.memory_space<vmem>>, %arg14: memref<8x256xf32, #tpu.memory_space<vmem>>, %arg15: memref<8x32xf32, #tpu.memory_space<vmem>>) attributes {dimension_semantics = [#tpu.dimension_semantics<parallel>], iteration_bounds = array<i64: 2>, scalar_prefetch = 0 : i64, scratch_operands = 0 : i64, tpu.core_type = #tpu.core_type<tc>, window_params = [{transform_indices = @transform_0, window_bounds = array<i64: 8, 256>}, {pipeline_mode = #tpu.pipeline_mode<synchronous>, transform_indices = @transform_1, window_bounds = array<i64: 256, 128>}, {pipeline_mode = #tpu.pipeline_mode<synchronous>, transform_indices = @transform_2, window_bounds = array<i64: 1, 128>}, {pipeline_mode = #tpu.pipeline_mode<synchronous>, transform_indices = @transform_3, window_bounds = array<i64: 128, 64>}, {pipeline_mode = #tpu.pipeline_mode<synchronous>, transform_indices = @transform_4, window_bounds = array<i64: 1, 64>}, {pipeline_mode = #tpu.pipeline_mode<synchronous>, transform_indices = @transform_5, window_bounds = array<i64: 64, 32>}, {pipeline_mode = #tpu.pipeline_mode<synchronous>, transform_indices = @transform_6, window_bounds = array<i64: 1, 32>}, {pipeline_mode = #tpu.pipeline_mode<synchronous>, transform_indices = @transform_7, window_bounds = array<i64: 32, 64>}, {pipeline_mode = #tpu.pipeline_mode<synchronous>, transform_indices = @transform_8, window_bounds = array<i64: 1, 64>}, {pipeline_mode = #tpu.pipeline_mode<synchronous>, transform_indices = @transform_9, window_bounds = array<i64: 64, 128>}, {pipeline_mode = #tpu.pipeline_mode<synchronous>, transform_indices = @transform_10, window_bounds = array<i64: 1, 128>}, {pipeline_mode = #tpu.pipeline_mode<synchronous>, transform_indices = @transform_11, window_bounds = array<i64: 128, 256>}, {pipeline_mode = #tpu.pipeline_mode<synchronous>, transform_indices = @transform_12, window_bounds = array<i64: 1, 256>}, {transform_indices = @transform_13, window_bounds = array<i64: 8, 256>}, {transform_indices = @transform_14, window_bounds = array<i64: 8, 32>}]} {
    %c0 = arith.constant 0 : index
    %c0_0 = arith.constant 0 : index
    %0 = vector.load %arg1[%c0, %c0_0] : memref<8x256xf32, #tpu.memory_space<vmem>>, vector<8x256xf32>
    %c0_1 = arith.constant 0 : index
    %c0_2 = arith.constant 0 : index
    %1 = vector.load %arg2[%c0_1, %c0_2] : memref<256x128xf32, #tpu.memory_space<vmem>>, vector<256x128xf32>
    %cst = arith.constant dense<0.000000e+00> : vector<8x128xf32>
    %2 = tpu.matmul %0, %1, %cst {dimension_numbers = #tpu.dot_dimension_numbers<[1], [0], [0], [1], [0, 0, 1, 1], [], []>} : vector<8x256xf32>, vector<256x128xf32>, vector<8x128xf32> -> vector<8x128xf32>
    %c0_3 = arith.constant 0 : index
    %c0_4 = arith.constant 0 : index
    %3 = vector.load %arg3[%c0_3, %c0_4] : memref<1x128xf32, #tpu.memory_space<vmem>>, vector<1x128xf32>
    %4 = vector.broadcast %3 : vector<1x128xf32> to vector<8x128xf32>
    %5 = arith.addf %2, %4 : vector<8x128xf32>
    %cst_5 = arith.constant 0.000000e+00 : f32
    %6 = vector.broadcast %cst_5 : f32 to vector<8x128xf32>
    %7 = arith.minimumf %5, %6 : vector<8x128xf32>
    %cst_6 = arith.constant 0.000000e+00 : f32
    %8 = vector.broadcast %cst_6 : f32 to vector<8x128xf32>
    %9 = arith.cmpf ogt, %5, %8 : vector<8x128xf32>
    %10 = math.exp %7 : vector<8x128xf32>
    %cst_7 = arith.constant 1.000000e+00 : f32
    %11 = vector.broadcast %cst_7 : f32 to vector<8x128xf32>
    %12 = arith.subf %10, %11 : vector<8x128xf32>
    %13 = arith.select %9, %5, %12 : vector<8x128xi1>, vector<8x128xf32>
    %c0_8 = arith.constant 0 : index
    %c0_9 = arith.constant 0 : index
    %14 = vector.load %arg4[%c0_8, %c0_9] : memref<128x64xf32, #tpu.memory_space<vmem>>, vector<128x64xf32>
    %cst_10 = arith.constant dense<0.000000e+00> : vector<8x64xf32>
    %15 = tpu.matmul %13, %14, %cst_10 {dimension_numbers = #tpu.dot_dimension_numbers<[1], [0], [0], [1], [0, 0, 1, 1], [], []>} : vector<8x128xf32>, vector<128x64xf32>, vector<8x64xf32> -> vector<8x64xf32>
    %c0_11 = arith.constant 0 : index
    %c0_12 = arith.constant 0 : index
    %16 = vector.load %arg5[%c0_11, %c0_12] : memref<1x64xf32, #tpu.memory_space<vmem>>, vector<1x64xf32>
    %17 = vector.broadcast %16 : vector<1x64xf32> to vector<8x64xf32>
    %18 = arith.addf %15, %17 : vector<8x64xf32>
    %cst_13 = arith.constant 0.000000e+00 : f32
    %19 = vector.broadcast %cst_13 : f32 to vector<8x64xf32>
    %20 = arith.minimumf %18, %19 : vector<8x64xf32>
    %cst_14 = arith.constant 0.000000e+00 : f32
    %21 = vector.broadcast %cst_14 : f32 to vector<8x64xf32>
    %22 = arith.cmpf ogt, %18, %21 : vector<8x64xf32>
    %23 = math.exp %20 : vector<8x64xf32>
    %cst_15 = arith.constant 1.000000e+00 : f32
    %24 = vector.broadcast %cst_15 : f32 to vector<8x64xf32>
    %25 = arith.subf %23, %24 : vector<8x64xf32>
    %26 = arith.select %22, %18, %25 : vector<8x64xi1>, vector<8x64xf32>
    %c0_16 = arith.constant 0 : index
    %c0_17 = arith.constant 0 : index
    %27 = vector.load %arg6[%c0_16, %c0_17] : memref<64x32xf32, #tpu.memory_space<vmem>>, vector<64x32xf32>
    %cst_18 = arith.constant dense<0.000000e+00> : vector<8x32xf32>
    %28 = tpu.matmul %26, %27, %cst_18 {dimension_numbers = #tpu.dot_dimension_numbers<[1], [0], [0], [1], [0, 0, 1, 1], [], []>} : vector<8x64xf32>, vector<64x32xf32>, vector<8x32xf32> -> vector<8x32xf32>
    %c0_19 = arith.constant 0 : index
    %c0_20 = arith.constant 0 : index
    %29 = vector.load %arg7[%c0_19, %c0_20] : memref<1x32xf32, #tpu.memory_space<vmem>>, vector<1x32xf32>
    %30 = vector.broadcast %29 : vector<1x32xf32> to vector<8x32xf32>
    %31 = arith.addf %28, %30 : vector<8x32xf32>
    %c0_21 = arith.constant 0 : index
    %c0_22 = arith.constant 0 : index
    %32 = vector.load %arg8[%c0_21, %c0_22] : memref<32x64xf32, #tpu.memory_space<vmem>>, vector<32x64xf32>
    %cst_23 = arith.constant dense<0.000000e+00> : vector<8x64xf32>
    %33 = tpu.matmul %31, %32, %cst_23 {dimension_numbers = #tpu.dot_dimension_numbers<[1], [0], [0], [1], [0, 0, 1, 1], [], []>} : vector<8x32xf32>, vector<32x64xf32>, vector<8x64xf32> -> vector<8x64xf32>
    %c0_24 = arith.constant 0 : index
    %c0_25 = arith.constant 0 : index
    %34 = vector.load %arg9[%c0_24, %c0_25] : memref<1x64xf32, #tpu.memory_space<vmem>>, vector<1x64xf32>
    %35 = vector.broadcast %34 : vector<1x64xf32> to vector<8x64xf32>
    %36 = arith.addf %33, %35 : vector<8x64xf32>
    %cst_26 = arith.constant 0.000000e+00 : f32
    %37 = vector.broadcast %cst_26 : f32 to vector<8x64xf32>
    %38 = arith.minimumf %36, %37 : vector<8x64xf32>
    %cst_27 = arith.constant 0.000000e+00 : f32
    %39 = vector.broadcast %cst_27 : f32 to vector<8x64xf32>
    %40 = arith.cmpf ogt, %36, %39 : vector<8x64xf32>
    %41 = math.exp %38 : vector<8x64xf32>
    %cst_28 = arith.constant 1.000000e+00 : f32
    %42 = vector.broadcast %cst_28 : f32 to vector<8x64xf32>
    %43 = arith.subf %41, %42 : vector<8x64xf32>
    %44 = arith.select %40, %36, %43 : vector<8x64xi1>, vector<8x64xf32>
    %c0_29 = arith.constant 0 : index
    %c0_30 = arith.constant 0 : index
    %45 = vector.load %arg10[%c0_29, %c0_30] : memref<64x128xf32, #tpu.memory_space<vmem>>, vector<64x128xf32>
    %cst_31 = arith.constant dense<0.000000e+00> : vector<8x128xf32>
    %46 = tpu.matmul %44, %45, %cst_31 {dimension_numbers = #tpu.dot_dimension_numbers<[1], [0], [0], [1], [0, 0, 1, 1], [], []>} : vector<8x64xf32>, vector<64x128xf32>, vector<8x128xf32> -> vector<8x128xf32>
    %c0_32 = arith.constant 0 : index
    %c0_33 = arith.constant 0 : index
    %47 = vector.load %arg11[%c0_32, %c0_33] : memref<1x128xf32, #tpu.memory_space<vmem>>, vector<1x128xf32>
    %48 = vector.broadcast %47 : vector<1x128xf32> to vector<8x128xf32>
    %49 = arith.addf %46, %48 : vector<8x128xf32>
    %cst_34 = arith.constant 0.000000e+00 : f32
    %50 = vector.broadcast %cst_34 : f32 to vector<8x128xf32>
    %51 = arith.minimumf %49, %50 : vector<8x128xf32>
    %cst_35 = arith.constant 0.000000e+00 : f32
    %52 = vector.broadcast %cst_35 : f32 to vector<8x128xf32>
    %53 = arith.cmpf ogt, %49, %52 : vector<8x128xf32>
    %54 = math.exp %51 : vector<8x128xf32>
    %cst_36 = arith.constant 1.000000e+00 : f32
    %55 = vector.broadcast %cst_36 : f32 to vector<8x128xf32>
    %56 = arith.subf %54, %55 : vector<8x128xf32>
    %57 = arith.select %53, %49, %56 : vector<8x128xi1>, vector<8x128xf32>
    %c0_37 = arith.constant 0 : index
    %c0_38 = arith.constant 0 : index
    %58 = vector.load %arg12[%c0_37, %c0_38] : memref<128x256xf32, #tpu.memory_space<vmem>>, vector<128x256xf32>
    %cst_39 = arith.constant dense<0.000000e+00> : vector<8x256xf32>
    %59 = tpu.matmul %57, %58, %cst_39 {dimension_numbers = #tpu.dot_dimension_numbers<[1], [0], [0], [1], [0, 0, 1, 1], [], []>} : vector<8x128xf32>, vector<128x256xf32>, vector<8x256xf32> -> vector<8x256xf32>
    %c0_40 = arith.constant 0 : index
    %c0_41 = arith.constant 0 : index
    %60 = vector.load %arg13[%c0_40, %c0_41] : memref<1x256xf32, #tpu.memory_space<vmem>>, vector<1x256xf32>
    %61 = vector.broadcast %60 : vector<1x256xf32> to vector<8x256xf32>
    %62 = arith.addf %59, %61 : vector<8x256xf32>
    %cst_42 = arith.constant 5.000000e-01 : f32
    %63 = vector.broadcast %cst_42 : f32 to vector<8x256xf32>
    %64 = arith.mulf %63, %62 : vector<8x256xf32>
    %65 = math.tanh %64 : vector<8x256xf32>
    %cst_43 = arith.constant 1.000000e+00 : f32
    %66 = vector.broadcast %cst_43 : f32 to vector<8x256xf32>
    %67 = arith.addf %65, %66 : vector<8x256xf32>
    %cst_44 = arith.constant 5.000000e-01 : f32
    %68 = vector.broadcast %cst_44 : f32 to vector<8x256xf32>
    %69 = arith.mulf %68, %67 : vector<8x256xf32>
    %c0_45 = arith.constant 0 : index
    %c0_46 = arith.constant 0 : index
    %70 = vector.load %arg14[%c0_45, %c0_46] : memref<8x256xf32, #tpu.memory_space<vmem>>, vector<8x256xf32>
    tpu.vector_store %arg14[%c0_45, %c0_46], %69 {strides = array<i32>} : memref<8x256xf32, #tpu.memory_space<vmem>>, vector<8x256xf32>,
    %c0_47 = arith.constant 0 : index
    %c0_48 = arith.constant 0 : index
    %71 = vector.load %arg15[%c0_47, %c0_48] : memref<8x32xf32, #tpu.memory_space<vmem>>, vector<8x32xf32>
    tpu.vector_store %arg15[%c0_47, %c0_48], %31 {strides = array<i32>} : memref<8x32xf32, #tpu.memory_space<vmem>>, vector<8x32xf32>,
    return
  }
  func.func @transform_0(%arg0: i32) -> (i32, i32) {
    %c0_i32 = arith.constant 0 : i32
    %c0_i32_0 = arith.constant 0 : i32
    return %arg0, %c0_i32 : i32, i32
  }
  func.func @transform_1(%arg0: i32) -> (i32, i32) {
    %c0_i32 = arith.constant 0 : i32
    %c0_i32_0 = arith.constant 0 : i32
    %c0_i32_1 = arith.constant 0 : i32
    return %c0_i32, %c0_i32_0 : i32, i32
  }
  func.func @transform_2(%arg0: i32) -> (i32, i32) {
    %c0_i32 = arith.constant 0 : i32
    %c0_i32_0 = arith.constant 0 : i32
    %c0_i32_1 = arith.constant 0 : i32
    return %c0_i32, %c0_i32_0 : i32, i32
  }
  func.func @transform_3(%arg0: i32) -> (i32, i32) {
    %c0_i32 = arith.constant 0 : i32
    %c0_i32_0 = arith.constant 0 : i32
    %c0_i32_1 = arith.constant 0 : i32
    return %c0_i32, %c0_i32_0 : i32, i32
  }
  func.func @transform_4(%arg0: i32) -> (i32, i32) {
    %c0_i32 = arith.constant 0 : i32
    %c0_i32_0 = arith.constant 0 : i32
    %c0_i32_1 = arith.constant 0 : i32
    return %c0_i32, %c0_i32_0 : i32, i32
  }
  func.func @transform_5(%arg0: i32) -> (i32, i32) {
    %c0_i32 = arith.constant 0 : i32
    %c0_i32_0 = arith.constant 0 : i32
    %c0_i32_1 = arith.constant 0 : i32
    return %c0_i32, %c0_i32_0 : i32, i32
  }
  func.func @transform_6(%arg0: i32) -> (i32, i32) {
    %c0_i32 = arith.constant 0 : i32
    %c0_i32_0 = arith.constant 0 : i32
    %c0_i32_1 = arith.constant 0 : i32
    return %c0_i32, %c0_i32_0 : i32, i32
  }
  func.func @transform_7(%arg0: i32) -> (i32, i32) {
    %c0_i32 = arith.constant 0 : i32
    %c0_i32_0 = arith.constant 0 : i32
    %c0_i32_1 = arith.constant 0 : i32
    return %c0_i32, %c0_i32_0 : i32, i32
  }
  func.func @transform_8(%arg0: i32) -> (i32, i32) {
    %c0_i32 = arith.constant 0 : i32
    %c0_i32_0 = arith.constant 0 : i32
    %c0_i32_1 = arith.constant 0 : i32
    return %c0_i32, %c0_i32_0 : i32, i32
  }
  func.func @transform_9(%arg0: i32) -> (i32, i32) {
    %c0_i32 = arith.constant 0 : i32
    %c0_i32_0 = arith.constant 0 : i32
    %c0_i32_1 = arith.constant 0 : i32
    return %c0_i32, %c0_i32_0 : i32, i32
  }
  func.func @transform_10(%arg0: i32) -> (i32, i32) {
    %c0_i32 = arith.constant 0 : i32
    %c0_i32_0 = arith.constant 0 : i32
    %c0_i32_1 = arith.constant 0 : i32
    return %c0_i32, %c0_i32_0 : i32, i32
  }
  func.func @transform_11(%arg0: i32) -> (i32, i32) {
    %c0_i32 = arith.constant 0 : i32
    %c0_i32_0 = arith.constant 0 : i32
    %c0_i32_1 = arith.constant 0 : i32
    return %c0_i32, %c0_i32_0 : i32, i32
  }
  func.func @transform_12(%arg0: i32) -> (i32, i32) {
    %c0_i32 = arith.constant 0 : i32
    %c0_i32_0 = arith.constant 0 : i32
    %c0_i32_1 = arith.constant 0 : i32
    return %c0_i32, %c0_i32_0 : i32, i32
  }
  func.func @transform_13(%arg0: i32) -> (i32, i32) {
    %c0_i32 = arith.constant 0 : i32
    %c0_i32_0 = arith.constant 0 : i32
    return %arg0, %c0_i32 : i32, i32
  }
  func.func @transform_14(%arg0: i32) -> (i32, i32) {
    %c0_i32 = arith.constant 0 : i32
    %c0_i32_0 = arith.constant 0 : i32
    return %arg0, %c0_i32 : i32, i32
  }
}

module attributes {stable_mosaic.version = 11 : i64} {
  func.func @autoencoder_kernel(%arg0: i32, %arg1: memref<8x256xf32, #tpu.memory_space<vmem>>, %arg2: memref<256x128xf32, #tpu.memory_space<vmem>>, %arg3: memref<1x128xf32, #tpu.memory_space<vmem>>, %arg4: memref<128x64xf32, #tpu.memory_space<vmem>>, %arg5: memref<1x64xf32, #tpu.memory_space<vmem>>, %arg6: memref<64x32xf32, #tpu.memory_space<vmem>>, %arg7: memref<1x32xf32, #tpu.memory_space<vmem>>, %arg8: memref<32x64xf32, #tpu.memory_space<vmem>>, %arg9: memref<1x64xf32, #tpu.memory_space<vmem>>, %arg10: memref<64x128xf32, #tpu.memory_space<vmem>>, %arg11: memref<1x128xf32, #tpu.memory_space<vmem>>, %arg12: memref<128x256xf32, #tpu.memory_space<vmem>>, %arg13: memref<1x256xf32, #tpu.memory_space<vmem>>, %arg14: memref<8x256xf32, #tpu.memory_space<vmem>>, %arg15: memref<8x32xf32, #tpu.memory_space<vmem>>) attributes {dimension_semantics = [#tpu.dimension_semantics<parallel>], iteration_bounds = array<i64: 2>, scalar_prefetch = 0 : i64, scratch_operands = 0 : i64, tpu.core_type = #tpu.core_type<tc>, window_params = [{transform_indices = @transform_0, window_bounds = array<i64: 8, 256>}, {pipeline_mode = #tpu.pipeline_mode<synchronous>, transform_indices = @transform_1, window_bounds = array<i64: 256, 128>}, {pipeline_mode = #tpu.pipeline_mode<synchronous>, transform_indices = @transform_2, window_bounds = array<i64: 1, 128>}, {pipeline_mode = #tpu.pipeline_mode<synchronous>, transform_indices = @transform_3, window_bounds = array<i64: 128, 64>}, {pipeline_mode = #tpu.pipeline_mode<synchronous>, transform_indices = @transform_4, window_bounds = array<i64: 1, 64>}, {pipeline_mode = #tpu.pipeline_mode<synchronous>, transform_indices = @transform_5, window_bounds = array<i64: 64, 32>}, {pipeline_mode = #tpu.pipeline_mode<synchronous>, transform_indices = @transform_6, window_bounds = array<i64: 1, 32>}, {pipeline_mode = #tpu.pipeline_mode<synchronous>, transform_indices = @transform_7, window_bounds = array<i64: 32, 64>}, {pipeline_mode = #tpu.pipeline_mode<synchronous>, transform_indices = @transform_8, window_bounds = array<i64: 1, 64>}, {pipeline_mode = #tpu.pipeline_mode<synchronous>, transform_indices = @transform_9, window_bounds = array<i64: 64, 128>}, {pipeline_mode = #tpu.pipeline_mode<synchronous>, transform_indices = @transform_10, window_bounds = array<i64: 1, 128>}, {pipeline_mode = #tpu.pipeline_mode<synchronous>, transform_indices = @transform_11, window_bounds = array<i64: 128, 256>}, {pipeline_mode = #tpu.pipeline_mode<synchronous>, transform_indices = @transform_12, window_bounds = array<i64: 1, 256>}, {transform_indices = @transform_13, window_bounds = array<i64: 8, 256>}, {transform_indices = @transform_14, window_bounds = array<i64: 8, 32>}]} {
    %c0 = arith.constant 0 : index
    %c0_0 = arith.constant 0 : index
    %0 = vector.load %arg1[%c0, %c0_0] : memref<8x256xf32, #tpu.memory_space<vmem>>, vector<8x256xf32>
    %c0_1 = arith.constant 0 : index
    %c0_2 = arith.constant 0 : index
    %1 = vector.load %arg2[%c0_1, %c0_2] : memref<256x128xf32, #tpu.memory_space<vmem>>, vector<256x128xf32>
    %cst = arith.constant dense<0.000000e+00> : vector<8x128xf32>
    %2 = tpu.matmul %0, %1, %cst {dimension_numbers = #tpu.dot_dimension_numbers<[1], [0], [0], [1], [0, 0, 1, 1], [], []>} : vector<8x256xf32>, vector<256x128xf32>, vector<8x128xf32> -> vector<8x128xf32>
    %c0_3 = arith.constant 0 : index
    %c0_4 = arith.constant 0 : index
    %3 = vector.load %arg3[%c0_3, %c0_4] : memref<1x128xf32, #tpu.memory_space<vmem>>, vector<1x128xf32>
    %4 = vector.broadcast %3 : vector<1x128xf32> to vector<8x128xf32>
    %5 = arith.addf %2, %4 : vector<8x128xf32>
    %cst_5 = arith.constant 0.000000e+00 : f32
    %6 = vector.broadcast %cst_5 : f32 to vector<8x128xf32>
    %7 = arith.minimumf %5, %6 : vector<8x128xf32>
    %cst_6 = arith.constant 0.000000e+00 : f32
    %8 = vector.broadcast %cst_6 : f32 to vector<8x128xf32>
    %9 = arith.cmpf ogt, %5, %8 : vector<8x128xf32>
    %10 = math.exp %7 : vector<8x128xf32>
    %cst_7 = arith.constant 1.000000e+00 : f32
    %11 = vector.broadcast %cst_7 : f32 to vector<8x128xf32>
    %12 = arith.subf %10, %11 : vector<8x128xf32>
    %13 = arith.select %9, %5, %12 : vector<8x128xi1>, vector<8x128xf32>
    %c0_8 = arith.constant 0 : index
    %c0_9 = arith.constant 0 : index
    %14 = vector.load %arg4[%c0_8, %c0_9] : memref<128x64xf32, #tpu.memory_space<vmem>>, vector<128x64xf32>
    %cst_10 = arith.constant dense<0.000000e+00> : vector<8x64xf32>
    %15 = tpu.matmul %13, %14, %cst_10 {dimension_numbers = #tpu.dot_dimension_numbers<[1], [0], [0], [1], [0, 0, 1, 1], [], []>} : vector<8x128xf32>, vector<128x64xf32>, vector<8x64xf32> -> vector<8x64xf32>
    %c0_11 = arith.constant 0 : index
    %c0_12 = arith.constant 0 : index
    %16 = vector.load %arg5[%c0_11, %c0_12] : memref<1x64xf32, #tpu.memory_space<vmem>>, vector<1x64xf32>
    %17 = vector.broadcast %16 : vector<1x64xf32> to vector<8x64xf32>
    %18 = arith.addf %15, %17 : vector<8x64xf32>
    %cst_13 = arith.constant 0.000000e+00 : f32
    %19 = vector.broadcast %cst_13 : f32 to vector<8x64xf32>
    %20 = arith.minimumf %18, %19 : vector<8x64xf32>
    %cst_14 = arith.constant 0.000000e+00 : f32
    %21 = vector.broadcast %cst_14 : f32 to vector<8x64xf32>
    %22 = arith.cmpf ogt, %18, %21 : vector<8x64xf32>
    %23 = math.exp %20 : vector<8x64xf32>
    %cst_15 = arith.constant 1.000000e+00 : f32
    %24 = vector.broadcast %cst_15 : f32 to vector<8x64xf32>
    %25 = arith.subf %23, %24 : vector<8x64xf32>
    %26 = arith.select %22, %18, %25 : vector<8x64xi1>, vector<8x64xf32>
    %c0_16 = arith.constant 0 : index
    %c0_17 = arith.constant 0 : index
    %27 = vector.load %arg6[%c0_16, %c0_17] : memref<64x32xf32, #tpu.memory_space<vmem>>, vector<64x32xf32>
    %cst_18 = arith.constant dense<0.000000e+00> : vector<8x32xf32>
    %28 = tpu.matmul %26, %27, %cst_18 {dimension_numbers = #tpu.dot_dimension_numbers<[1], [0], [0], [1], [0, 0, 1, 1], [], []>} : vector<8x64xf32>, vector<64x32xf32>, vector<8x32xf32> -> vector<8x32xf32>
    %c0_19 = arith.constant 0 : index
    %c0_20 = arith.constant 0 : index
    %29 = vector.load %arg7[%c0_19, %c0_20] : memref<1x32xf32, #tpu.memory_space<vmem>>, vector<1x32xf32>
    %30 = vector.broadcast %29 : vector<1x32xf32> to vector<8x32xf32>
    %31 = arith.addf %28, %30 : vector<8x32xf32>
    %c0_21 = arith.constant 0 : index
    %c0_22 = arith.constant 0 : index
    %32 = vector.load %arg8[%c0_21, %c0_22] : memref<32x64xf32, #tpu.memory_space<vmem>>, vector<32x64xf32>
    %cst_23 = arith.constant dense<0.000000e+00> : vector<8x64xf32>
    %33 = tpu.matmul %31, %32, %cst_23 {dimension_numbers = #tpu.dot_dimension_numbers<[1], [0], [0], [1], [0, 0, 1, 1], [], []>} : vector<8x32xf32>, vector<32x64xf32>, vector<8x64xf32> -> vector<8x64xf32>
    %c0_24 = arith.constant 0 : index
    %c0_25 = arith.constant 0 : index
    %34 = vector.load %arg9[%c0_24, %c0_25] : memref<1x64xf32, #tpu.memory_space<vmem>>, vector<1x64xf32>
    %35 = vector.broadcast %34 : vector<1x64xf32> to vector<8x64xf32>
    %36 = arith.addf %33, %35 : vector<8x64xf32>
    %cst_26 = arith.constant 0.000000e+00 : f32
    %37 = vector.broadcast %cst_26 : f32 to vector<8x64xf32>
    %38 = arith.minimumf %36, %37 : vector<8x64xf32>
    %cst_27 = arith.constant 0.000000e+00 : f32
    %39 = vector.broadcast %cst_27 : f32 to vector<8x64xf32>
    %40 = arith.cmpf ogt, %36, %39 : vector<8x64xf32>
    %41 = math.exp %38 : vector<8x64xf32>
    %cst_28 = arith.constant 1.000000e+00 : f32
    %42 = vector.broadcast %cst_28 : f32 to vector<8x64xf32>
    %43 = arith.subf %41, %42 : vector<8x64xf32>
    %44 = arith.select %40, %36, %43 : vector<8x64xi1>, vector<8x64xf32>
    %c0_29 = arith.constant 0 : index
    %c0_30 = arith.constant 0 : index
    %45 = vector.load %arg10[%c0_29, %c0_30] : memref<64x128xf32, #tpu.memory_space<vmem>>, vector<64x128xf32>
    %cst_31 = arith.constant dense<0.000000e+00> : vector<8x128xf32>
    %46 = tpu.matmul %44, %45, %cst_31 {dimension_numbers = #tpu.dot_dimension_numbers<[1], [0], [0], [1], [0, 0, 1, 1], [], []>} : vector<8x64xf32>, vector<64x128xf32>, vector<8x128xf32> -> vector<8x128xf32>
    %c0_32 = arith.constant 0 : index
    %c0_33 = arith.constant 0 : index
    %47 = vector.load %arg11[%c0_32, %c0_33] : memref<1x128xf32, #tpu.memory_space<vmem>>, vector<1x128xf32>
    %48 = vector.broadcast %47 : vector<1x128xf32> to vector<8x128xf32>
    %49 = arith.addf %46, %48 : vector<8x128xf32>
    %cst_34 = arith.constant 0.000000e+00 : f32
    %50 = vector.broadcast %cst_34 : f32 to vector<8x128xf32>
    %51 = arith.minimumf %49, %50 : vector<8x128xf32>
    %cst_35 = arith.constant 0.000000e+00 : f32
    %52 = vector.broadcast %cst_35 : f32 to vector<8x128xf32>
    %53 = arith.cmpf ogt, %49, %52 : vector<8x128xf32>
    %54 = math.exp %51 : vector<8x128xf32>
    %cst_36 = arith.constant 1.000000e+00 : f32
    %55 = vector.broadcast %cst_36 : f32 to vector<8x128xf32>
    %56 = arith.subf %54, %55 : vector<8x128xf32>
    %57 = arith.select %53, %49, %56 : vector<8x128xi1>, vector<8x128xf32>
    %c0_37 = arith.constant 0 : index
    %c0_38 = arith.constant 0 : index
    %58 = vector.load %arg12[%c0_37, %c0_38] : memref<128x256xf32, #tpu.memory_space<vmem>>, vector<128x256xf32>
    %cst_39 = arith.constant dense<0.000000e+00> : vector<8x256xf32>
    %59 = tpu.matmul %57, %58, %cst_39 {dimension_numbers = #tpu.dot_dimension_numbers<[1], [0], [0], [1], [0, 0, 1, 1], [], []>} : vector<8x128xf32>, vector<128x256xf32>, vector<8x256xf32> -> vector<8x256xf32>
    %c0_40 = arith.constant 0 : index
    %c0_41 = arith.constant 0 : index
    %60 = vector.load %arg13[%c0_40, %c0_41] : memref<1x256xf32, #tpu.memory_space<vmem>>, vector<1x256xf32>
    %61 = vector.broadcast %60 : vector<1x256xf32> to vector<8x256xf32>
    %62 = arith.addf %59, %61 : vector<8x256xf32>
    %cst_42 = arith.constant 5.000000e-01 : f32
    %63 = vector.broadcast %cst_42 : f32 to vector<8x256xf32>
    %64 = arith.mulf %63, %62 : vector<8x256xf32>
    %65 = math.tanh %64 : vector<8x256xf32>
    %cst_43 = arith.constant 1.000000e+00 : f32
    %66 = vector.broadcast %cst_43 : f32 to vector<8x256xf32>
    %67 = arith.addf %65, %66 : vector<8x256xf32>
    %cst_44 = arith.constant 5.000000e-01 : f32
    %68 = vector.broadcast %cst_44 : f32 to vector<8x256xf32>
    %69 = arith.mulf %68, %67 : vector<8x256xf32>
    %c0_45 = arith.constant 0 : index
    %c0_46 = arith.constant 0 : index
    %70 = vector.load %arg14[%c0_45, %c0_46] : memref<8x256xf32, #tpu.memory_space<vmem>>, vector<8x256xf32>
    tpu.vector_store %arg14[%c0_45, %c0_46], %69 {strides = array<i32>} : memref<8x256xf32, #tpu.memory_space<vmem>>, vector<8x256xf32>,
    %c0_47 = arith.constant 0 : index
    %c0_48 = arith.constant 0 : index
    %71 = vector.load %arg15[%c0_47, %c0_48] : memref<8x32xf32, #tpu.memory_space<vmem>>, vector<8x32xf32>
    tpu.vector_store %arg15[%c0_47, %c0_48], %31 {strides = array<i32>} : memref<8x32xf32, #tpu.memory_space<vmem>>, vector<8x32xf32>,
    return
  }
  func.func @transform_0(%arg0: i32) -> (i32, i32) {
    %c0_i32 = arith.constant 0 : i32
    %c0_i32_0 = arith.constant 0 : i32
    return %arg0, %c0_i32 : i32, i32
  }
  func.func @transform_1(%arg0: i32) -> (i32, i32) {
    %c0_i32 = arith.constant 0 : i32
    %c0_i32_0 = arith.constant 0 : i32
    %c0_i32_1 = arith.constant 0 : i32
    return %c0_i32, %c0_i32_0 : i32, i32
  }
  func.func @transform_2(%arg0: i32) -> (i32, i32) {
    %c0_i32 = arith.constant 0 : i32
    %c0_i32_0 = arith.constant 0 : i32
    %c0_i32_1 = arith.constant 0 : i32
    return %c0_i32, %c0_i32_0 : i32, i32
  }
  func.func @transform_3(%arg0: i32) -> (i32, i32) {
    %c0_i32 = arith.constant 0 : i32
    %c0_i32_0 = arith.constant 0 : i32
    %c0_i32_1 = arith.constant 0 : i32
    return %c0_i32, %c0_i32_0 : i32, i32
  }
  func.func @transform_4(%arg0: i32) -> (i32, i32) {
    %c0_i32 = arith.constant 0 : i32
    %c0_i32_0 = arith.constant 0 : i32
    %c0_i32_1 = arith.constant 0 : i32
    return %c0_i32, %c0_i32_0 : i32, i32
  }
  func.func @transform_5(%arg0: i32) -> (i32, i32) {
    %c0_i32 = arith.constant 0 : i32
    %c0_i32_0 = arith.constant 0 : i32
    %c0_i32_1 = arith.constant 0 : i32
    return %c0_i32, %c0_i32_0 : i32, i32
  }
  func.func @transform_6(%arg0: i32) -> (i32, i32) {
    %c0_i32 = arith.constant 0 : i32
    %c0_i32_0 = arith.constant 0 : i32
    %c0_i32_1 = arith.constant 0 : i32
    return %c0_i32, %c0_i32_0 : i32, i32
  }
  func.func @transform_7(%arg0: i32) -> (i32, i32) {
    %c0_i32 = arith.constant 0 : i32
    %c0_i32_0 = arith.constant 0 : i32
    %c0_i32_1 = arith.constant 0 : i32
    return %c0_i32, %c0_i32_0 : i32, i32
  }
  func.func @transform_8(%arg0: i32) -> (i32, i32) {
    %c0_i32 = arith.constant 0 : i32
    %c0_i32_0 = arith.constant 0 : i32
    %c0_i32_1 = arith.constant 0 : i32
    return %c0_i32, %c0_i32_0 : i32, i32
  }
  func.func @transform_9(%arg0: i32) -> (i32, i32) {
    %c0_i32 = arith.constant 0 : i32
    %c0_i32_0 = arith.constant 0 : i32
    %c0_i32_1 = arith.constant 0 : i32
    return %c0_i32, %c0_i32_0 : i32, i32
  }
  func.func @transform_10(%arg0: i32) -> (i32, i32) {
    %c0_i32 = arith.constant 0 : i32
    %c0_i32_0 = arith.constant 0 : i32
    %c0_i32_1 = arith.constant 0 : i32
    return %c0_i32, %c0_i32_0 : i32, i32
  }
  func.func @transform_11(%arg0: i32) -> (i32, i32) {
    %c0_i32 = arith.constant 0 : i32
    %c0_i32_0 = arith.constant 0 : i32
    %c0_i32_1 = arith.constant 0 : i32
    return %c0_i32, %c0_i32_0 : i32, i32
  }
  func.func @transform_12(%arg0: i32) -> (i32, i32) {
    %c0_i32 = arith.constant 0 : i32
    %c0_i32_0 = arith.constant 0 : i32
    %c0_i32_1 = arith.constant 0 : i32
    return %c0_i32, %c0_i32_0 : i32, i32
  }
  func.func @transform_13(%arg0: i32) -> (i32, i32) {
    %c0_i32 = arith.constant 0 : i32
    %c0_i32_0 = arith.constant 0 : i32
    return %arg0, %c0_i32 : i32, i32
  }
  func.func @transform_14(%arg0: i32) -> (i32, i32) {
    %c0_i32 = arith.constant 0 : i32
    %c0_i32_0 = arith.constant 0 : i32
    return %arg0, %c0_i32 : i32, i32
  }
}

</mosaic_0001>

<llo_original>
// kernel: tpu_custom_call.1
$region0: #{tpu_custom_call.1}
  #allocation0 [shape = 'u32[]', space=smem, size = 0x4, offset = 0x4, fixed_abs, tag = 'smem constant byte address 0x4 - core index']
  #allocation1 [shape = 'u32[144,128]{1,0:T(1,128)}', space=vmem, size = 0x12000, scoped, tag = 'internal scratch']
  %s0 = inlined_call_operand.hbm [shape: f32[16,256], index: 0, kind: input, shape index: {}]
  %s1 = inlined_call_operand.vmem [shape: f32[256,128], index: 1, kind: input, shape index: {}]
  %s2 = inlined_call_operand.hbm [shape: f32[1,128], index: 2, kind: input, shape index: {}]
  %s3 = inlined_call_operand.vmem [shape: f32[128,64], index: 3, kind: input, shape index: {}]
  %s4 = inlined_call_operand.hbm [shape: f32[1,64], index: 4, kind: input, shape index: {}]
  %s5 = inlined_call_operand.vmem [shape: f32[64,32], index: 5, kind: input, shape index: {}]
  %s6 = inlined_call_operand.hbm [shape: f32[1,32], index: 6, kind: input, shape index: {}]
  %s7 = inlined_call_operand.hbm [shape: f32[32,64], index: 7, kind: input, shape index: {}]
  %s8 = inlined_call_operand.hbm [shape: f32[1,64], index: 8, kind: input, shape index: {}]
  %s9 = inlined_call_operand.vmem [shape: f32[64,128], index: 9, kind: input, shape index: {}]
  %s10 = inlined_call_operand.vmem [shape: f32[1,128], index: 10, kind: input, shape index: {}]
  %s11 = inlined_call_operand.hbm [shape: f32[128,256], index: 11, kind: input, shape index: {}]
  %s12 = inlined_call_operand.vmem [shape: f32[1,256], index: 12, kind: input, shape index: {}]
  %s13 = inlined_call_operand.hbm [shape: f32[16,256], index: 13, kind: output, shape index: {0}]
  %s14 = inlined_call_operand.hbm [shape: f32[16,32], index: 14, kind: output, shape index: {1}]
  %15 = xla_tuple %s13, %s14
  %s16 = sld [smem:[#allocation0]]
  $region121: #{tpu_custom_call.1} parent=0
    _
  %s18 = ssub.s32 1, %s16
  %s19 = scalar_select 0, %s18, %s16
  $region1: #{tpu_custom_call.1} parent=0
    #allocation2 [shape = 'u8[16384]{0}', space=vmem, size = 0x4000, scoped, tag = 'input window, operand 0']
    #allocation3 [shape = 's32[2]{0}', space=sflag, size = 0x8, scoped, tag = 'scoped memory for tpu_custom_call.1']
    #allocation4 [shape = 's32[2]{0}', space=sflag, size = 0x8, scoped, tag = 'scoped memory for tpu_custom_call.1']
    #allocation5 [shape = 'u8[512]{0}', space=vmem, size = 0x400, scoped, tag = 'input window, operand 2, single buffered']
    #allocation6 [shape = 's32[1]{0}', space=sflag, size = 0x4, scoped, tag = 'scoped memory for tpu_custom_call.1']
    #allocation7 [shape = 'u8[512]{0}', space=vmem, size = 0x400, scoped, tag = 'input window, operand 4, single buffered']
    #allocation8 [shape = 'u8[512]{0}', space=vmem, size = 0x400, scoped, tag = 'input window, operand 6, single buffered']
    #allocation9 [shape = 's32[1]{0}', space=sflag, size = 0x4, scoped, tag = 'scoped memory for tpu_custom_call.1']
    #allocation10 [shape = 'u8[16384]{0}', space=vmem, size = 0x4000, scoped, tag = 'input window, operand 7, single buffered']
    #allocation11 [shape = 'u8[512]{0}', space=vmem, size = 0x400, scoped, tag = 'input window, operand 8, single buffered']
    #allocation12 [shape = 's32[1]{0}', space=sflag, size = 0x4, scoped, tag = 'scoped memory for tpu_custom_call.1']
    #allocation13 [shape = 'u8[131072]{0}', space=vmem, size = 0x20000, scoped, tag = 'input window, operand 11, single buffered']
    #allocation14 [shape = 'u8[16384]{0}', space=vmem, size = 0x4000, scoped, tag = 'output window, operand 0']
    #allocation15 [shape = 'u8[8192]{0}', space=vmem, size = 0x2000, scoped, tag = 'output window, operand 1']
    #allocation16 [shape = 's32[2]{0}', space=sflag, size = 0x8, scoped, tag = 'scoped memory for tpu_custom_call.1']
    %20 = vsyncpa [#allocation3], 0
    %s21 = scalar_lea.sflag [#allocation3], 1
    %22 = vsyncpa %s21, 0
    %23 = vsyncpa [#allocation6], 0
    %24 = vsyncpa [#allocation9], 0
    %25 = vsyncpa [#allocation12], 0
    %26 = vsyncpa [#allocation4], 0
    %s27 = scalar_lea.sflag [#allocation4], 1
    %28 = vsyncpa %s27, 0
    %29 = vsyncpa [#allocation16], 0
    %s30 = scalar_lea.sflag [#allocation16], 1
    %31 = vsyncpa %s30, 0
    loop: start=0, step=1, limit=4
    $region2: #{tpu_custom_call.1} parent=1 // loop_pre_header
      _
    $region3: #{tpu_custom_call.1} parent=1 // loop_header
      %s33 = sphi 0, %s37
      %p34 = scmp.ge.s32.totalorder %s33, 4
      %s43 = sphi 0, %s45
      %s46 = sphi 0, %s43
      %s47 = sphi 0, %s46
      %s63 = sphi 0, %s47
      %s67 = sphi 0, %s67
      %s69 = sphi 0, %s67
      %s70 = sphi 0, %s69
      %s84 = sphi 0, %s70
      %s88 = sphi 0, %s88
      %s90 = sphi 0, %s88
      %s91 = sphi 0, %s90
      %s105 = sphi 0, %s91
      %s109 = sphi 0, %s109
      %s111 = sphi 0, %s109
      %s112 = sphi 0, %s111
      %s126 = sphi 0, %s112
      %s130 = sphi 0, %s130
      %s132 = sphi 0, %s130
      %s133 = sphi 0, %s132
      %s147 = sphi 0, %s133
      %s151 = sphi 0, %s151
      %s153 = sphi 0, %s151
      %s154 = sphi 0, %s153
      %s168 = sphi 0, %s154
      %s172 = sphi 0, %s172
      %s174 = sphi 0, %s172
      %s175 = sphi 0, %s174
      %s189 = sphi 0, %s175
      %s193 = sphi 0, %s193
      %s195 = sphi 0, %s193
      %s196 = sphi 0, %s195
      %s210 = sphi 0, %s196
      %s214 = sphi 0, %s214
      %s216 = sphi 0, %s214
      %s217 = sphi 0, %s216
      %s231 = sphi 0, %s217
      %s235 = sphi 0, %s235
      %s237 = sphi 0, %s235
      %s238 = sphi 0, %s237
      %s252 = sphi 0, %s238
      %s256 = sphi 0, %s256
      %s258 = sphi 0, %s256
      %s259 = sphi 0, %s258
      %s273 = sphi 0, %s259
      %s277 = sphi 0, %s277
      %s279 = sphi 0, %s277
      %s280 = sphi 0, %s279
      %s294 = sphi 0, %s280
      %s298 = sphi 0, %s298
      %s300 = sphi 0, %s298
      %s301 = sphi 0, %s300
      %s315 = sphi 0, %s301
      %s321 = sphi 0, %s323
      %s324 = sphi 0, %s321
      %s325 = sphi 0, %s324
      %s341 = sphi 0, %s325
      %s347 = sphi 0, %s349
      %s350 = sphi 0, %s347
      %s351 = sphi 0, %s350
      %s367 = sphi 0, %s351
    $region4: #{tpu_custom_call.1} parent=1 // loop_header_branch
      %36 = sbr.rel (%p34) target = $region8
    $region5: #{tpu_custom_call.1} parent=1 // loop_body
      %s38 = ssub.s32 %s33, 1
      %s39 = ssub.s32 %s33, 2
      %s40 = sadd.s32 %s33, 1
      %s41 = ssub.s32 %s33, %s40
      %p42 = scmp.eq.s32.totalorder %s41, 0
      %s44 = sadd.s32 %s43, 1
      %s45 = scalar_select %p42, %s43, %s44
      %p48 = pneg %p42
      %p49 = scmp.eq.s32.totalorder %s33, 1
      %p50 = por %p48, %p49
      %p51 = scmp.ne.s32.totalorder %s43, %s46
      %p52 = scmp.eq.s32.totalorder %s33, 0
      %p53 = por %p51, %p52
      %p54 = scmp.ne.s32.totalorder %s43, %s46
      %p55 = scmp.eq.s32.totalorder %s38, 1
      %p56 = por %p54, %p55
      %p57 = scmp.ne.s32.totalorder %s46, %s47
      %p58 = scmp.eq.s32.totalorder %s38, 0
      %p59 = por %p57, %p58
      %p60 = scmp.ne.s32.totalorder %s46, %s47
      %p61 = scmp.eq.s32.totalorder %s39, 1
      %p62 = por %p60, %p61
      %p64 = scmp.ne.s32.totalorder %s47, %s63
      %p65 = scmp.eq.s32.totalorder %s39, 0
      %p66 = por %p64, %p65
      %s68 = sadd.s32 %s67, 1
      %p71 = scmp.eq.s32.totalorder %s33, 1
      %p72 = scmp.ne.s32.totalorder %s67, %s69
      %p73 = scmp.eq.s32.totalorder %s33, 0
      %p74 = por %p72, %p73
      %p75 = scmp.ne.s32.totalorder %s67, %s69
      %p76 = scmp.eq.s32.totalorder %s38, 1
      %p77 = por %p75, %p76
      %p78 = scmp.ne.s32.totalorder %s69, %s70
      %p79 = scmp.eq.s32.totalorder %s38, 0
      %p80 = por %p78, %p79
      %p81 = scmp.ne.s32.totalorder %s69, %s70
      %p82 = scmp.eq.s32.totalorder %s39, 1
      %p83 = por %p81, %p82
      %p85 = scmp.ne.s32.totalorder %s70, %s84
      %p86 = scmp.eq.s32.totalorder %s39, 0
      %p87 = por %p85, %p86
      %s89 = sadd.s32 %s88, 1
      %p92 = scmp.eq.s32.totalorder %s33, 1
      %p93 = scmp.ne.s32.totalorder %s88, %s90
      %p94 = scmp.eq.s32.totalorder %s33, 0
      %p95 = por %p93, %p94
      %p96 = scmp.ne.s32.totalorder %s88, %s90
      %p97 = scmp.eq.s32.totalorder %s38, 1
      %p98 = por %p96, %p97
      %p99 = scmp.ne.s32.totalorder %s90, %s91
      %p100 = scmp.eq.s32.totalorder %s38, 0
      %p101 = por %p99, %p100
      %p102 = scmp.ne.s32.totalorder %s90, %s91
      %p103 = scmp.eq.s32.totalorder %s39, 1
      %p104 = por %p102, %p103
      %p106 = scmp.ne.s32.totalorder %s91, %s105
      %p107 = scmp.eq.s32.totalorder %s39, 0
      %p108 = por %p106, %p107
      %s110 = sadd.s32 %s109, 1
      %p113 = scmp.eq.s32.totalorder %s33, 1
      %p114 = scmp.ne.s32.totalorder %s109, %s111
      %p115 = scmp.eq.s32.totalorder %s33, 0
      %p116 = por %p114, %p115
      %p117 = scmp.ne.s32.totalorder %s109, %s111
      %p118 = scmp.eq.s32.totalorder %s38, 1
      %p119 = por %p117, %p118
      %p120 = scmp.ne.s32.totalorder %s111, %s112
      %p121 = scmp.eq.s32.totalorder %s38, 0
      %p122 = por %p120, %p121
      %p123 = scmp.ne.s32.totalorder %s111, %s112
      %p124 = scmp.eq.s32.totalorder %s39, 1
      %p125 = por %p123, %p124
      %p127 = scmp.ne.s32.totalorder %s112, %s126
      %p128 = scmp.eq.s32.totalorder %s39, 0
      %p129 = por %p127, %p128
      %s131 = sadd.s32 %s130, 1
      %p134 = scmp.eq.s32.totalorder %s33, 1
      %p135 = scmp.ne.s32.totalorder %s130, %s132
      %p136 = scmp.eq.s32.totalorder %s33, 0
      %p137 = por %p135, %p136
      %p138 = scmp.ne.s32.totalorder %s130, %s132
      %p139 = scmp.eq.s32.totalorder %s38, 1
      %p140 = por %p138, %p139
      %p141 = scmp.ne.s32.totalorder %s132, %s133
      %p142 = scmp.eq.s32.totalorder %s38, 0
      %p143 = por %p141, %p142
      %p144 = scmp.ne.s32.totalorder %s132, %s133
      %p145 = scmp.eq.s32.totalorder %s39, 1
      %p146 = por %p144, %p145
      %p148 = scmp.ne.s32.totalorder %s133, %s147
      %p149 = scmp.eq.s32.totalorder %s39, 0
      %p150 = por %p148, %p149
      %s152 = sadd.s32 %s151, 1
      %p155 = scmp.eq.s32.totalorder %s33, 1
      %p156 = scmp.ne.s32.totalorder %s151, %s153
      %p157 = scmp.eq.s32.totalorder %s33, 0
      %p158 = por %p156, %p157
      %p159 = scmp.ne.s32.totalorder %s151, %s153
      %p160 = scmp.eq.s32.totalorder %s38, 1
      %p161 = por %p159, %p160
      %p162 = scmp.ne.s32.totalorder %s153, %s154
      %p163 = scmp.eq.s32.totalorder %s38, 0
      %p164 = por %p162, %p163
      %p165 = scmp.ne.s32.totalorder %s153, %s154
      %p166 = scmp.eq.s32.totalorder %s39, 1
      %p167 = por %p165, %p166
      %p169 = scmp.ne.s32.totalorder %s154, %s168
      %p170 = scmp.eq.s32.totalorder %s39, 0
      %p171 = por %p169, %p170
      %s173 = sadd.s32 %s172, 1
      %p176 = scmp.eq.s32.totalorder %s33, 1
      %p177 = scmp.ne.s32.totalorder %s172, %s174
      %p178 = scmp.eq.s32.totalorder %s33, 0
      %p179 = por %p177, %p178
      %p180 = scmp.ne.s32.totalorder %s172, %s174
      %p181 = scmp.eq.s32.totalorder %s38, 1
      %p182 = por %p180, %p181
      %p183 = scmp.ne.s32.totalorder %s174, %s175
      %p184 = scmp.eq.s32.totalorder %s38, 0
      %p185 = por %p183, %p184
      %p186 = scmp.ne.s32.totalorder %s174, %s175
      %p187 = scmp.eq.s32.totalorder %s39, 1
      %p188 = por %p186, %p187
      %p190 = scmp.ne.s32.totalorder %s175, %s189
      %p191 = scmp.eq.s32.totalorder %s39, 0
      %p192 = por %p190, %p191
      %s194 = sadd.s32 %s193, 1
      %p197 = scmp.eq.s32.totalorder %s33, 1
      %p198 = scmp.ne.s32.totalorder %s193, %s195
      %p199 = scmp.eq.s32.totalorder %s33, 0
      %p200 = por %p198, %p199
      %p201 = scmp.ne.s32.totalorder %s193, %s195
      %p202 = scmp.eq.s32.totalorder %s38, 1
      %p203 = por %p201, %p202
      %p204 = scmp.ne.s32.totalorder %s195, %s196
      %p205 = scmp.eq.s32.totalorder %s38, 0
      %p206 = por %p204, %p205
      %p207 = scmp.ne.s32.totalorder %s195, %s196
      %p208 = scmp.eq.s32.totalorder %s39, 1
      %p209 = por %p207, %p208
      %p211 = scmp.ne.s32.totalorder %s196, %s210
      %p212 = scmp.eq.s32.totalorder %s39, 0
      %p213 = por %p211, %p212
      %s215 = sadd.s32 %s214, 1
      %p218 = scmp.eq.s32.totalorder %s33, 1
      %p219 = scmp.ne.s32.totalorder %s214, %s216
      %p220 = scmp.eq.s32.totalorder %s33, 0
      %p221 = por %p219, %p220
      %p222 = scmp.ne.s32.totalorder %s214, %s216
      %p223 = scmp.eq.s32.totalorder %s38, 1
      %p224 = por %p222, %p223
      %p225 = scmp.ne.s32.totalorder %s216, %s217
      %p226 = scmp.eq.s32.totalorder %s38, 0
      %p227 = por %p225, %p226
      %p228 = scmp.ne.s32.totalorder %s216, %s217
      %p229 = scmp.eq.s32.totalorder %s39, 1
      %p230 = por %p228, %p229
      %p232 = scmp.ne.s32.totalorder %s217, %s231
      %p233 = scmp.eq.s32.totalorder %s39, 0
      %p234 = por %p232, %p233
      %s236 = sadd.s32 %s235, 1
      %p239 = scmp.eq.s32.totalorder %s33, 1
      %p240 = scmp.ne.s32.totalorder %s235, %s237
      %p241 = scmp.eq.s32.totalorder %s33, 0
      %p242 = por %p240, %p241
      %p243 = scmp.ne.s32.totalorder %s235, %s237
      %p244 = scmp.eq.s32.totalorder %s38, 1
      %p245 = por %p243, %p244
      %p246 = scmp.ne.s32.totalorder %s237, %s238
      %p247 = scmp.eq.s32.totalorder %s38, 0
      %p248 = por %p246, %p247
      %p249 = scmp.ne.s32.totalorder %s237, %s238
      %p250 = scmp.eq.s32.totalorder %s39, 1
      %p251 = por %p249, %p250
      %p253 = scmp.ne.s32.totalorder %s238, %s252
      %p254 = scmp.eq.s32.totalorder %s39, 0
      %p255 = por %p253, %p254
      %s257 = sadd.s32 %s256, 1
      %p260 = scmp.eq.s32.totalorder %s33, 1
      %p261 = scmp.ne.s32.totalorder %s256, %s258
      %p262 = scmp.eq.s32.totalorder %s33, 0
      %p263 = por %p261, %p262
      %p264 = scmp.ne.s32.totalorder %s256, %s258
      %p265 = scmp.eq.s32.totalorder %s38, 1
      %p266 = por %p264, %p265
      %p267 = scmp.ne.s32.totalorder %s258, %s259
      %p268 = scmp.eq.s32.totalorder %s38, 0
      %p269 = por %p267, %p268
      %p270 = scmp.ne.s32.totalorder %s258, %s259
      %p271 = scmp.eq.s32.totalorder %s39, 1
      %p272 = por %p270, %p271
      %p274 = scmp.ne.s32.totalorder %s259, %s273
      %p275 = scmp.eq.s32.totalorder %s39, 0
      %p276 = por %p274, %p275
      %s278 = sadd.s32 %s277, 1
      %p281 = scmp.eq.s32.totalorder %s33, 1
      %p282 = scmp.ne.s32.totalorder %s277, %s279
      %p283 = scmp.eq.s32.totalorder %s33, 0
      %p284 = por %p282, %p283
      %p285 = scmp.ne.s32.totalorder %s277, %s279
      %p286 = scmp.eq.s32.totalorder %s38, 1
      %p287 = por %p285, %p286
      %p288 = scmp.ne.s32.totalorder %s279, %s280
      %p289 = scmp.eq.s32.totalorder %s38, 0
      %p290 = por %p288, %p289
      %p291 = scmp.ne.s32.totalorder %s279, %s280
      %p292 = scmp.eq.s32.totalorder %s39, 1
      %p293 = por %p291, %p292
      %p295 = scmp.ne.s32.totalorder %s280, %s294
      %p296 = scmp.eq.s32.totalorder %s39, 0
      %p297 = por %p295, %p296
      %s299 = sadd.s32 %s298, 1
      %p302 = scmp.eq.s32.totalorder %s33, 1
      %p303 = scmp.ne.s32.totalorder %s298, %s300
      %p304 = scmp.eq.s32.totalorder %s33, 0
      %p305 = por %p303, %p304
      %p306 = scmp.ne.s32.totalorder %s298, %s300
      %p307 = scmp.eq.s32.totalorder %s38, 1
      %p308 = por %p306, %p307
      %p309 = scmp.ne.s32.totalorder %s300, %s301
      %p310 = scmp.eq.s32.totalorder %s38, 0
      %p311 = por %p309, %p310
      %p312 = scmp.ne.s32.totalorder %s300, %s301
      %p313 = scmp.eq.s32.totalorder %s39, 1
      %p314 = por %p312, %p313
      %p316 = scmp.ne.s32.totalorder %s301, %s315
      %p317 = scmp.eq.s32.totalorder %s39, 0
      %p318 = por %p316, %p317
      %s319 = ssub.s32 %s33, %s40
      %p320 = scmp.eq.s32.totalorder %s319, 0
      %s322 = sadd.s32 %s321, 1
      %s323 = scalar_select %p320, %s321, %s322
      %p326 = pneg %p320
      %p327 = scmp.eq.s32.totalorder %s33, 1
      %p328 = por %p326, %p327
      %p329 = scmp.ne.s32.totalorder %s321, %s324
      %p330 = scmp.eq.s32.totalorder %s33, 0
      %p331 = por %p329, %p330
      %p332 = scmp.ne.s32.totalorder %s321, %s324
      %p333 = scmp.eq.s32.totalorder %s38, 1
      %p334 = por %p332, %p333
      %p335 = scmp.ne.s32.totalorder %s324, %s325
      %p336 = scmp.eq.s32.totalorder %s38, 0
      %p337 = por %p335, %p336
      %p338 = scmp.ne.s32.totalorder %s324, %s325
      %p339 = scmp.eq.s32.totalorder %s39, 1
      %p340 = por %p338, %p339
      %p342 = scmp.ne.s32.totalorder %s325, %s341
      %p343 = scmp.eq.s32.totalorder %s39, 0
      %p344 = por %p342, %p343
      %s345 = ssub.s32 %s33, %s40
      %p346 = scmp.eq.s32.totalorder %s345, 0
      %s348 = sadd.s32 %s347, 1
      %s349 = scalar_select %p346, %s347, %s348
      %p352 = pneg %p346
      %p353 = scmp.eq.s32.totalorder %s33, 1
      %p354 = por %p352, %p353
      %p355 = scmp.ne.s32.totalorder %s347, %s350
      %p356 = scmp.eq.s32.totalorder %s33, 0
      %p357 = por %p355, %p356
      %p358 = scmp.ne.s32.totalorder %s347, %s350
      %p359 = scmp.eq.s32.totalorder %s38, 1
      %p360 = por %p358, %p359
      %p361 = scmp.ne.s32.totalorder %s350, %s351
      %p362 = scmp.eq.s32.totalorder %s38, 0
      %p363 = por %p361, %p362
      %p364 = scmp.ne.s32.totalorder %s350, %s351
      %p365 = scmp.eq.s32.totalorder %s39, 1
      %p366 = por %p364, %p365
      %p368 = scmp.ne.s32.totalorder %s351, %s367
      %p369 = scmp.eq.s32.totalorder %s39, 0
      %p370 = por %p368, %p369
      %p371 = scmp.le.s32.totalorder 1, %s33
      %p372 = scmp.lt.s32.totalorder %s33, 3
      %p373 = pnand %p371, %p372
      %p374 = pneg %p373
      // Predicated region
      $region9: #{tpu_custom_call.1} parent=5 // pred_check
        _
      $region10: #{tpu_custom_call.1} parent=5 // pred_check_branch
        %376 = sbr.rel (%p373) target = $region12
      $region11: #{tpu_custom_call.1} parent=5 // pred_region
        %s377 = ssub.s32 %s33, 1
        // Predicated region
        $region13: #{tpu_custom_call.1} parent=11 // pred_check
          %p378 = pneg %p80
        $region14: #{tpu_custom_call.1} parent=11 // pred_check_branch
          %380 = sbr.rel (%p378) target = $region16
        $region15: #{tpu_custom_call.1} parent=11 // pred_region
          _
        $region16: #{tpu_custom_call.1} parent=11 // pred_fallthru
          _
        // Predicated region
        $region17: #{tpu_custom_call.1} parent=11 // pred_check
          %p381 = pneg %p101
        $region18: #{tpu_custom_call.1} parent=11 // pred_check_branch
          %383 = sbr.rel (%p381) target = $region20
        $region19: #{tpu_custom_call.1} parent=11 // pred_region
          %s385 = ssub.s32 16, 16
          %386 = vsyncadd [#allocation6], %s385
          %s388 = sshll.u32 [#allocation5], 4
          %s389 = int_to_ptr.vmem [resolvable:$true] %s388
          %391 = dma.hbm_to_vmem [thread:$0]  %s2, 16, %s389, [#allocation6]
        $region20: #{tpu_custom_call.1} parent=11 // pred_fallthru
          _
        // Predicated region
        $region21: #{tpu_custom_call.1} parent=11 // pred_check
          %p392 = pneg %p122
        $region22: #{tpu_custom_call.1} parent=11 // pred_check_branch
          %394 = sbr.rel (%p392) target = $region24
        $region23: #{tpu_custom_call.1} parent=11 // pred_region
          _
        $region24: #{tpu_custom_call.1} parent=11 // pred_fallthru
          _
        // Predicated region
        $region25: #{tpu_custom_call.1} parent=11 // pred_check
          %p395 = pneg %p143
        $region26: #{tpu_custom_call.1} parent=11 // pred_check_branch
          %397 = sbr.rel (%p395) target = $region28
        $region27: #{tpu_custom_call.1} parent=11 // pred_region
          %s399 = ssub.s32 16, 16
          %400 = vsyncadd [#allocation6], %s399
          %s402 = sshll.u32 [#allocation7], 4
          %s403 = int_to_ptr.vmem [resolvable:$true] %s402
          %405 = dma.hbm_to_vmem [thread:$0]  %s4, 16, %s403, [#allocation6]
        $region28: #{tpu_custom_call.1} parent=11 // pred_fallthru
          _
        // Predicated region
        $region29: #{tpu_custom_call.1} parent=11 // pred_check
          %p406 = pneg %p164
        $region30: #{tpu_custom_call.1} parent=11 // pred_check_branch
          %408 = sbr.rel (%p406) target = $region32
        $region31: #{tpu_custom_call.1} parent=11 // pred_region
          _
        $region32: #{tpu_custom_call.1} parent=11 // pred_fallthru
          _
        // Predicated region
        $region33: #{tpu_custom_call.1} parent=11 // pred_check
          %p409 = pneg %p185
        $region34: #{tpu_custom_call.1} parent=11 // pred_check_branch
          %411 = sbr.rel (%p409) target = $region36
        $region35: #{tpu_custom_call.1} parent=11 // pred_region
          %s413 = ssub.s32 16, 16
          %414 = vsyncadd [#allocation9], %s413
          %s416 = sshll.u32 [#allocation8], 4
          %s417 = int_to_ptr.vmem [resolvable:$true] %s416
          %419 = dma.hbm_to_vmem [thread:$0]  %s6, 16, %s417, [#allocation9]
        $region36: #{tpu_custom_call.1} parent=11 // pred_fallthru
          _
        // Predicated region
        $region37: #{tpu_custom_call.1} parent=11 // pred_check
          %p420 = pneg %p206
        $region38: #{tpu_custom_call.1} parent=11 // pred_check_branch
          %422 = sbr.rel (%p420) target = $region40
        $region39: #{tpu_custom_call.1} parent=11 // pred_region
          %s424 = ssub.s32 512, 512
          %425 = vsyncadd [#allocation9], %s424
          %s426 = sshll.u32 [#allocation10], 4
          %s427 = int_to_ptr.vmem [resolvable:$true] %s426
          %432 = dma.hbm_to_vmem [thread:$0]  %s7, 512, %s427, [#allocation9], 128, 128, 8
        $region40: #{tpu_custom_call.1} parent=11 // pred_fallthru
          _
        // Predicated region
        $region41: #{tpu_custom_call.1} parent=11 // pred_check
          %p433 = pneg %p227
        $region42: #{tpu_custom_call.1} parent=11 // pred_check_branch
          %435 = sbr.rel (%p433) target = $region44
        $region43: #{tpu_custom_call.1} parent=11 // pred_region
          %s437 = ssub.s32 16, 16
          %438 = vsyncadd [#allocation12], %s437
          %s440 = sshll.u32 [#allocation11], 4
          %s441 = int_to_ptr.vmem [resolvable:$true] %s440
          %443 = dma.hbm_to_vmem [thread:$0]  %s8, 16, %s441, [#allocation12]
        $region44: #{tpu_custom_call.1} parent=11 // pred_fallthru
          _
        // Predicated region
        $region45: #{tpu_custom_call.1} parent=11 // pred_check
          %p444 = pneg %p248
        $region46: #{tpu_custom_call.1} parent=11 // pred_check_branch
          %446 = sbr.rel (%p444) target = $region48
        $region47: #{tpu_custom_call.1} parent=11 // pred_region
          _
        $region48: #{tpu_custom_call.1} parent=11 // pred_fallthru
          _
        // Predicated region
        $region49: #{tpu_custom_call.1} parent=11 // pred_check
          %p447 = pneg %p269
        $region50: #{tpu_custom_call.1} parent=11 // pred_check_branch
          %449 = sbr.rel (%p447) target = $region52
        $region51: #{tpu_custom_call.1} parent=11 // pred_region
          _
        $region52: #{tpu_custom_call.1} parent=11 // pred_fallthru
          _
        // Predicated region
        $region53: #{tpu_custom_call.1} parent=11 // pred_check
          %p450 = pneg %p290
        $region54: #{tpu_custom_call.1} parent=11 // pred_check_branch
          %452 = sbr.rel (%p450) target = $region56
        $region55: #{tpu_custom_call.1} parent=11 // pred_region
          %s454 = ssub.s32 4096, 4096
          %455 = vsyncadd [#allocation12], %s454
          %s456 = sshll.u32 [#allocation13], 4
          %s457 = int_to_ptr.vmem [resolvable:$true] %s456
          %462 = dma.hbm_to_vmem [thread:$0]  %s11, 4096, %s457, [#allocation12], 256, 256, 16
        $region56: #{tpu_custom_call.1} parent=11 // pred_fallthru
          _
        // Predicated region
        $region57: #{tpu_custom_call.1} parent=11 // pred_check
          %p463 = pneg %p311
        $region58: #{tpu_custom_call.1} parent=11 // pred_check_branch
          %465 = sbr.rel (%p463) target = $region60
        $region59: #{tpu_custom_call.1} parent=11 // pred_region
          _
        $region60: #{tpu_custom_call.1} parent=11 // pred_fallthru
          _
      $region12: #{tpu_custom_call.1} parent=5 // pred_fallthru
        _
      %p466 = scmp.lt.s32.totalorder %s33, 2
      // Predicated region
      $region61: #{tpu_custom_call.1} parent=5 // pred_check
        %p467 = pneg %p466
      $region62: #{tpu_custom_call.1} parent=5 // pred_check_branch
        %469 = sbr.rel (%p467) target = $region64
      $region63: #{tpu_custom_call.1} parent=5 // pred_region
        // Predicated region
        $region65: #{tpu_custom_call.1} parent=63 // pred_check
          %p470 = pneg %p53
        $region66: #{tpu_custom_call.1} parent=63 // pred_check_branch
          %472 = sbr.rel (%p470) target = $region68
        $region67: #{tpu_custom_call.1} parent=63 // pred_region
          %s473 = sand.u32 %s43, 1
          %s474 = scalar_lea.sflag [#allocation3], %s473
          %s475 = sand.u32 %s43, 1
          %s476 = smul.addr %s475, 16
          %s477 = scalar_lea.vmem [#allocation2], %s476
          %s479 = ssub.s32 256, 256
          %480 = vsyncadd %s474, %s479
          %s481 = smul.addr %s33, 2
          %s482 = smul.addr %s481, 128
          %s483 = scalar_lea.hbm %s0, %s482
          %s485 = sshll.u32 %s477, 4
          %s486 = int_to_ptr.vmem [resolvable:$true] %s485
          %488 = dma.hbm_to_vmem [thread:$0]  %s483, 256, %s486, %s474
        $region68: #{tpu_custom_call.1} parent=63 // pred_fallthru
          _
      $region64: #{tpu_custom_call.1} parent=5 // pred_fallthru
        _
      %p489 = scmp.le.s32.totalorder 1, %s33
      %p490 = scmp.lt.s32.totalorder %s33, 3
      %p491 = pnand %p489, %p490
      %p492 = pneg %p491
      // Predicated region
      $region69: #{tpu_custom_call.1} parent=5 // pred_check
        _
      $region70: #{tpu_custom_call.1} parent=5 // pred_check_branch
        %494 = sbr.rel (%p491) target = $region72
      $region71: #{tpu_custom_call.1} parent=5 // pred_region
        %s495 = ssub.s32 %s33, 1
        %s496 = sand.u32 %s46, 1
        %s497 = scalar_lea.sflag [#allocation3], %s496
        %s498 = sand.u32 %s46, 1
        %s499 = smul.addr %s498, 16
        %s500 = scalar_lea.vmem [#allocation2], %s499
        // Predicated region
        $region73: #{tpu_custom_call.1} parent=71 // pred_check
          %p501 = pneg %p59
        $region74: #{tpu_custom_call.1} parent=71 // pred_check_branch
          %503 = sbr.rel (%p501) target = $region76
        $region75: #{tpu_custom_call.1} parent=71 // pred_region
          %504 = dma.done %s497, 256
        $region76: #{tpu_custom_call.1} parent=71 // pred_fallthru
          _
        // Predicated region
        $region77: #{tpu_custom_call.1} parent=71 // pred_check
          %p505 = pneg %p101
        $region78: #{tpu_custom_call.1} parent=71 // pred_check_branch
          %507 = sbr.rel (%p505) target = $region80
        $region79: #{tpu_custom_call.1} parent=71 // pred_region
          %508 = dma.done [#allocation6], 16
        $region80: #{tpu_custom_call.1} parent=71 // pred_fallthru
          _
        // Predicated region
        $region81: #{tpu_custom_call.1} parent=71 // pred_check
          %p509 = pneg %p143
        $region82: #{tpu_custom_call.1} parent=71 // pred_check_branch
          %511 = sbr.rel (%p509) target = $region84
        $region83: #{tpu_custom_call.1} parent=71 // pred_region
          %512 = dma.done [#allocation6], 16
        $region84: #{tpu_custom_call.1} parent=71 // pred_fallthru
          _
        // Predicated region
        $region85: #{tpu_custom_call.1} parent=71 // pred_check
          %p513 = pneg %p185
        $region86: #{tpu_custom_call.1} parent=71 // pred_check_branch
          %515 = sbr.rel (%p513) target = $region88
        $region87: #{tpu_custom_call.1} parent=71 // pred_region
          %516 = dma.done [#allocation9], 16
        $region88: #{tpu_custom_call.1} parent=71 // pred_fallthru
          _
        // Predicated region
        $region89: #{tpu_custom_call.1} parent=71 // pred_check
          %p517 = pneg %p206
        $region90: #{tpu_custom_call.1} parent=71 // pred_check_branch
          %519 = sbr.rel (%p517) target = $region92
        $region91: #{tpu_custom_call.1} parent=71 // pred_region
          %520 = dma.done [#allocation9], 512
        $region92: #{tpu_custom_call.1} parent=71 // pred_fallthru
          _
        // Predicated region
        $region93: #{tpu_custom_call.1} parent=71 // pred_check
          %p521 = pneg %p227
        $region94: #{tpu_custom_call.1} parent=71 // pred_check_branch
          %523 = sbr.rel (%p521) target = $region96
        $region95: #{tpu_custom_call.1} parent=71 // pred_region
          %524 = dma.done [#allocation12], 16
        $region96: #{tpu_custom_call.1} parent=71 // pred_fallthru
          _
        // Predicated region
        $region97: #{tpu_custom_call.1} parent=71 // pred_check
          %p525 = pneg %p290
        $region98: #{tpu_custom_call.1} parent=71 // pred_check_branch
          %527 = sbr.rel (%p525) target = $region100
        $region99: #{tpu_custom_call.1} parent=71 // pred_region
          %528 = dma.done [#allocation12], 4096
        $region100: #{tpu_custom_call.1} parent=71 // pred_fallthru
          _
        %s529 = sand.u32 %s46, 1
        %s530 = scalar_lea.sflag [#allocation3], %s529
        %s531 = sand.u32 %s46, 1
        %s532 = smul.addr %s531, 16
        %s533 = scalar_lea.vmem [#allocation2], %s532
        %p534 = pneg %p59
        %p535 = pneg %p56
        %p536 = pneg %p80
        %p537 = pneg %p77
        %p538 = pneg %p101
        %p539 = pneg %p98
        %p540 = pneg %p122
        %p541 = pneg %p119
        %p542 = pneg %p143
        %p543 = pneg %p140
        %p544 = pneg %p164
        %p545 = pneg %p161
        %p546 = pneg %p185
        %p547 = pneg %p182
        %p548 = pneg %p206
        %p549 = pneg %p203
        %p550 = pneg %p227
        %p551 = pneg %p224
        %p552 = pneg %p248
        %p553 = pneg %p245
        %p554 = pneg %p269
        %p555 = pneg %p266
        %p556 = pneg %p290
        %p557 = pneg %p287
        %p558 = pneg %p311
        %p559 = pneg %p308
        %p560 = pneg %p337
        %p561 = pneg %p334
        %s562 = sand.u32 %s324, 1
        %s563 = scalar_lea.sflag [#allocation4], %s562
        %s564 = sand.u32 %s324, 1
        %s565 = smul.addr %s564, 16
        %s566 = scalar_lea.vmem [#allocation14], %s565
        %p567 = pneg %p363
        %p568 = pneg %p360
        %s569 = sand.u32 %s350, 1
        %s570 = scalar_lea.sflag [#allocation16], %s569
        %s571 = sand.u32 %s350, 1
        %s572 = smul.addr %s571, 8
        %s573 = scalar_lea.vmem [#allocation15], %s572
        %v574 = vld [vmem:[%s500] sm:$0xff]
        %v575 = vld [vmem:[%s500 + $0x8] sm:$0xff]
        %v576 = vld [vmem:[%s1] sm:$0xff]
        %v577 = vld [vmem:[%s1 + $0x8] sm:$0xff]
        %v578 = vld [vmem:[%s1 + $0x10] sm:$0xff]
        %v579 = vld [vmem:[%s1 + $0x18] sm:$0xff]
        %v580 = vld [vmem:[%s1 + $0x20] sm:$0xff]
        %v581 = vld [vmem:[%s1 + $0x28] sm:$0xff]
        %v582 = vld [vmem:[%s1 + $0x30] sm:$0xff]
        %v583 = vld [vmem:[%s1 + $0x38] sm:$0xff]
        %v584 = vld [vmem:[%s1 + $0x40] sm:$0xff]
        %v585 = vld [vmem:[%s1 + $0x48] sm:$0xff]
        %v586 = vld [vmem:[%s1 + $0x50] sm:$0xff]
        %v587 = vld [vmem:[%s1 + $0x58] sm:$0xff]
        %v588 = vld [vmem:[%s1 + $0x60] sm:$0xff]
        %v589 = vld [vmem:[%s1 + $0x68] sm:$0xff]
        %v590 = vld [vmem:[%s1 + $0x70] sm:$0xff]
        %v591 = vld [vmem:[%s1 + $0x78] sm:$0xff]
        %v592 = vld [vmem:[%s1 + $0x80] sm:$0xff]
        %v593 = vld [vmem:[%s1 + $0x88] sm:$0xff]
        %v594 = vld [vmem:[%s1 + $0x90] sm:$0xff]
        %v595 = vld [vmem:[%s1 + $0x98] sm:$0xff]
        %v596 = vld [vmem:[%s1 + $0xa0] sm:$0xff]
        %v597 = vld [vmem:[%s1 + $0xa8] sm:$0xff]
        %v598 = vld [vmem:[%s1 + $0xb0] sm:$0xff]
        %v599 = vld [vmem:[%s1 + $0xb8] sm:$0xff]
        %v600 = vld [vmem:[%s1 + $0xc0] sm:$0xff]
        %v601 = vld [vmem:[%s1 + $0xc8] sm:$0xff]
        %v602 = vld [vmem:[%s1 + $0xd0] sm:$0xff]
        %v603 = vld [vmem:[%s1 + $0xd8] sm:$0xff]
        %v604 = vld [vmem:[%s1 + $0xe0] sm:$0xff]
        %v605 = vld [vmem:[%s1 + $0xe8] sm:$0xff]
        %v606 = vld [vmem:[%s1 + $0xf0] sm:$0xff]
        %v607 = vld [vmem:[%s1 + $0xf8] sm:$0xff]
        %v608 = vld [vmem:[#allocation5] sm:$0x1]
        %v610 = vlaneseq
        %v611 = vshrl.u32 %v610, 7
        %v612 = vsub.s32 0, %v611
        %v613 = vrot.slane %v608, %v612
        %615 = vmatprep.subr.mxu0 0.0
        %616 = vmatpush1.msra.mxu0 %v576
        %617 = vmatprep.subr.mxu0 0.0
        %618 = vmatpush1.msra.mxu0 %v577
        %619 = vmatprep.subr.mxu0 0.0
        %620 = vmatpush1.msra.mxu0 %v578
        %621 = vmatprep.subr.mxu0 0.0
        %622 = vmatpush1.msra.mxu0 %v579
        %623 = vmatprep.subr.mxu0 0.0
        %624 = vmatpush1.msra.mxu0 %v580
        %625 = vmatprep.subr.mxu0 0.0
        %626 = vmatpush1.msra.mxu0 %v581
        %627 = vmatprep.subr.mxu0 0.0
        %628 = vmatpush1.msra.mxu0 %v582
        %629 = vmatprep.subr.mxu0 0.0
        %630 = vmatpush1.msra.mxu0 %v583
        %631 = vmatprep.subr.mxu0 0.0
        %632 = vmatpush1.msra.mxu0 %v584
        %633 = vmatprep.subr.mxu0 0.0
        %634 = vmatpush1.msra.mxu0 %v585
        %635 = vmatprep.subr.mxu0 0.0
        %636 = vmatpush1.msra.mxu0 %v586
        %637 = vmatprep.subr.mxu0 0.0
        %638 = vmatpush1.msra.mxu0 %v587
        %639 = vmatprep.subr.mxu0 0.0
        %640 = vmatpush1.msra.mxu0 %v588
        %641 = vmatprep.subr.mxu0 0.0
        %642 = vmatpush1.msra.mxu0 %v589
        %643 = vmatprep.subr.mxu0 0.0
        %644 = vmatpush1.msra.mxu0 %v590
        %645 = vmatprep.subr.mxu0 0.0
        %646 = vmatpush1.msra.mxu0 %v591
        %647 = vmatprep.subr.mxu0 0.0
        %648 = vmatpush1.msra.mxu0 %v592
        %649 = vmatprep.subr.mxu0 0.0
        %650 = vmatpush1.msra.mxu0 %v593
        %651 = vmatprep.subr.mxu0 0.0
        %652 = vmatpush1.msra.mxu0 %v594
        %653 = vmatprep.subr.mxu0 0.0
        %654 = vmatpush1.msra.mxu0 %v595
        %655 = vmatprep.subr.mxu0 0.0
        %656 = vmatpush1.msra.mxu0 %v596
        %657 = vmatprep.subr.mxu0 0.0
        %658 = vmatpush1.msra.mxu0 %v597
        %659 = vmatprep.subr.mxu0 0.0
        %660 = vmatpush1.msra.mxu0 %v598
        %661 = vmatprep.subr.mxu0 0.0
        %662 = vmatpush1.msra.mxu0 %v599
        %663 = vmatprep.subr.mxu0 0.0
        %664 = vmatpush1.msra.mxu0 %v600
        %665 = vmatprep.subr.mxu0 0.0
        %666 = vmatpush1.msra.mxu0 %v601
        %667 = vmatprep.subr.mxu0 0.0
        %668 = vmatpush1.msra.mxu0 %v602
        %669 = vmatprep.subr.mxu0 0.0
        %670 = vmatpush1.msra.mxu0 %v603
        %671 = vmatprep.subr.mxu0 0.0
        %672 = vmatpush1.msra.mxu0 %v604
        %673 = vmatprep.subr.mxu0 0.0
        %674 = vmatpush1.msra.mxu0 %v605
        %675 = vmatprep.subr.mxu0 0.0
        %676 = vmatpush1.msra.mxu0 %v606
        %677 = vmatprep.subr.mxu0 0.0
        %678 = vmatpush1.msra.mxu0 %v607
        %679 = vmatprep.mubr.f32.mxu0 %v575
        %680 = vmatmul.mubr.f32.gmra.mrb[0].mxu0 %v574
        %v681 = vpop.f32.mrb[0].mxu0
        %v682 = vadd.f32 %v613, %v681
        %v683 = vpop.f32.mrb[0].mxu0
        %684 = vdwg.mxu0
        %v685 = vmin.f32 %v682, 0.0
        %vm686 = vcmp.gt.f32.partialorder %v682, 0.0
        %v687 = vmul.f32 %v685, 1.442695
        %v688 = vpow.pop %v687
        %v689 = vsub.f32 %v688, 1.0
        %v690 = vsel %vm686, %v682, %v689
        %v691 = vld [vmem:[%s3] sm:$0xff]
        %v692 = vld [vmem:[%s3 + $0x8] sm:$0xff]
        %v693 = vld [vmem:[%s3 + $0x10] sm:$0xff]
        %v694 = vld [vmem:[%s3 + $0x18] sm:$0xff]
        %v695 = vld [vmem:[%s3 + $0x20] sm:$0xff]
        %v696 = vld [vmem:[%s3 + $0x28] sm:$0xff]
        %v697 = vld [vmem:[%s3 + $0x30] sm:$0xff]
        %v698 = vld [vmem:[%s3 + $0x38] sm:$0xff]
        %v699 = vld [vmem:[%s3 + $0x40] sm:$0xff]
        %v700 = vld [vmem:[%s3 + $0x48] sm:$0xff]
        %v701 = vld [vmem:[%s3 + $0x50] sm:$0xff]
        %v702 = vld [vmem:[%s3 + $0x58] sm:$0xff]
        %v703 = vld [vmem:[%s3 + $0x60] sm:$0xff]
        %v704 = vld [vmem:[%s3 + $0x68] sm:$0xff]
        %v705 = vld [vmem:[%s3 + $0x70] sm:$0xff]
        %v706 = vld [vmem:[%s3 + $0x78] sm:$0xff]
        %v707 = vld [vmem:[#allocation7] sm:$0x1]
        %v709 = vlaneseq
        %v710 = vshrl.u32 %v709, 7
        %v711 = vsub.s32 0, %v710
        %v712 = vrot.slane %v707, %v711
        %714 = vmatprep.subr.mxu0 0.0
        %715 = vmatpush1.msra.mxu0 %v691
        %716 = vmatprep.subr.mxu0 0.0
        %717 = vmatpush1.msra.mxu0 %v692
        %718 = vmatprep.subr.mxu0 0.0
        %719 = vmatpush1.msra.mxu0 %v693
        %720 = vmatprep.subr.mxu0 0.0
        %721 = vmatpush1.msra.mxu0 %v694
        %722 = vmatprep.subr.mxu0 0.0
        %723 = vmatpush1.msra.mxu0 %v695
        %724 = vmatprep.subr.mxu0 0.0
        %725 = vmatpush1.msra.mxu0 %v696
        %726 = vmatprep.subr.mxu0 0.0
        %727 = vmatpush1.msra.mxu0 %v697
        %728 = vmatprep.subr.mxu0 0.0
        %729 = vmatpush1.msra.mxu0 %v698
        %730 = vmatprep.subr.mxu0 0.0
        %731 = vmatpush1.msra.mxu0 %v699
        %732 = vmatprep.subr.mxu0 0.0
        %733 = vmatpush1.msra.mxu0 %v700
        %734 = vmatprep.subr.mxu0 0.0
        %735 = vmatpush1.msra.mxu0 %v701
        %736 = vmatprep.subr.mxu0 0.0
        %737 = vmatpush1.msra.mxu0 %v702
        %738 = vmatprep.subr.mxu0 0.0
        %739 = vmatpush1.msra.mxu0 %v703
        %740 = vmatprep.subr.mxu0 0.0
        %741 = vmatpush1.msra.mxu0 %v704
        %742 = vmatprep.subr.mxu0 0.0
        %743 = vmatpush1.msra.mxu0 %v705
        %744 = vmatprep.subr.mxu0 0.0
        %745 = vmatpush1.msra.mxu0 %v706
        %746 = vmatprep.subr.mxu0 0.0
        %747 = vmatpush1.msra.mxu0 0.0
        %748 = vmatprep.subr.mxu0 0.0
        %749 = vmatpush1.msra.mxu0 0.0
        %750 = vmatprep.subr.mxu0 0.0
        %751 = vmatpush1.msra.mxu0 0.0
        %752 = vmatprep.subr.mxu0 0.0
        %753 = vmatpush1.msra.mxu0 0.0
        %754 = vmatprep.subr.mxu0 0.0
        %755 = vmatpush1.msra.mxu0 0.0
        %756 = vmatprep.subr.mxu0 0.0
        %757 = vmatpush1.msra.mxu0 0.0
        %758 = vmatprep.subr.mxu0 0.0
        %759 = vmatpush1.msra.mxu0 0.0
        %760 = vmatprep.subr.mxu0 0.0
        %761 = vmatpush1.msra.mxu0 0.0
        %762 = vmatprep.subr.mxu0 0.0
        %763 = vmatpush1.msra.mxu0 0.0
        %764 = vmatprep.subr.mxu0 0.0
        %765 = vmatpush1.msra.mxu0 0.0
        %766 = vmatprep.subr.mxu0 0.0
        %767 = vmatpush1.msra.mxu0 0.0
        %768 = vmatprep.subr.mxu0 0.0
        %769 = vmatpush1.msra.mxu0 0.0
        %770 = vmatprep.subr.mxu0 0.0
        %771 = vmatpush1.msra.mxu0 0.0
        %772 = vmatprep.subr.mxu0 0.0
        %773 = vmatpush1.msra.mxu0 0.0
        %774 = vmatprep.subr.mxu0 0.0
        %775 = vmatpush1.msra.mxu0 0.0
        %776 = vmatprep.subr.mxu0 0.0
        %777 = vmatpush1.msra.mxu0 0.0
        %778 = vmatprep.mubr.f32.mxu0 0.0
        %779 = vmatmul.mubr.f32.gmra.mrb[0].mxu0 %v690
        %v780 = vpop.f32.mrb[0].mxu0
        %v781 = vadd.f32 %v712, %v780
        %v782 = vpop.f32.mrb[0].mxu0
        %783 = vdwg.mxu0
        %v784 = vmin.f32 %v781, 0.0
        %vm785 = vcmp.gt.f32.partialorder %v781, 0.0
        %v786 = vmul.f32 %v784, 1.442695
        %v787 = vpow.pop %v786
        %v788 = vsub.f32 %v787, 1.0
        %v789 = vsel %vm785, %v781, %v788
        %v790 = vld [vmem:[%s5] sm:$0xff]
        %v791 = vld [vmem:[%s5 + $0x8] sm:$0xff]
        %v792 = vld [vmem:[%s5 + $0x10] sm:$0xff]
        %v793 = vld [vmem:[%s5 + $0x18] sm:$0xff]
        %v794 = vld [vmem:[%s5 + $0x20] sm:$0xff]
        %v795 = vld [vmem:[%s5 + $0x28] sm:$0xff]
        %v796 = vld [vmem:[%s5 + $0x30] sm:$0xff]
        %v797 = vld [vmem:[%s5 + $0x38] sm:$0xff]
        %v798 = vld [vmem:[#allocation8] sm:$0x1]
        %v800 = vlaneseq
        %v801 = vshrl.u32 %v800, 7
        %v802 = vsub.s32 0, %v801
        %v803 = vrot.slane %v798, %v802
        %vm805 = vcmask 523264
        %v807 = vsel %vm805, %v789, 0
        %809 = vmatprep.subr.mxu0 0.0
        %810 = vmatpush1.msra.mxu0 %v790
        %811 = vmatprep.subr.mxu0 0.0
        %812 = vmatpush1.msra.mxu0 %v791
        %813 = vmatprep.subr.mxu0 0.0
        %814 = vmatpush1.msra.mxu0 %v792
        %815 = vmatprep.subr.mxu0 0.0
        %816 = vmatpush1.msra.mxu0 %v793
        %817 = vmatprep.subr.mxu0 0.0
        %818 = vmatpush1.msra.mxu0 %v794
        %819 = vmatprep.subr.mxu0 0.0
        %820 = vmatpush1.msra.mxu0 %v795
        %821 = vmatprep.subr.mxu0 0.0
        %822 = vmatpush1.msra.mxu0 %v796
        %823 = vmatprep.subr.mxu0 0.0
        %824 = vmatpush1.msra.mxu0 %v797
        %825 = vmatprep.subr.mxu0 0.0
        %826 = vmatpush1.msra.mxu0 0.0
        %827 = vmatprep.subr.mxu0 0.0
        %828 = vmatpush1.msra.mxu0 0.0
        %829 = vmatprep.subr.mxu0 0.0
        %830 = vmatpush1.msra.mxu0 0.0
        %831 = vmatprep.subr.mxu0 0.0
        %832 = vmatpush1.msra.mxu0 0.0
        %833 = vmatprep.subr.mxu0 0.0
        %834 = vmatpush1.msra.mxu0 0.0
        %835 = vmatprep.subr.mxu0 0.0
        %836 = vmatpush1.msra.mxu0 0.0
        %837 = vmatprep.subr.mxu0 0.0
        %838 = vmatpush1.msra.mxu0 0.0
        %839 = vmatprep.subr.mxu0 0.0
        %840 = vmatpush1.msra.mxu0 0.0
        %841 = vmatprep.subr.mxu0 0.0
        %842 = vmatpush1.msra.mxu0 0.0
        %843 = vmatprep.subr.mxu0 0.0
        %844 = vmatpush1.msra.mxu0 0.0
        %845 = vmatprep.subr.mxu0 0.0
        %846 = vmatpush1.msra.mxu0 0.0
        %847 = vmatprep.subr.mxu0 0.0
        %848 = vmatpush1.msra.mxu0 0.0
        %849 = vmatprep.subr.mxu0 0.0
        %850 = vmatpush1.msra.mxu0 0.0
        %851 = vmatprep.subr.mxu0 0.0
        %852 = vmatpush1.msra.mxu0 0.0
        %853 = vmatprep.subr.mxu0 0.0
        %854 = vmatpush1.msra.mxu0 0.0
        %855 = vmatprep.subr.mxu0 0.0
        %856 = vmatpush1.msra.mxu0 0.0
        %857 = vmatprep.subr.mxu0 0.0
        %858 = vmatpush1.msra.mxu0 0.0
        %859 = vmatprep.subr.mxu0 0.0
        %860 = vmatpush1.msra.mxu0 0.0
        %861 = vmatprep.subr.mxu0 0.0
        %862 = vmatpush1.msra.mxu0 0.0
        %863 = vmatprep.subr.mxu0 0.0
        %864 = vmatpush1.msra.mxu0 0.0
        %865 = vmatprep.subr.mxu0 0.0
        %866 = vmatpush1.msra.mxu0 0.0
        %867 = vmatprep.subr.mxu0 0.0
        %868 = vmatpush1.msra.mxu0 0.0
        %869 = vmatprep.subr.mxu0 0.0
        %870 = vmatpush1.msra.mxu0 0.0
        %871 = vmatprep.subr.mxu0 0.0
        %872 = vmatpush1.msra.mxu0 0.0
        %873 = vmatprep.mubr.f32.mxu0 0.0
        %874 = vmatmul.mubr.f32.gmra.mrb[0].mxu0 %v807
        %v875 = vpop.f32.mrb[0].mxu0
        %v876 = vadd.f32 %v803, %v875
        %v877 = vpop.f32.mrb[0].mxu0
        %878 = vdwg.mxu0
        %v879 = vld [vmem:[#allocation10] sm:$0xff]
        %v880 = vld [vmem:[#allocation10 + $0x8] sm:$0xff]
        %v881 = vld [vmem:[#allocation10 + $0x10] sm:$0xff]
        %v882 = vld [vmem:[#allocation10 + $0x18] sm:$0xff]
        %v883 = vld [vmem:[#allocation11] sm:$0x1]
        %v885 = vlaneseq
        %v886 = vshrl.u32 %v885, 7
        %v887 = vsub.s32 0, %v886
        %v888 = vrot.slane %v883, %v887
        %vm890 = vcmask 261120
        %v892 = vsel %vm890, %v876, 0
        %894 = vmatprep.subr.mxu0 0.0
        %895 = vmatpush1.msra.mxu0 %v879
        %896 = vmatprep.subr.mxu0 0.0
        %897 = vmatpush1.msra.mxu0 %v880
        %898 = vmatprep.subr.mxu0 0.0
        %899 = vmatpush1.msra.mxu0 %v881
        %900 = vmatprep.subr.mxu0 0.0
        %901 = vmatpush1.msra.mxu0 %v882
        %902 = vmatprep.subr.mxu0 0.0
        %903 = vmatpush1.msra.mxu0 0.0
        %904 = vmatprep.subr.mxu0 0.0
        %905 = vmatpush1.msra.mxu0 0.0
        %906 = vmatprep.subr.mxu0 0.0
        %907 = vmatpush1.msra.mxu0 0.0
        %908 = vmatprep.subr.mxu0 0.0
        %909 = vmatpush1.msra.mxu0 0.0
        %910 = vmatprep.subr.mxu0 0.0
        %911 = vmatpush1.msra.mxu0 0.0
        %912 = vmatprep.subr.mxu0 0.0
        %913 = vmatpush1.msra.mxu0 0.0
        %914 = vmatprep.subr.mxu0 0.0
        %915 = vmatpush1.msra.mxu0 0.0
        %916 = vmatprep.subr.mxu0 0.0
        %917 = vmatpush1.msra.mxu0 0.0
        %918 = vmatprep.subr.mxu0 0.0
        %919 = vmatpush1.msra.mxu0 0.0
        %920 = vmatprep.subr.mxu0 0.0
        %921 = vmatpush1.msra.mxu0 0.0
        %922 = vmatprep.subr.mxu0 0.0
        %923 = vmatpush1.msra.mxu0 0.0
        %924 = vmatprep.subr.mxu0 0.0
        %925 = vmatpush1.msra.mxu0 0.0
        %926 = vmatprep.subr.mxu0 0.0
        %927 = vmatpush1.msra.mxu0 0.0
        %928 = vmatprep.subr.mxu0 0.0
        %929 = vmatpush1.msra.mxu0 0.0
        %930 = vmatprep.subr.mxu0 0.0
        %931 = vmatpush1.msra.mxu0 0.0
        %932 = vmatprep.subr.mxu0 0.0
        %933 = vmatpush1.msra.mxu0 0.0
        %934 = vmatprep.subr.mxu0 0.0
        %935 = vmatpush1.msra.mxu0 0.0
        %936 = vmatprep.subr.mxu0 0.0
        %937 = vmatpush1.msra.mxu0 0.0
        %938 = vmatprep.subr.mxu0 0.0
        %939 = vmatpush1.msra.mxu0 0.0
        %940 = vmatprep.subr.mxu0 0.0
        %941 = vmatpush1.msra.mxu0 0.0
        %942 = vmatprep.subr.mxu0 0.0
        %943 = vmatpush1.msra.mxu0 0.0
        %944 = vmatprep.subr.mxu0 0.0
        %945 = vmatpush1.msra.mxu0 0.0
        %946 = vmatprep.subr.mxu0 0.0
        %947 = vmatpush1.msra.mxu0 0.0
        %948 = vmatprep.subr.mxu0 0.0
        %949 = vmatpush1.msra.mxu0 0.0
        %950 = vmatprep.subr.mxu0 0.0
        %951 = vmatpush1.msra.mxu0 0.0
        %952 = vmatprep.subr.mxu0 0.0
        %953 = vmatpush1.msra.mxu0 0.0
        %954 = vmatprep.subr.mxu0 0.0
        %955 = vmatpush1.msra.mxu0 0.0
        %956 = vmatprep.subr.mxu0 0.0
        %957 = vmatpush1.msra.mxu0 0.0
        %958 = vmatprep.mubr.f32.mxu0 0.0
        %959 = vmatmul.mubr.f32.gmra.mrb[0].mxu0 %v892
        %v960 = vpop.f32.mrb[0].mxu0
        %v961 = vadd.f32 %v888, %v960
        %v962 = vpop.f32.mrb[0].mxu0
        %963 = vdwg.mxu0
        %v964 = vmin.f32 %v961, 0.0
        %vm965 = vcmp.gt.f32.partialorder %v961, 0.0
        %v966 = vmul.f32 %v964, 1.442695
        %v967 = vpow.pop %v966
        %v968 = vsub.f32 %v967, 1.0
        %v969 = vsel %vm965, %v961, %v968
        %v970 = vld [vmem:[%s9] sm:$0xff]
        %v971 = vld [vmem:[%s9 + $0x8] sm:$0xff]
        %v972 = vld [vmem:[%s9 + $0x10] sm:$0xff]
        %v973 = vld [vmem:[%s9 + $0x18] sm:$0xff]
        %v974 = vld [vmem:[%s9 + $0x20] sm:$0xff]
        %v975 = vld [vmem:[%s9 + $0x28] sm:$0xff]
        %v976 = vld [vmem:[%s9 + $0x30] sm:$0xff]
        %v977 = vld [vmem:[%s9 + $0x38] sm:$0xff]
        %v978 = vld [vmem:[%s10] sm:$0x1]
        %v980 = vlaneseq
        %v981 = vshrl.u32 %v980, 7
        %v982 = vsub.s32 0, %v981
        %v983 = vrot.slane %v978, %v982
        %v986 = vsel %vm805, %v969, 0
        %988 = vmatprep.subr.mxu0 0.0
        %989 = vmatpush1.msra.mxu0 %v970
        %990 = vmatprep.subr.mxu0 0.0
        %991 = vmatpush1.msra.mxu0 %v971
        %992 = vmatprep.subr.mxu0 0.0
        %993 = vmatpush1.msra.mxu0 %v972
        %994 = vmatprep.subr.mxu0 0.0
        %995 = vmatpush1.msra.mxu0 %v973
        %996 = vmatprep.subr.mxu0 0.0
        %997 = vmatpush1.msra.mxu0 %v974
        %998 = vmatprep.subr.mxu0 0.0
        %999 = vmatpush1.msra.mxu0 %v975
        %1000 = vmatprep.subr.mxu0 0.0
        %1001 = vmatpush1.msra.mxu0 %v976
        %1002 = vmatprep.subr.mxu0 0.0
        %1003 = vmatpush1.msra.mxu0 %v977
        %1004 = vmatprep.subr.mxu0 0.0
        %1005 = vmatpush1.msra.mxu0 0.0
        %1006 = vmatprep.subr.mxu0 0.0
        %1007 = vmatpush1.msra.mxu0 0.0
        %1008 = vmatprep.subr.mxu0 0.0
        %1009 = vmatpush1.msra.mxu0 0.0
        %1010 = vmatprep.subr.mxu0 0.0
        %1011 = vmatpush1.msra.mxu0 0.0
        %1012 = vmatprep.subr.mxu0 0.0
        %1013 = vmatpush1.msra.mxu0 0.0
        %1014 = vmatprep.subr.mxu0 0.0
        %1015 = vmatpush1.msra.mxu0 0.0
        %1016 = vmatprep.subr.mxu0 0.0
        %1017 = vmatpush1.msra.mxu0 0.0
        %1018 = vmatprep.subr.mxu0 0.0
        %1019 = vmatpush1.msra.mxu0 0.0
        %1020 = vmatprep.subr.mxu0 0.0
        %1021 = vmatpush1.msra.mxu0 0.0
        %1022 = vmatprep.subr.mxu0 0.0
        %1023 = vmatpush1.msra.mxu0 0.0
        %1024 = vmatprep.subr.mxu0 0.0
        %1025 = vmatpush1.msra.mxu0 0.0
        %1026 = vmatprep.subr.mxu0 0.0
        %1027 = vmatpush1.msra.mxu0 0.0
        %1028 = vmatprep.subr.mxu0 0.0
        %1029 = vmatpush1.msra.mxu0 0.0
        %1030 = vmatprep.subr.mxu0 0.0
        %1031 = vmatpush1.msra.mxu0 0.0
        %1032 = vmatprep.subr.mxu0 0.0
        %1033 = vmatpush1.msra.mxu0 0.0
        %1034 = vmatprep.subr.mxu0 0.0
        %1035 = vmatpush1.msra.mxu0 0.0
        %1036 = vmatprep.subr.mxu0 0.0
        %1037 = vmatpush1.msra.mxu0 0.0
        %1038 = vmatprep.subr.mxu0 0.0
        %1039 = vmatpush1.msra.mxu0 0.0
        %1040 = vmatprep.subr.mxu0 0.0
        %1041 = vmatpush1.msra.mxu0 0.0
        %1042 = vmatprep.subr.mxu0 0.0
        %1043 = vmatpush1.msra.mxu0 0.0
        %1044 = vmatprep.subr.mxu0 0.0
        %1045 = vmatpush1.msra.mxu0 0.0
        %1046 = vmatprep.subr.mxu0 0.0
        %1047 = vmatpush1.msra.mxu0 0.0
        %1048 = vmatprep.subr.mxu0 0.0
        %1049 = vmatpush1.msra.mxu0 0.0
        %1050 = vmatprep.subr.mxu0 0.0
        %1051 = vmatpush1.msra.mxu0 0.0
        %1052 = vmatprep.mubr.f32.mxu0 0.0
        %1053 = vmatmul.mubr.f32.gmra.mrb[0].mxu0 %v986
        %v1054 = vpop.f32.mrb[0].mxu0
        %v1055 = vadd.f32 %v983, %v1054
        %v1056 = vpop.f32.mrb[0].mxu0
        %1057 = vdwg.mxu0
        %v1058 = vmin.f32 %v1055, 0.0
        %vm1059 = vcmp.gt.f32.partialorder %v1055, 0.0
        %v1060 = vmul.f32 %v1058, 1.442695
        %v1061 = vpow.pop %v1060
        %v1062 = vsub.f32 %v1061, 1.0
        %v1063 = vsel %vm1059, %v1055, %v1062
        %v1064 = vld [vmem:[#allocation13] sm:$0xff]
        %v1065 = vld [vmem:[#allocation13 + $0x8] sm:$0xff]
        %v1066 = vld [vmem:[#allocation13 + $0x10] sm:$0xff]
        %v1067 = vld [vmem:[#allocation13 + $0x18] sm:$0xff]
        %v1068 = vld [vmem:[#allocation13 + $0x20] sm:$0xff]
        %v1069 = vld [vmem:[#allocation13 + $0x28] sm:$0xff]
        %v1070 = vld [vmem:[#allocation13 + $0x30] sm:$0xff]
        %v1071 = vld [vmem:[#allocation13 + $0x38] sm:$0xff]
        %v1072 = vld [vmem:[#allocation13 + $0x40] sm:$0xff]
        %v1073 = vld [vmem:[#allocation13 + $0x48] sm:$0xff]
        %v1074 = vld [vmem:[#allocation13 + $0x50] sm:$0xff]
        %v1075 = vld [vmem:[#allocation13 + $0x58] sm:$0xff]
        %v1076 = vld [vmem:[#allocation13 + $0x60] sm:$0xff]
        %v1077 = vld [vmem:[#allocation13 + $0x68] sm:$0xff]
        %v1078 = vld [vmem:[#allocation13 + $0x70] sm:$0xff]
        %v1079 = vld [vmem:[#allocation13 + $0x78] sm:$0xff]
        %v1080 = vld [vmem:[#allocation13 + $0x80] sm:$0xff]
        %v1081 = vld [vmem:[#allocation13 + $0x88] sm:$0xff]
        %v1082 = vld [vmem:[#allocation13 + $0x90] sm:$0xff]
        %v1083 = vld [vmem:[#allocation13 + $0x98] sm:$0xff]
        %v1084 = vld [vmem:[#allocation13 + $0xa0] sm:$0xff]
        %v1085 = vld [vmem:[#allocation13 + $0xa8] sm:$0xff]
        %v1086 = vld [vmem:[#allocation13 + $0xb0] sm:$0xff]
        %v1087 = vld [vmem:[#allocation13 + $0xb8] sm:$0xff]
        %v1088 = vld [vmem:[#allocation13 + $0xc0] sm:$0xff]
        %v1089 = vld [vmem:[#allocation13 + $0xc8] sm:$0xff]
        %v1090 = vld [vmem:[#allocation13 + $0xd0] sm:$0xff]
        %v1091 = vld [vmem:[#allocation13 + $0xd8] sm:$0xff]
        %v1092 = vld [vmem:[#allocation13 + $0xe0] sm:$0xff]
        %v1093 = vld [vmem:[#allocation13 + $0xe8] sm:$0xff]
        %v1094 = vld [vmem:[#allocation13 + $0xf0] sm:$0xff]
        %v1095 = vld [vmem:[#allocation13 + $0xf8] sm:$0xff]
        %v1096 = vld [vmem:[%s12] sm:$0x3]
        %v1098 = vlaneseq
        %v1099 = vshrl.u32 %v1098, 7
        %v1100 = vsub.s32 0, %v1099
        %v1101 = vrot.slane %v1096, %v1100
        %v1102 = vlaneseq
        %v1103 = vshrl.u32 %v1102, 7
        %v1104 = vsub.s32 1, %v1103
        %v1105 = vrot.slane %v1096, %v1104
        %1108 = vmatprep.subr.mxu0 %v1065
        %1109 = vmatpush1.msra.mxu0 %v1064
        %1110 = vmatprep.subr.mxu0 %v1067
        %1111 = vmatpush1.msra.mxu0 %v1066
        %1112 = vmatprep.subr.mxu0 %v1069
        %1113 = vmatpush1.msra.mxu0 %v1068
        %1114 = vmatprep.subr.mxu0 %v1071
        %1115 = vmatpush1.msra.mxu0 %v1070
        %1116 = vmatprep.subr.mxu0 %v1073
        %1117 = vmatpush1.msra.mxu0 %v1072
        %1118 = vmatprep.subr.mxu0 %v1075
        %1119 = vmatpush1.msra.mxu0 %v1074
        %1120 = vmatprep.subr.mxu0 %v1077
        %1121 = vmatpush1.msra.mxu0 %v1076
        %1122 = vmatprep.subr.mxu0 %v1079
        %1123 = vmatpush1.msra.mxu0 %v1078
        %1124 = vmatprep.subr.mxu0 %v1081
        %1125 = vmatpush1.msra.mxu0 %v1080
        %1126 = vmatprep.subr.mxu0 %v1083
        %1127 = vmatpush1.msra.mxu0 %v1082
        %1128 = vmatprep.subr.mxu0 %v1085
        %1129 = vmatpush1.msra.mxu0 %v1084
        %1130 = vmatprep.subr.mxu0 %v1087
        %1131 = vmatpush1.msra.mxu0 %v1086
        %1132 = vmatprep.subr.mxu0 %v1089
        %1133 = vmatpush1.msra.mxu0 %v1088
        %1134 = vmatprep.subr.mxu0 %v1091
        %1135 = vmatpush1.msra.mxu0 %v1090
        %1136 = vmatprep.subr.mxu0 %v1093
        %1137 = vmatpush1.msra.mxu0 %v1092
        %1138 = vmatprep.subr.mxu0 %v1095
        %1139 = vmatpush1.msra.mxu0 %v1094
        %1140 = vmatprep.subr.mxu0 0.0
        %1141 = vmatpush1.msra.mxu0 0.0
        %1142 = vmatprep.subr.mxu0 0.0
        %1143 = vmatpush1.msra.mxu0 0.0
        %1144 = vmatprep.subr.mxu0 0.0
        %1145 = vmatpush1.msra.mxu0 0.0
        %1146 = vmatprep.subr.mxu0 0.0
        %1147 = vmatpush1.msra.mxu0 0.0
        %1148 = vmatprep.subr.mxu0 0.0
        %1149 = vmatpush1.msra.mxu0 0.0
        %1150 = vmatprep.subr.mxu0 0.0
        %1151 = vmatpush1.msra.mxu0 0.0
        %1152 = vmatprep.subr.mxu0 0.0
        %1153 = vmatpush1.msra.mxu0 0.0
        %1154 = vmatprep.subr.mxu0 0.0
        %1155 = vmatpush1.msra.mxu0 0.0
        %1156 = vmatprep.subr.mxu0 0.0
        %1157 = vmatpush1.msra.mxu0 0.0
        %1158 = vmatprep.subr.mxu0 0.0
        %1159 = vmatpush1.msra.mxu0 0.0
        %1160 = vmatprep.subr.mxu0 0.0
        %1161 = vmatpush1.msra.mxu0 0.0
        %1162 = vmatprep.subr.mxu0 0.0
        %1163 = vmatpush1.msra.mxu0 0.0
        %1164 = vmatprep.subr.mxu0 0.0
        %1165 = vmatpush1.msra.mxu0 0.0
        %1166 = vmatprep.subr.mxu0 0.0
        %1167 = vmatpush1.msra.mxu0 0.0
        %1168 = vmatprep.subr.mxu0 0.0
        %1169 = vmatpush1.msra.mxu0 0.0
        %1170 = vmatprep.subr.mxu0 0.0
        %1171 = vmatpush1.msra.mxu0 0.0
        %1172 = vmatprep.mubr.f32.mxu0 0.0
        %1173 = vmatmul.mubr.f32.gmra.mrb[0].mxu0 %v1063
        %v1174 = vpop.f32.mrb[0].mxu0
        %v1175 = vadd.f32 %v1101, %v1174
        %v1176 = vpop.f32.mrb[0].mxu0
        %v1177 = vadd.f32 %v1105, %v1176
        %1178 = vdwg.mxu0
        %v1179 = vmul.f32 %v1175, 0.5
        %v1180 = vmul.f32 %v1177, 0.5
        %v1181 = vtanh.pop %v1179
        %v1182 = vtanh.pop %v1180
        %v1183 = vadd.f32 %v1181, 1.0
        %v1184 = vadd.f32 %v1182, 1.0
        %v1185 = vmul.f32 %v1183, 0.5
        %v1186 = vmul.f32 %v1184, 0.5
        %1187 = vst [vmem:[%s566] sm:$0xff] %v1185
        %1188 = vst [vmem:[%s566 + $0x8] sm:$0xff] %v1186
        %1189 = vst.msk [vmem:[%s573] sm:$0xff] %vm890, %v876
        %s1190 = sand.u32 %s324, 1
        %s1191 = scalar_lea.sflag [#allocation4], %s1190
        %s1192 = sand.u32 %s324, 1
        %s1193 = smul.addr %s1192, 16
        %s1194 = scalar_lea.vmem [#allocation14], %s1193
        %s1195 = sand.u32 %s350, 1
        %s1196 = scalar_lea.sflag [#allocation16], %s1195
        %s1197 = sand.u32 %s350, 1
        %s1198 = smul.addr %s1197, 8
        %s1199 = scalar_lea.vmem [#allocation15], %s1198
        // Predicated region
        $region101: #{tpu_custom_call.1} parent=71 // pred_check
          %p1200 = pneg %p334
        $region102: #{tpu_custom_call.1} parent=71 // pred_check_branch
          %1202 = sbr.rel (%p1200) target = $region104
        $region103: #{tpu_custom_call.1} parent=71 // pred_region
          %s1204 = ssub.s32 256, 256
          %1205 = vsyncadd %s1191, %s1204
          %s1206 = smul.addr %s38, 2
          %s1207 = smul.addr %s1206, 128
          %s1208 = scalar_lea.hbm %s13, %s1207
          %s1210 = sshll.u32 %s1194, 4
          %s1211 = int_to_ptr.vmem [resolvable:$true] %s1210
          %1213 = dma.vmem_to_hbm [thread:$0]  %s1211, 256, %s1208, %s1191
        $region104: #{tpu_custom_call.1} parent=71 // pred_fallthru
          _
        // Predicated region
        $region105: #{tpu_custom_call.1} parent=71 // pred_check
          %p1214 = pneg %p360
        $region106: #{tpu_custom_call.1} parent=71 // pred_check_branch
          %1216 = sbr.rel (%p1214) target = $region108
        $region107: #{tpu_custom_call.1} parent=71 // pred_region
          %s1218 = ssub.s32 128, 128
          %1219 = vsyncadd %s1196, %s1218
          %s1220 = smul.addr %s38, 128
          %s1221 = scalar_lea.hbm %s14, %s1220
          %s1223 = sshll.u32 %s1199, 4
          %s1224 = int_to_ptr.vmem [resolvable:$true] %s1223
          %1226 = dma.vmem_to_hbm [thread:$0]  %s1224, 128, %s1221, %s1196
        $region108: #{tpu_custom_call.1} parent=71 // pred_fallthru
          _
      $region72: #{tpu_custom_call.1} parent=5 // pred_fallthru
        _
      %p1227 = scmp.le.s32.totalorder 2, %s33
      // Predicated region
      $region109: #{tpu_custom_call.1} parent=5 // pred_check
        %p1228 = pneg %p1227
      $region110: #{tpu_custom_call.1} parent=5 // pred_check_branch
        %1230 = sbr.rel (%p1228) target = $region112
      $region111: #{tpu_custom_call.1} parent=5 // pred_region
        %s1231 = ssub.s32 %s33, 2
        // Predicated region
        $region113: #{tpu_custom_call.1} parent=111 // pred_check
          %p1232 = pneg %p340
        $region114: #{tpu_custom_call.1} parent=111 // pred_check_branch
          %1234 = sbr.rel (%p1232) target = $region116
        $region115: #{tpu_custom_call.1} parent=111 // pred_region
          %s1235 = sand.u32 %s325, 1
          %s1236 = scalar_lea.sflag [#allocation4], %s1235
          %s1237 = sand.u32 %s325, 1
          %s1238 = smul.addr %s1237, 16
          %s1239 = scalar_lea.vmem [#allocation14], %s1238
          %1240 = dma.done %s1236, 256
        $region116: #{tpu_custom_call.1} parent=111 // pred_fallthru
          _
        // Predicated region
        $region117: #{tpu_custom_call.1} parent=111 // pred_check
          %p1241 = pneg %p366
        $region118: #{tpu_custom_call.1} parent=111 // pred_check_branch
          %1243 = sbr.rel (%p1241) target = $region120
        $region119: #{tpu_custom_call.1} parent=111 // pred_region
          %s1244 = sand.u32 %s351, 1
          %s1245 = scalar_lea.sflag [#allocation16], %s1244
          %s1246 = sand.u32 %s351, 1
          %s1247 = smul.addr %s1246, 8
          %s1248 = scalar_lea.vmem [#allocation15], %s1247
          %1249 = dma.done %s1245, 128
        $region120: #{tpu_custom_call.1} parent=111 // pred_fallthru
          _
      $region112: #{tpu_custom_call.1} parent=5 // pred_fallthru
        _
    $region6: #{tpu_custom_call.1} parent=1 // loop_footer
      %s37 = sadd.s32 1, %s33
    $region7: #{tpu_custom_call.1} parent=1 // loop_footer_branch
      %32 = sbr.rel target = $region3
    $region8: #{tpu_custom_call.1} parent=1 // loop_exit
      _
    %1250 = vsyncpa [#allocation3], 1
    %s1251 = scalar_lea.sflag [#allocation3], 1
    %1252 = vsyncpa %s1251, 1
    %1253 = vsyncpa [#allocation6], 1
    %1254 = vsyncpa [#allocation9], 1
    %1255 = vsyncpa [#allocation12], 1
    %1256 = vsyncpa [#allocation4], 1
    %s1257 = scalar_lea.sflag [#allocation4], 1
    %1258 = vsyncpa %s1257, 1
    %1259 = vsyncpa [#allocation16], 1
    %s1260 = scalar_lea.sflag [#allocation16], 1
    %1261 = vsyncpa %s1260, 1

// kernel: tpu_custom_call.1
$region0: #{tpu_custom_call.1}
  #allocation0 [shape = 'u32[]', space=smem, size = 0x4, offset = 0x4, fixed_abs, tag = 'smem constant byte address 0x4 - core index']
  #allocation1 [shape = 'u32[144,128]{1,0:T(1,128)}', space=vmem, size = 0x12000, scoped, tag = 'internal scratch']
  %s0 = inlined_call_operand.hbm [shape: f32[16,256], index: 0, kind: input, shape index: {}]
  %s1 = inlined_call_operand.vmem [shape: f32[256,128], index: 1, kind: input, shape index: {}]
  %s2 = inlined_call_operand.hbm [shape: f32[1,128], index: 2, kind: input, shape index: {}]
  %s3 = inlined_call_operand.vmem [shape: f32[128,64], index: 3, kind: input, shape index: {}]
  %s4 = inlined_call_operand.hbm [shape: f32[1,64], index: 4, kind: input, shape index: {}]
  %s5 = inlined_call_operand.vmem [shape: f32[64,32], index: 5, kind: input, shape index: {}]
  %s6 = inlined_call_operand.hbm [shape: f32[1,32], index: 6, kind: input, shape index: {}]
  %s7 = inlined_call_operand.hbm [shape: f32[32,64], index: 7, kind: input, shape index: {}]
  %s8 = inlined_call_operand.hbm [shape: f32[1,64], index: 8, kind: input, shape index: {}]
  %s9 = inlined_call_operand.vmem [shape: f32[64,128], index: 9, kind: input, shape index: {}]
  %s10 = inlined_call_operand.vmem [shape: f32[1,128], index: 10, kind: input, shape index: {}]
  %s11 = inlined_call_operand.hbm [shape: f32[128,256], index: 11, kind: input, shape index: {}]
  %s12 = inlined_call_operand.vmem [shape: f32[1,256], index: 12, kind: input, shape index: {}]
  %s13 = inlined_call_operand.hbm [shape: f32[16,256], index: 13, kind: output, shape index: {0}]
  %s14 = inlined_call_operand.hbm [shape: f32[16,32], index: 14, kind: output, shape index: {1}]
  %15 = xla_tuple %s13, %s14
  %s16 = sld [smem:[#allocation0]]
  $region121: #{tpu_custom_call.1} parent=0
    _
  %s18 = ssub.s32 1, %s16
  %s19 = scalar_select 0, %s18, %s16
  $region1: #{tpu_custom_call.1} parent=0
    #allocation2 [shape = 'u8[16384]{0}', space=vmem, size = 0x4000, scoped, tag = 'input window, operand 0']
    #allocation3 [shape = 's32[2]{0}', space=sflag, size = 0x8, scoped, tag = 'scoped memory for tpu_custom_call.1']
    #allocation4 [shape = 's32[2]{0}', space=sflag, size = 0x8, scoped, tag = 'scoped memory for tpu_custom_call.1']
    #allocation5 [shape = 'u8[512]{0}', space=vmem, size = 0x400, scoped, tag = 'input window, operand 2, single buffered']
    #allocation6 [shape = 's32[1]{0}', space=sflag, size = 0x4, scoped, tag = 'scoped memory for tpu_custom_call.1']
    #allocation7 [shape = 'u8[512]{0}', space=vmem, size = 0x400, scoped, tag = 'input window, operand 4, single buffered']
    #allocation8 [shape = 'u8[512]{0}', space=vmem, size = 0x400, scoped, tag = 'input window, operand 6, single buffered']
    #allocation9 [shape = 's32[1]{0}', space=sflag, size = 0x4, scoped, tag = 'scoped memory for tpu_custom_call.1']
    #allocation10 [shape = 'u8[16384]{0}', space=vmem, size = 0x4000, scoped, tag = 'input window, operand 7, single buffered']
    #allocation11 [shape = 'u8[512]{0}', space=vmem, size = 0x400, scoped, tag = 'input window, operand 8, single buffered']
    #allocation12 [shape = 's32[1]{0}', space=sflag, size = 0x4, scoped, tag = 'scoped memory for tpu_custom_call.1']
    #allocation13 [shape = 'u8[131072]{0}', space=vmem, size = 0x20000, scoped, tag = 'input window, operand 11, single buffered']
    #allocation14 [shape = 'u8[16384]{0}', space=vmem, size = 0x4000, scoped, tag = 'output window, operand 0']
    #allocation15 [shape = 'u8[8192]{0}', space=vmem, size = 0x2000, scoped, tag = 'output window, operand 1']
    #allocation16 [shape = 's32[2]{0}', space=sflag, size = 0x8, scoped, tag = 'scoped memory for tpu_custom_call.1']
    %20 = vsyncpa [#allocation3], 0
    %s21 = scalar_lea.sflag [#allocation3], 1
    %22 = vsyncpa %s21, 0
    %23 = vsyncpa [#allocation6], 0
    %24 = vsyncpa [#allocation9], 0
    %25 = vsyncpa [#allocation12], 0
    %26 = vsyncpa [#allocation4], 0
    %s27 = scalar_lea.sflag [#allocation4], 1
    %28 = vsyncpa %s27, 0
    %29 = vsyncpa [#allocation16], 0
    %s30 = scalar_lea.sflag [#allocation16], 1
    %31 = vsyncpa %s30, 0
    loop: start=0, step=1, limit=4
    $region2: #{tpu_custom_call.1} parent=1 // loop_pre_header
      _
    $region3: #{tpu_custom_call.1} parent=1 // loop_header
      %s33 = sphi 0, %s37
      %p34 = scmp.ge.s32.totalorder %s33, 4
      %s43 = sphi 0, %s45
      %s46 = sphi 0, %s43
      %s47 = sphi 0, %s46
      %s63 = sphi 0, %s47
      %s67 = sphi 0, %s67
      %s69 = sphi 0, %s67
      %s70 = sphi 0, %s69
      %s84 = sphi 0, %s70
      %s88 = sphi 0, %s88
      %s90 = sphi 0, %s88
      %s91 = sphi 0, %s90
      %s105 = sphi 0, %s91
      %s109 = sphi 0, %s109
      %s111 = sphi 0, %s109
      %s112 = sphi 0, %s111
      %s126 = sphi 0, %s112
      %s130 = sphi 0, %s130
      %s132 = sphi 0, %s130
      %s133 = sphi 0, %s132
      %s147 = sphi 0, %s133
      %s151 = sphi 0, %s151
      %s153 = sphi 0, %s151
      %s154 = sphi 0, %s153
      %s168 = sphi 0, %s154
      %s172 = sphi 0, %s172
      %s174 = sphi 0, %s172
      %s175 = sphi 0, %s174
      %s189 = sphi 0, %s175
      %s193 = sphi 0, %s193
      %s195 = sphi 0, %s193
      %s196 = sphi 0, %s195
      %s210 = sphi 0, %s196
      %s214 = sphi 0, %s214
      %s216 = sphi 0, %s214
      %s217 = sphi 0, %s216
      %s231 = sphi 0, %s217
      %s235 = sphi 0, %s235
      %s237 = sphi 0, %s235
      %s238 = sphi 0, %s237
      %s252 = sphi 0, %s238
      %s256 = sphi 0, %s256
      %s258 = sphi 0, %s256
      %s259 = sphi 0, %s258
      %s273 = sphi 0, %s259
      %s277 = sphi 0, %s277
      %s279 = sphi 0, %s277
      %s280 = sphi 0, %s279
      %s294 = sphi 0, %s280
      %s298 = sphi 0, %s298
      %s300 = sphi 0, %s298
      %s301 = sphi 0, %s300
      %s315 = sphi 0, %s301
      %s321 = sphi 0, %s323
      %s324 = sphi 0, %s321
      %s325 = sphi 0, %s324
      %s341 = sphi 0, %s325
      %s347 = sphi 0, %s349
      %s350 = sphi 0, %s347
      %s351 = sphi 0, %s350
      %s367 = sphi 0, %s351
    $region4: #{tpu_custom_call.1} parent=1 // loop_header_branch
      %36 = sbr.rel (%p34) target = $region8
    $region5: #{tpu_custom_call.1} parent=1 // loop_body
      %s38 = ssub.s32 %s33, 1
      %s39 = ssub.s32 %s33, 2
      %s40 = sadd.s32 %s33, 1
      %s41 = ssub.s32 %s33, %s40
      %p42 = scmp.eq.s32.totalorder %s41, 0
      %s44 = sadd.s32 %s43, 1
      %s45 = scalar_select %p42, %s43, %s44
      %p48 = pneg %p42
      %p49 = scmp.eq.s32.totalorder %s33, 1
      %p50 = por %p48, %p49
      %p51 = scmp.ne.s32.totalorder %s43, %s46
      %p52 = scmp.eq.s32.totalorder %s33, 0
      %p53 = por %p51, %p52
      %p54 = scmp.ne.s32.totalorder %s43, %s46
      %p55 = scmp.eq.s32.totalorder %s38, 1
      %p56 = por %p54, %p55
      %p57 = scmp.ne.s32.totalorder %s46, %s47
      %p58 = scmp.eq.s32.totalorder %s38, 0
      %p59 = por %p57, %p58
      %p60 = scmp.ne.s32.totalorder %s46, %s47
      %p61 = scmp.eq.s32.totalorder %s39, 1
      %p62 = por %p60, %p61
      %p64 = scmp.ne.s32.totalorder %s47, %s63
      %p65 = scmp.eq.s32.totalorder %s39, 0
      %p66 = por %p64, %p65
      %s68 = sadd.s32 %s67, 1
      %p71 = scmp.eq.s32.totalorder %s33, 1
      %p72 = scmp.ne.s32.totalorder %s67, %s69
      %p73 = scmp.eq.s32.totalorder %s33, 0
      %p74 = por %p72, %p73
      %p75 = scmp.ne.s32.totalorder %s67, %s69
      %p76 = scmp.eq.s32.totalorder %s38, 1
      %p77 = por %p75, %p76
      %p78 = scmp.ne.s32.totalorder %s69, %s70
      %p79 = scmp.eq.s32.totalorder %s38, 0
      %p80 = por %p78, %p79
      %p81 = scmp.ne.s32.totalorder %s69, %s70
      %p82 = scmp.eq.s32.totalorder %s39, 1
      %p83 = por %p81, %p82
      %p85 = scmp.ne.s32.totalorder %s70, %s84
      %p86 = scmp.eq.s32.totalorder %s39, 0
      %p87 = por %p85, %p86
      %s89 = sadd.s32 %s88, 1
      %p92 = scmp.eq.s32.totalorder %s33, 1
      %p93 = scmp.ne.s32.totalorder %s88, %s90
      %p94 = scmp.eq.s32.totalorder %s33, 0
      %p95 = por %p93, %p94
      %p96 = scmp.ne.s32.totalorder %s88, %s90
      %p97 = scmp.eq.s32.totalorder %s38, 1
      %p98 = por %p96, %p97
      %p99 = scmp.ne.s32.totalorder %s90, %s91
      %p100 = scmp.eq.s32.totalorder %s38, 0
      %p101 = por %p99, %p100
      %p102 = scmp.ne.s32.totalorder %s90, %s91
      %p103 = scmp.eq.s32.totalorder %s39, 1
      %p104 = por %p102, %p103
      %p106 = scmp.ne.s32.totalorder %s91, %s105
      %p107 = scmp.eq.s32.totalorder %s39, 0
      %p108 = por %p106, %p107
      %s110 = sadd.s32 %s109, 1
      %p113 = scmp.eq.s32.totalorder %s33, 1
      %p114 = scmp.ne.s32.totalorder %s109, %s111
      %p115 = scmp.eq.s32.totalorder %s33, 0
      %p116 = por %p114, %p115
      %p117 = scmp.ne.s32.totalorder %s109, %s111
      %p118 = scmp.eq.s32.totalorder %s38, 1
      %p119 = por %p117, %p118
      %p120 = scmp.ne.s32.totalorder %s111, %s112
      %p121 = scmp.eq.s32.totalorder %s38, 0
      %p122 = por %p120, %p121
      %p123 = scmp.ne.s32.totalorder %s111, %s112
      %p124 = scmp.eq.s32.totalorder %s39, 1
      %p125 = por %p123, %p124
      %p127 = scmp.ne.s32.totalorder %s112, %s126
      %p128 = scmp.eq.s32.totalorder %s39, 0
      %p129 = por %p127, %p128
      %s131 = sadd.s32 %s130, 1
      %p134 = scmp.eq.s32.totalorder %s33, 1
      %p135 = scmp.ne.s32.totalorder %s130, %s132
      %p136 = scmp.eq.s32.totalorder %s33, 0
      %p137 = por %p135, %p136
      %p138 = scmp.ne.s32.totalorder %s130, %s132
      %p139 = scmp.eq.s32.totalorder %s38, 1
      %p140 = por %p138, %p139
      %p141 = scmp.ne.s32.totalorder %s132, %s133
      %p142 = scmp.eq.s32.totalorder %s38, 0
      %p143 = por %p141, %p142
      %p144 = scmp.ne.s32.totalorder %s132, %s133
      %p145 = scmp.eq.s32.totalorder %s39, 1
      %p146 = por %p144, %p145
      %p148 = scmp.ne.s32.totalorder %s133, %s147
      %p149 = scmp.eq.s32.totalorder %s39, 0
      %p150 = por %p148, %p149
      %s152 = sadd.s32 %s151, 1
      %p155 = scmp.eq.s32.totalorder %s33, 1
      %p156 = scmp.ne.s32.totalorder %s151, %s153
      %p157 = scmp.eq.s32.totalorder %s33, 0
      %p158 = por %p156, %p157
      %p159 = scmp.ne.s32.totalorder %s151, %s153
      %p160 = scmp.eq.s32.totalorder %s38, 1
      %p161 = por %p159, %p160
      %p162 = scmp.ne.s32.totalorder %s153, %s154
      %p163 = scmp.eq.s32.totalorder %s38, 0
      %p164 = por %p162, %p163
      %p165 = scmp.ne.s32.totalorder %s153, %s154
      %p166 = scmp.eq.s32.totalorder %s39, 1
      %p167 = por %p165, %p166
      %p169 = scmp.ne.s32.totalorder %s154, %s168
      %p170 = scmp.eq.s32.totalorder %s39, 0
      %p171 = por %p169, %p170
      %s173 = sadd.s32 %s172, 1
      %p176 = scmp.eq.s32.totalorder %s33, 1
      %p177 = scmp.ne.s32.totalorder %s172, %s174
      %p178 = scmp.eq.s32.totalorder %s33, 0
      %p179 = por %p177, %p178
      %p180 = scmp.ne.s32.totalorder %s172, %s174
      %p181 = scmp.eq.s32.totalorder %s38, 1
      %p182 = por %p180, %p181
      %p183 = scmp.ne.s32.totalorder %s174, %s175
      %p184 = scmp.eq.s32.totalorder %s38, 0
      %p185 = por %p183, %p184
      %p186 = scmp.ne.s32.totalorder %s174, %s175
      %p187 = scmp.eq.s32.totalorder %s39, 1
      %p188 = por %p186, %p187
      %p190 = scmp.ne.s32.totalorder %s175, %s189
      %p191 = scmp.eq.s32.totalorder %s39, 0
      %p192 = por %p190, %p191
      %s194 = sadd.s32 %s193, 1
      %p197 = scmp.eq.s32.totalorder %s33, 1
      %p198 = scmp.ne.s32.totalorder %s193, %s195
      %p199 = scmp.eq.s32.totalorder %s33, 0
      %p200 = por %p198, %p199
      %p201 = scmp.ne.s32.totalorder %s193, %s195
      %p202 = scmp.eq.s32.totalorder %s38, 1
      %p203 = por %p201, %p202
      %p204 = scmp.ne.s32.totalorder %s195, %s196
      %p205 = scmp.eq.s32.totalorder %s38, 0
      %p206 = por %p204, %p205
      %p207 = scmp.ne.s32.totalorder %s195, %s196
      %p208 = scmp.eq.s32.totalorder %s39, 1
      %p209 = por %p207, %p208
      %p211 = scmp.ne.s32.totalorder %s196, %s210
      %p212 = scmp.eq.s32.totalorder %s39, 0
      %p213 = por %p211, %p212
      %s215 = sadd.s32 %s214, 1
      %p218 = scmp.eq.s32.totalorder %s33, 1
      %p219 = scmp.ne.s32.totalorder %s214, %s216
      %p220 = scmp.eq.s32.totalorder %s33, 0
      %p221 = por %p219, %p220
      %p222 = scmp.ne.s32.totalorder %s214, %s216
      %p223 = scmp.eq.s32.totalorder %s38, 1
      %p224 = por %p222, %p223
      %p225 = scmp.ne.s32.totalorder %s216, %s217
      %p226 = scmp.eq.s32.totalorder %s38, 0
      %p227 = por %p225, %p226
      %p228 = scmp.ne.s32.totalorder %s216, %s217
      %p229 = scmp.eq.s32.totalorder %s39, 1
      %p230 = por %p228, %p229
      %p232 = scmp.ne.s32.totalorder %s217, %s231
      %p233 = scmp.eq.s32.totalorder %s39, 0
      %p234 = por %p232, %p233
      %s236 = sadd.s32 %s235, 1
      %p239 = scmp.eq.s32.totalorder %s33, 1
      %p240 = scmp.ne.s32.totalorder %s235, %s237
      %p241 = scmp.eq.s32.totalorder %s33, 0
      %p242 = por %p240, %p241
      %p243 = scmp.ne.s32.totalorder %s235, %s237
      %p244 = scmp.eq.s32.totalorder %s38, 1
      %p245 = por %p243, %p244
      %p246 = scmp.ne.s32.totalorder %s237, %s238
      %p247 = scmp.eq.s32.totalorder %s38, 0
      %p248 = por %p246, %p247
      %p249 = scmp.ne.s32.totalorder %s237, %s238
      %p250 = scmp.eq.s32.totalorder %s39, 1
      %p251 = por %p249, %p250
      %p253 = scmp.ne.s32.totalorder %s238, %s252
      %p254 = scmp.eq.s32.totalorder %s39, 0
      %p255 = por %p253, %p254
      %s257 = sadd.s32 %s256, 1
      %p260 = scmp.eq.s32.totalorder %s33, 1
      %p261 = scmp.ne.s32.totalorder %s256, %s258
      %p262 = scmp.eq.s32.totalorder %s33, 0
      %p263 = por %p261, %p262
      %p264 = scmp.ne.s32.totalorder %s256, %s258
      %p265 = scmp.eq.s32.totalorder %s38, 1
      %p266 = por %p264, %p265
      %p267 = scmp.ne.s32.totalorder %s258, %s259
      %p268 = scmp.eq.s32.totalorder %s38, 0
      %p269 = por %p267, %p268
      %p270 = scmp.ne.s32.totalorder %s258, %s259
      %p271 = scmp.eq.s32.totalorder %s39, 1
      %p272 = por %p270, %p271
      %p274 = scmp.ne.s32.totalorder %s259, %s273
      %p275 = scmp.eq.s32.totalorder %s39, 0
      %p276 = por %p274, %p275
      %s278 = sadd.s32 %s277, 1
      %p281 = scmp.eq.s32.totalorder %s33, 1
      %p282 = scmp.ne.s32.totalorder %s277, %s279
      %p283 = scmp.eq.s32.totalorder %s33, 0
      %p284 = por %p282, %p283
      %p285 = scmp.ne.s32.totalorder %s277, %s279
      %p286 = scmp.eq.s32.totalorder %s38, 1
      %p287 = por %p285, %p286
      %p288 = scmp.ne.s32.totalorder %s279, %s280
      %p289 = scmp.eq.s32.totalorder %s38, 0
      %p290 = por %p288, %p289
      %p291 = scmp.ne.s32.totalorder %s279, %s280
      %p292 = scmp.eq.s32.totalorder %s39, 1
      %p293 = por %p291, %p292
      %p295 = scmp.ne.s32.totalorder %s280, %s294
      %p296 = scmp.eq.s32.totalorder %s39, 0
      %p297 = por %p295, %p296
      %s299 = sadd.s32 %s298, 1
      %p302 = scmp.eq.s32.totalorder %s33, 1
      %p303 = scmp.ne.s32.totalorder %s298, %s300
      %p304 = scmp.eq.s32.totalorder %s33, 0
      %p305 = por %p303, %p304
      %p306 = scmp.ne.s32.totalorder %s298, %s300
      %p307 = scmp.eq.s32.totalorder %s38, 1
      %p308 = por %p306, %p307
      %p309 = scmp.ne.s32.totalorder %s300, %s301
      %p310 = scmp.eq.s32.totalorder %s38, 0
      %p311 = por %p309, %p310
      %p312 = scmp.ne.s32.totalorder %s300, %s301
      %p313 = scmp.eq.s32.totalorder %s39, 1
      %p314 = por %p312, %p313
      %p316 = scmp.ne.s32.totalorder %s301, %s315
      %p317 = scmp.eq.s32.totalorder %s39, 0
      %p318 = por %p316, %p317
      %s319 = ssub.s32 %s33, %s40
      %p320 = scmp.eq.s32.totalorder %s319, 0
      %s322 = sadd.s32 %s321, 1
      %s323 = scalar_select %p320, %s321, %s322
      %p326 = pneg %p320
      %p327 = scmp.eq.s32.totalorder %s33, 1
      %p328 = por %p326, %p327
      %p329 = scmp.ne.s32.totalorder %s321, %s324
      %p330 = scmp.eq.s32.totalorder %s33, 0
      %p331 = por %p329, %p330
      %p332 = scmp.ne.s32.totalorder %s321, %s324
      %p333 = scmp.eq.s32.totalorder %s38, 1
      %p334 = por %p332, %p333
      %p335 = scmp.ne.s32.totalorder %s324, %s325
      %p336 = scmp.eq.s32.totalorder %s38, 0
      %p337 = por %p335, %p336
      %p338 = scmp.ne.s32.totalorder %s324, %s325
      %p339 = scmp.eq.s32.totalorder %s39, 1
      %p340 = por %p338, %p339
      %p342 = scmp.ne.s32.totalorder %s325, %s341
      %p343 = scmp.eq.s32.totalorder %s39, 0
      %p344 = por %p342, %p343
      %s345 = ssub.s32 %s33, %s40
      %p346 = scmp.eq.s32.totalorder %s345, 0
      %s348 = sadd.s32 %s347, 1
      %s349 = scalar_select %p346, %s347, %s348
      %p352 = pneg %p346
      %p353 = scmp.eq.s32.totalorder %s33, 1
      %p354 = por %p352, %p353
      %p355 = scmp.ne.s32.totalorder %s347, %s350
      %p356 = scmp.eq.s32.totalorder %s33, 0
      %p357 = por %p355, %p356
      %p358 = scmp.ne.s32.totalorder %s347, %s350
      %p359 = scmp.eq.s32.totalorder %s38, 1
      %p360 = por %p358, %p359
      %p361 = scmp.ne.s32.totalorder %s350, %s351
      %p362 = scmp.eq.s32.totalorder %s38, 0
      %p363 = por %p361, %p362
      %p364 = scmp.ne.s32.totalorder %s350, %s351
      %p365 = scmp.eq.s32.totalorder %s39, 1
      %p366 = por %p364, %p365
      %p368 = scmp.ne.s32.totalorder %s351, %s367
      %p369 = scmp.eq.s32.totalorder %s39, 0
      %p370 = por %p368, %p369
      %p371 = scmp.le.s32.totalorder 1, %s33
      %p372 = scmp.lt.s32.totalorder %s33, 3
      %p373 = pnand %p371, %p372
      %p374 = pneg %p373
      // Predicated region
      $region9: #{tpu_custom_call.1} parent=5 // pred_check
        _
      $region10: #{tpu_custom_call.1} parent=5 // pred_check_branch
        %376 = sbr.rel (%p373) target = $region12
      $region11: #{tpu_custom_call.1} parent=5 // pred_region
        %s377 = ssub.s32 %s33, 1
        // Predicated region
        $region13: #{tpu_custom_call.1} parent=11 // pred_check
          %p378 = pneg %p80
        $region14: #{tpu_custom_call.1} parent=11 // pred_check_branch
          %380 = sbr.rel (%p378) target = $region16
        $region15: #{tpu_custom_call.1} parent=11 // pred_region
          _
        $region16: #{tpu_custom_call.1} parent=11 // pred_fallthru
          _
        // Predicated region
        $region17: #{tpu_custom_call.1} parent=11 // pred_check
          %p381 = pneg %p101
        $region18: #{tpu_custom_call.1} parent=11 // pred_check_branch
          %383 = sbr.rel (%p381) target = $region20
        $region19: #{tpu_custom_call.1} parent=11 // pred_region
          %s385 = ssub.s32 16, 16
          %386 = vsyncadd [#allocation6], %s385
          %s388 = sshll.u32 [#allocation5], 4
          %s389 = int_to_ptr.vmem [resolvable:$true] %s388
          %391 = dma.hbm_to_vmem [thread:$0]  %s2, 16, %s389, [#allocation6]
        $region20: #{tpu_custom_call.1} parent=11 // pred_fallthru
          _
        // Predicated region
        $region21: #{tpu_custom_call.1} parent=11 // pred_check
          %p392 = pneg %p122
        $region22: #{tpu_custom_call.1} parent=11 // pred_check_branch
          %394 = sbr.rel (%p392) target = $region24
        $region23: #{tpu_custom_call.1} parent=11 // pred_region
          _
        $region24: #{tpu_custom_call.1} parent=11 // pred_fallthru
          _
        // Predicated region
        $region25: #{tpu_custom_call.1} parent=11 // pred_check
          %p395 = pneg %p143
        $region26: #{tpu_custom_call.1} parent=11 // pred_check_branch
          %397 = sbr.rel (%p395) target = $region28
        $region27: #{tpu_custom_call.1} parent=11 // pred_region
          %s399 = ssub.s32 16, 16
          %400 = vsyncadd [#allocation6], %s399
          %s402 = sshll.u32 [#allocation7], 4
          %s403 = int_to_ptr.vmem [resolvable:$true] %s402
          %405 = dma.hbm_to_vmem [thread:$0]  %s4, 16, %s403, [#allocation6]
        $region28: #{tpu_custom_call.1} parent=11 // pred_fallthru
          _
        // Predicated region
        $region29: #{tpu_custom_call.1} parent=11 // pred_check
          %p406 = pneg %p164
        $region30: #{tpu_custom_call.1} parent=11 // pred_check_branch
          %408 = sbr.rel (%p406) target = $region32
        $region31: #{tpu_custom_call.1} parent=11 // pred_region
          _
        $region32: #{tpu_custom_call.1} parent=11 // pred_fallthru
          _
        // Predicated region
        $region33: #{tpu_custom_call.1} parent=11 // pred_check
          %p409 = pneg %p185
        $region34: #{tpu_custom_call.1} parent=11 // pred_check_branch
          %411 = sbr.rel (%p409) target = $region36
        $region35: #{tpu_custom_call.1} parent=11 // pred_region
          %s413 = ssub.s32 16, 16
          %414 = vsyncadd [#allocation9], %s413
          %s416 = sshll.u32 [#allocation8], 4
          %s417 = int_to_ptr.vmem [resolvable:$true] %s416
          %419 = dma.hbm_to_vmem [thread:$0]  %s6, 16, %s417, [#allocation9]
        $region36: #{tpu_custom_call.1} parent=11 // pred_fallthru
          _
        // Predicated region
        $region37: #{tpu_custom_call.1} parent=11 // pred_check
          %p420 = pneg %p206
        $region38: #{tpu_custom_call.1} parent=11 // pred_check_branch
          %422 = sbr.rel (%p420) target = $region40
        $region39: #{tpu_custom_call.1} parent=11 // pred_region
          %s424 = ssub.s32 512, 512
          %425 = vsyncadd [#allocation9], %s424
          %s426 = sshll.u32 [#allocation10], 4
          %s427 = int_to_ptr.vmem [resolvable:$true] %s426
          %432 = dma.hbm_to_vmem [thread:$0]  %s7, 512, %s427, [#allocation9], 128, 128, 8
        $region40: #{tpu_custom_call.1} parent=11 // pred_fallthru
          _
        // Predicated region
        $region41: #{tpu_custom_call.1} parent=11 // pred_check
          %p433 = pneg %p227
        $region42: #{tpu_custom_call.1} parent=11 // pred_check_branch
          %435 = sbr.rel (%p433) target = $region44
        $region43: #{tpu_custom_call.1} parent=11 // pred_region
          %s437 = ssub.s32 16, 16
          %438 = vsyncadd [#allocation12], %s437
          %s440 = sshll.u32 [#allocation11], 4
          %s441 = int_to_ptr.vmem [resolvable:$true] %s440
          %443 = dma.hbm_to_vmem [thread:$0]  %s8, 16, %s441, [#allocation12]
        $region44: #{tpu_custom_call.1} parent=11 // pred_fallthru
          _
        // Predicated region
        $region45: #{tpu_custom_call.1} parent=11 // pred_check
          %p444 = pneg %p248
        $region46: #{tpu_custom_call.1} parent=11 // pred_check_branch
          %446 = sbr.rel (%p444) target = $region48
        $region47: #{tpu_custom_call.1} parent=11 // pred_region
          _
        $region48: #{tpu_custom_call.1} parent=11 // pred_fallthru
          _
        // Predicated region
        $region49: #{tpu_custom_call.1} parent=11 // pred_check
          %p447 = pneg %p269
        $region50: #{tpu_custom_call.1} parent=11 // pred_check_branch
          %449 = sbr.rel (%p447) target = $region52
        $region51: #{tpu_custom_call.1} parent=11 // pred_region
          _
        $region52: #{tpu_custom_call.1} parent=11 // pred_fallthru
          _
        // Predicated region
        $region53: #{tpu_custom_call.1} parent=11 // pred_check
          %p450 = pneg %p290
        $region54: #{tpu_custom_call.1} parent=11 // pred_check_branch
          %452 = sbr.rel (%p450) target = $region56
        $region55: #{tpu_custom_call.1} parent=11 // pred_region
          %s454 = ssub.s32 4096, 4096
          %455 = vsyncadd [#allocation12], %s454
          %s456 = sshll.u32 [#allocation13], 4
          %s457 = int_to_ptr.vmem [resolvable:$true] %s456
          %462 = dma.hbm_to_vmem [thread:$0]  %s11, 4096, %s457, [#allocation12], 256, 256, 16
        $region56: #{tpu_custom_call.1} parent=11 // pred_fallthru
          _
        // Predicated region
        $region57: #{tpu_custom_call.1} parent=11 // pred_check
          %p463 = pneg %p311
        $region58: #{tpu_custom_call.1} parent=11 // pred_check_branch
          %465 = sbr.rel (%p463) target = $region60
        $region59: #{tpu_custom_call.1} parent=11 // pred_region
          _
        $region60: #{tpu_custom_call.1} parent=11 // pred_fallthru
          _
      $region12: #{tpu_custom_call.1} parent=5 // pred_fallthru
        _
      %p466 = scmp.lt.s32.totalorder %s33, 2
      // Predicated region
      $region61: #{tpu_custom_call.1} parent=5 // pred_check
        %p467 = pneg %p466
      $region62: #{tpu_custom_call.1} parent=5 // pred_check_branch
        %469 = sbr.rel (%p467) target = $region64
      $region63: #{tpu_custom_call.1} parent=5 // pred_region
        // Predicated region
        $region65: #{tpu_custom_call.1} parent=63 // pred_check
          %p470 = pneg %p53
        $region66: #{tpu_custom_call.1} parent=63 // pred_check_branch
          %472 = sbr.rel (%p470) target = $region68
        $region67: #{tpu_custom_call.1} parent=63 // pred_region
          %s473 = sand.u32 %s43, 1
          %s474 = scalar_lea.sflag [#allocation3], %s473
          %s475 = sand.u32 %s43, 1
          %s476 = smul.addr %s475, 16
          %s477 = scalar_lea.vmem [#allocation2], %s476
          %s479 = ssub.s32 256, 256
          %480 = vsyncadd %s474, %s479
          %s481 = smul.addr %s33, 2
          %s482 = smul.addr %s481, 128
          %s483 = scalar_lea.hbm %s0, %s482
          %s485 = sshll.u32 %s477, 4
          %s486 = int_to_ptr.vmem [resolvable:$true] %s485
          %488 = dma.hbm_to_vmem [thread:$0]  %s483, 256, %s486, %s474
        $region68: #{tpu_custom_call.1} parent=63 // pred_fallthru
          _
      $region64: #{tpu_custom_call.1} parent=5 // pred_fallthru
        _
      %p489 = scmp.le.s32.totalorder 1, %s33
      %p490 = scmp.lt.s32.totalorder %s33, 3
      %p491 = pnand %p489, %p490
      %p492 = pneg %p491
      // Predicated region
      $region69: #{tpu_custom_call.1} parent=5 // pred_check
        _
      $region70: #{tpu_custom_call.1} parent=5 // pred_check_branch
        %494 = sbr.rel (%p491) target = $region72
      $region71: #{tpu_custom_call.1} parent=5 // pred_region
        %s495 = ssub.s32 %s33, 1
        %s496 = sand.u32 %s46, 1
        %s497 = scalar_lea.sflag [#allocation3], %s496
        %s498 = sand.u32 %s46, 1
        %s499 = smul.addr %s498, 16
        %s500 = scalar_lea.vmem [#allocation2], %s499
        // Predicated region
        $region73: #{tpu_custom_call.1} parent=71 // pred_check
          %p501 = pneg %p59
        $region74: #{tpu_custom_call.1} parent=71 // pred_check_branch
          %503 = sbr.rel (%p501) target = $region76
        $region75: #{tpu_custom_call.1} parent=71 // pred_region
          %504 = dma.done %s497, 256
        $region76: #{tpu_custom_call.1} parent=71 // pred_fallthru
          _
        // Predicated region
        $region77: #{tpu_custom_call.1} parent=71 // pred_check
          %p505 = pneg %p101
        $region78: #{tpu_custom_call.1} parent=71 // pred_check_branch
          %507 = sbr.rel (%p505) target = $region80
        $region79: #{tpu_custom_call.1} parent=71 // pred_region
          %508 = dma.done [#allocation6], 16
        $region80: #{tpu_custom_call.1} parent=71 // pred_fallthru
          _
        // Predicated region
        $region81: #{tpu_custom_call.1} parent=71 // pred_check
          %p509 = pneg %p143
        $region82: #{tpu_custom_call.1} parent=71 // pred_check_branch
          %511 = sbr.rel (%p509) target = $region84
        $region83: #{tpu_custom_call.1} parent=71 // pred_region
          %512 = dma.done [#allocation6], 16
        $region84: #{tpu_custom_call.1} parent=71 // pred_fallthru
          _
        // Predicated region
        $region85: #{tpu_custom_call.1} parent=71 // pred_check
          %p513 = pneg %p185
        $region86: #{tpu_custom_call.1} parent=71 // pred_check_branch
          %515 = sbr.rel (%p513) target = $region88
        $region87: #{tpu_custom_call.1} parent=71 // pred_region
          %516 = dma.done [#allocation9], 16
        $region88: #{tpu_custom_call.1} parent=71 // pred_fallthru
          _
        // Predicated region
        $region89: #{tpu_custom_call.1} parent=71 // pred_check
          %p517 = pneg %p206
        $region90: #{tpu_custom_call.1} parent=71 // pred_check_branch
          %519 = sbr.rel (%p517) target = $region92
        $region91: #{tpu_custom_call.1} parent=71 // pred_region
          %520 = dma.done [#allocation9], 512
        $region92: #{tpu_custom_call.1} parent=71 // pred_fallthru
          _
        // Predicated region
        $region93: #{tpu_custom_call.1} parent=71 // pred_check
          %p521 = pneg %p227
        $region94: #{tpu_custom_call.1} parent=71 // pred_check_branch
          %523 = sbr.rel (%p521) target = $region96
        $region95: #{tpu_custom_call.1} parent=71 // pred_region
          %524 = dma.done [#allocation12], 16
        $region96: #{tpu_custom_call.1} parent=71 // pred_fallthru
          _
        // Predicated region
        $region97: #{tpu_custom_call.1} parent=71 // pred_check
          %p525 = pneg %p290
        $region98: #{tpu_custom_call.1} parent=71 // pred_check_branch
          %527 = sbr.rel (%p525) target = $region100
        $region99: #{tpu_custom_call.1} parent=71 // pred_region
          %528 = dma.done [#allocation12], 4096
        $region100: #{tpu_custom_call.1} parent=71 // pred_fallthru
          _
        %s529 = sand.u32 %s46, 1
        %s530 = scalar_lea.sflag [#allocation3], %s529
        %s531 = sand.u32 %s46, 1
        %s532 = smul.addr %s531, 16
        %s533 = scalar_lea.vmem [#allocation2], %s532
        %p534 = pneg %p59
        %p535 = pneg %p56
        %p536 = pneg %p80
        %p537 = pneg %p77
        %p538 = pneg %p101
        %p539 = pneg %p98
        %p540 = pneg %p122
        %p541 = pneg %p119
        %p542 = pneg %p143
        %p543 = pneg %p140
        %p544 = pneg %p164
        %p545 = pneg %p161
        %p546 = pneg %p185
        %p547 = pneg %p182
        %p548 = pneg %p206
        %p549 = pneg %p203
        %p550 = pneg %p227
        %p551 = pneg %p224
        %p552 = pneg %p248
        %p553 = pneg %p245
        %p554 = pneg %p269
        %p555 = pneg %p266
        %p556 = pneg %p290
        %p557 = pneg %p287
        %p558 = pneg %p311
        %p559 = pneg %p308
        %p560 = pneg %p337
        %p561 = pneg %p334
        %s562 = sand.u32 %s324, 1
        %s563 = scalar_lea.sflag [#allocation4], %s562
        %s564 = sand.u32 %s324, 1
        %s565 = smul.addr %s564, 16
        %s566 = scalar_lea.vmem [#allocation14], %s565
        %p567 = pneg %p363
        %p568 = pneg %p360
        %s569 = sand.u32 %s350, 1
        %s570 = scalar_lea.sflag [#allocation16], %s569
        %s571 = sand.u32 %s350, 1
        %s572 = smul.addr %s571, 8
        %s573 = scalar_lea.vmem [#allocation15], %s572
        %v574 = vld [vmem:[%s500] sm:$0xff]
        %v575 = vld [vmem:[%s500 + $0x8] sm:$0xff]
        %v576 = vld [vmem:[%s1] sm:$0xff]
        %v577 = vld [vmem:[%s1 + $0x8] sm:$0xff]
        %v578 = vld [vmem:[%s1 + $0x10] sm:$0xff]
        %v579 = vld [vmem:[%s1 + $0x18] sm:$0xff]
        %v580 = vld [vmem:[%s1 + $0x20] sm:$0xff]
        %v581 = vld [vmem:[%s1 + $0x28] sm:$0xff]
        %v582 = vld [vmem:[%s1 + $0x30] sm:$0xff]
        %v583 = vld [vmem:[%s1 + $0x38] sm:$0xff]
        %v584 = vld [vmem:[%s1 + $0x40] sm:$0xff]
        %v585 = vld [vmem:[%s1 + $0x48] sm:$0xff]
        %v586 = vld [vmem:[%s1 + $0x50] sm:$0xff]
        %v587 = vld [vmem:[%s1 + $0x58] sm:$0xff]
        %v588 = vld [vmem:[%s1 + $0x60] sm:$0xff]
        %v589 = vld [vmem:[%s1 + $0x68] sm:$0xff]
        %v590 = vld [vmem:[%s1 + $0x70] sm:$0xff]
        %v591 = vld [vmem:[%s1 + $0x78] sm:$0xff]
        %v592 = vld [vmem:[%s1 + $0x80] sm:$0xff]
        %v593 = vld [vmem:[%s1 + $0x88] sm:$0xff]
        %v594 = vld [vmem:[%s1 + $0x90] sm:$0xff]
        %v595 = vld [vmem:[%s1 + $0x98] sm:$0xff]
        %v596 = vld [vmem:[%s1 + $0xa0] sm:$0xff]
        %v597 = vld [vmem:[%s1 + $0xa8] sm:$0xff]
        %v598 = vld [vmem:[%s1 + $0xb0] sm:$0xff]
        %v599 = vld [vmem:[%s1 + $0xb8] sm:$0xff]
        %v600 = vld [vmem:[%s1 + $0xc0] sm:$0xff]
        %v601 = vld [vmem:[%s1 + $0xc8] sm:$0xff]
        %v602 = vld [vmem:[%s1 + $0xd0] sm:$0xff]
        %v603 = vld [vmem:[%s1 + $0xd8] sm:$0xff]
        %v604 = vld [vmem:[%s1 + $0xe0] sm:$0xff]
        %v605 = vld [vmem:[%s1 + $0xe8] sm:$0xff]
        %v606 = vld [vmem:[%s1 + $0xf0] sm:$0xff]
        %v607 = vld [vmem:[%s1 + $0xf8] sm:$0xff]
        %v608 = vld [vmem:[#allocation5] sm:$0x1]
        %v610 = vlaneseq
        %v611 = vshrl.u32 %v610, 7
        %v612 = vsub.s32 0, %v611
        %v613 = vrot.slane %v608, %v612
        %615 = vmatprep.subr.mxu0 0.0
        %616 = vmatpush1.msra.mxu0 %v576
        %617 = vmatprep.subr.mxu0 0.0
        %618 = vmatpush1.msra.mxu0 %v577
        %619 = vmatprep.subr.mxu0 0.0
        %620 = vmatpush1.msra.mxu0 %v578
        %621 = vmatprep.subr.mxu0 0.0
        %622 = vmatpush1.msra.mxu0 %v579
        %623 = vmatprep.subr.mxu0 0.0
        %624 = vmatpush1.msra.mxu0 %v580
        %625 = vmatprep.subr.mxu0 0.0
        %626 = vmatpush1.msra.mxu0 %v581
        %627 = vmatprep.subr.mxu0 0.0
        %628 = vmatpush1.msra.mxu0 %v582
        %629 = vmatprep.subr.mxu0 0.0
        %630 = vmatpush1.msra.mxu0 %v583
        %631 = vmatprep.subr.mxu0 0.0
        %632 = vmatpush1.msra.mxu0 %v584
        %633 = vmatprep.subr.mxu0 0.0
        %634 = vmatpush1.msra.mxu0 %v585
        %635 = vmatprep.subr.mxu0 0.0
        %636 = vmatpush1.msra.mxu0 %v586
        %637 = vmatprep.subr.mxu0 0.0
        %638 = vmatpush1.msra.mxu0 %v587
        %639 = vmatprep.subr.mxu0 0.0
        %640 = vmatpush1.msra.mxu0 %v588
        %641 = vmatprep.subr.mxu0 0.0
        %642 = vmatpush1.msra.mxu0 %v589
        %643 = vmatprep.subr.mxu0 0.0
        %644 = vmatpush1.msra.mxu0 %v590
        %645 = vmatprep.subr.mxu0 0.0
        %646 = vmatpush1.msra.mxu0 %v591
        %647 = vmatprep.subr.mxu0 0.0
        %648 = vmatpush1.msra.mxu0 %v592
        %649 = vmatprep.subr.mxu0 0.0
        %650 = vmatpush1.msra.mxu0 %v593
        %651 = vmatprep.subr.mxu0 0.0
        %652 = vmatpush1.msra.mxu0 %v594
        %653 = vmatprep.subr.mxu0 0.0
        %654 = vmatpush1.msra.mxu0 %v595
        %655 = vmatprep.subr.mxu0 0.0
        %656 = vmatpush1.msra.mxu0 %v596
        %657 = vmatprep.subr.mxu0 0.0
        %658 = vmatpush1.msra.mxu0 %v597
        %659 = vmatprep.subr.mxu0 0.0
        %660 = vmatpush1.msra.mxu0 %v598
        %661 = vmatprep.subr.mxu0 0.0
        %662 = vmatpush1.msra.mxu0 %v599
        %663 = vmatprep.subr.mxu0 0.0
        %664 = vmatpush1.msra.mxu0 %v600
        %665 = vmatprep.subr.mxu0 0.0
        %666 = vmatpush1.msra.mxu0 %v601
        %667 = vmatprep.subr.mxu0 0.0
        %668 = vmatpush1.msra.mxu0 %v602
        %669 = vmatprep.subr.mxu0 0.0
        %670 = vmatpush1.msra.mxu0 %v603
        %671 = vmatprep.subr.mxu0 0.0
        %672 = vmatpush1.msra.mxu0 %v604
        %673 = vmatprep.subr.mxu0 0.0
        %674 = vmatpush1.msra.mxu0 %v605
        %675 = vmatprep.subr.mxu0 0.0
        %676 = vmatpush1.msra.mxu0 %v606
        %677 = vmatprep.subr.mxu0 0.0
        %678 = vmatpush1.msra.mxu0 %v607
        %679 = vmatprep.mubr.f32.mxu0 %v575
        %680 = vmatmul.mubr.f32.gmra.mrb[0].mxu0 %v574
        %v681 = vpop.f32.mrb[0].mxu0
        %v682 = vadd.f32 %v613, %v681
        %v683 = vpop.f32.mrb[0].mxu0
        %684 = vdwg.mxu0
        %v685 = vmin.f32 %v682, 0.0
        %vm686 = vcmp.gt.f32.partialorder %v682, 0.0
        %v687 = vmul.f32 %v685, 1.442695
        %v688 = vpow.pop %v687
        %v689 = vsub.f32 %v688, 1.0
        %v690 = vsel %vm686, %v682, %v689
        %v691 = vld [vmem:[%s3] sm:$0xff]
        %v692 = vld [vmem:[%s3 + $0x8] sm:$0xff]
        %v693 = vld [vmem:[%s3 + $0x10] sm:$0xff]
        %v694 = vld [vmem:[%s3 + $0x18] sm:$0xff]
        %v695 = vld [vmem:[%s3 + $0x20] sm:$0xff]
        %v696 = vld [vmem:[%s3 + $0x28] sm:$0xff]
        %v697 = vld [vmem:[%s3 + $0x30] sm:$0xff]
        %v698 = vld [vmem:[%s3 + $0x38] sm:$0xff]
        %v699 = vld [vmem:[%s3 + $0x40] sm:$0xff]
        %v700 = vld [vmem:[%s3 + $0x48] sm:$0xff]
        %v701 = vld [vmem:[%s3 + $0x50] sm:$0xff]
        %v702 = vld [vmem:[%s3 + $0x58] sm:$0xff]
        %v703 = vld [vmem:[%s3 + $0x60] sm:$0xff]
        %v704 = vld [vmem:[%s3 + $0x68] sm:$0xff]
        %v705 = vld [vmem:[%s3 + $0x70] sm:$0xff]
        %v706 = vld [vmem:[%s3 + $0x78] sm:$0xff]
        %v707 = vld [vmem:[#allocation7] sm:$0x1]
        %v709 = vlaneseq
        %v710 = vshrl.u32 %v709, 7
        %v711 = vsub.s32 0, %v710
        %v712 = vrot.slane %v707, %v711
        %714 = vmatprep.subr.mxu0 0.0
        %715 = vmatpush1.msra.mxu0 %v691
        %716 = vmatprep.subr.mxu0 0.0
        %717 = vmatpush1.msra.mxu0 %v692
        %718 = vmatprep.subr.mxu0 0.0
        %719 = vmatpush1.msra.mxu0 %v693
        %720 = vmatprep.subr.mxu0 0.0
        %721 = vmatpush1.msra.mxu0 %v694
        %722 = vmatprep.subr.mxu0 0.0
        %723 = vmatpush1.msra.mxu0 %v695
        %724 = vmatprep.subr.mxu0 0.0
        %725 = vmatpush1.msra.mxu0 %v696
        %726 = vmatprep.subr.mxu0 0.0
        %727 = vmatpush1.msra.mxu0 %v697
        %728 = vmatprep.subr.mxu0 0.0
        %729 = vmatpush1.msra.mxu0 %v698
        %730 = vmatprep.subr.mxu0 0.0
        %731 = vmatpush1.msra.mxu0 %v699
        %732 = vmatprep.subr.mxu0 0.0
        %733 = vmatpush1.msra.mxu0 %v700
        %734 = vmatprep.subr.mxu0 0.0
        %735 = vmatpush1.msra.mxu0 %v701
        %736 = vmatprep.subr.mxu0 0.0
        %737 = vmatpush1.msra.mxu0 %v702
        %738 = vmatprep.subr.mxu0 0.0
        %739 = vmatpush1.msra.mxu0 %v703
        %740 = vmatprep.subr.mxu0 0.0
        %741 = vmatpush1.msra.mxu0 %v704
        %742 = vmatprep.subr.mxu0 0.0
        %743 = vmatpush1.msra.mxu0 %v705
        %744 = vmatprep.subr.mxu0 0.0
        %745 = vmatpush1.msra.mxu0 %v706
        %746 = vmatprep.subr.mxu0 0.0
        %747 = vmatpush1.msra.mxu0 0.0
        %748 = vmatprep.subr.mxu0 0.0
        %749 = vmatpush1.msra.mxu0 0.0
        %750 = vmatprep.subr.mxu0 0.0
        %751 = vmatpush1.msra.mxu0 0.0
        %752 = vmatprep.subr.mxu0 0.0
        %753 = vmatpush1.msra.mxu0 0.0
        %754 = vmatprep.subr.mxu0 0.0
        %755 = vmatpush1.msra.mxu0 0.0
        %756 = vmatprep.subr.mxu0 0.0
        %757 = vmatpush1.msra.mxu0 0.0
        %758 = vmatprep.subr.mxu0 0.0
        %759 = vmatpush1.msra.mxu0 0.0
        %760 = vmatprep.subr.mxu0 0.0
        %761 = vmatpush1.msra.mxu0 0.0
        %762 = vmatprep.subr.mxu0 0.0
        %763 = vmatpush1.msra.mxu0 0.0
        %764 = vmatprep.subr.mxu0 0.0
        %765 = vmatpush1.msra.mxu0 0.0
        %766 = vmatprep.subr.mxu0 0.0
        %767 = vmatpush1.msra.mxu0 0.0
        %768 = vmatprep.subr.mxu0 0.0
        %769 = vmatpush1.msra.mxu0 0.0
        %770 = vmatprep.subr.mxu0 0.0
        %771 = vmatpush1.msra.mxu0 0.0
        %772 = vmatprep.subr.mxu0 0.0
        %773 = vmatpush1.msra.mxu0 0.0
        %774 = vmatprep.subr.mxu0 0.0
        %775 = vmatpush1.msra.mxu0 0.0
        %776 = vmatprep.subr.mxu0 0.0
        %777 = vmatpush1.msra.mxu0 0.0
        %778 = vmatprep.mubr.f32.mxu0 0.0
        %779 = vmatmul.mubr.f32.gmra.mrb[0].mxu0 %v690
        %v780 = vpop.f32.mrb[0].mxu0
        %v781 = vadd.f32 %v712, %v780
        %v782 = vpop.f32.mrb[0].mxu0
        %783 = vdwg.mxu0
        %v784 = vmin.f32 %v781, 0.0
        %vm785 = vcmp.gt.f32.partialorder %v781, 0.0
        %v786 = vmul.f32 %v784, 1.442695
        %v787 = vpow.pop %v786
        %v788 = vsub.f32 %v787, 1.0
        %v789 = vsel %vm785, %v781, %v788
        %v790 = vld [vmem:[%s5] sm:$0xff]
        %v791 = vld [vmem:[%s5 + $0x8] sm:$0xff]
        %v792 = vld [vmem:[%s5 + $0x10] sm:$0xff]
        %v793 = vld [vmem:[%s5 + $0x18] sm:$0xff]
        %v794 = vld [vmem:[%s5 + $0x20] sm:$0xff]
        %v795 = vld [vmem:[%s5 + $0x28] sm:$0xff]
        %v796 = vld [vmem:[%s5 + $0x30] sm:$0xff]
        %v797 = vld [vmem:[%s5 + $0x38] sm:$0xff]
        %v798 = vld [vmem:[#allocation8] sm:$0x1]
        %v800 = vlaneseq
        %v801 = vshrl.u32 %v800, 7
        %v802 = vsub.s32 0, %v801
        %v803 = vrot.slane %v798, %v802
        %vm805 = vcmask 523264
        %v807 = vsel %vm805, %v789, 0
        %809 = vmatprep.subr.mxu0 0.0
        %810 = vmatpush1.msra.mxu0 %v790
        %811 = vmatprep.subr.mxu0 0.0
        %812 = vmatpush1.msra.mxu0 %v791
        %813 = vmatprep.subr.mxu0 0.0
        %814 = vmatpush1.msra.mxu0 %v792
        %815 = vmatprep.subr.mxu0 0.0
        %816 = vmatpush1.msra.mxu0 %v793
        %817 = vmatprep.subr.mxu0 0.0
        %818 = vmatpush1.msra.mxu0 %v794
        %819 = vmatprep.subr.mxu0 0.0
        %820 = vmatpush1.msra.mxu0 %v795
        %821 = vmatprep.subr.mxu0 0.0
        %822 = vmatpush1.msra.mxu0 %v796
        %823 = vmatprep.subr.mxu0 0.0
        %824 = vmatpush1.msra.mxu0 %v797
        %825 = vmatprep.subr.mxu0 0.0
        %826 = vmatpush1.msra.mxu0 0.0
        %827 = vmatprep.subr.mxu0 0.0
        %828 = vmatpush1.msra.mxu0 0.0
        %829 = vmatprep.subr.mxu0 0.0
        %830 = vmatpush1.msra.mxu0 0.0
        %831 = vmatprep.subr.mxu0 0.0
        %832 = vmatpush1.msra.mxu0 0.0
        %833 = vmatprep.subr.mxu0 0.0
        %834 = vmatpush1.msra.mxu0 0.0
        %835 = vmatprep.subr.mxu0 0.0
        %836 = vmatpush1.msra.mxu0 0.0
        %837 = vmatprep.subr.mxu0 0.0
        %838 = vmatpush1.msra.mxu0 0.0
        %839 = vmatprep.subr.mxu0 0.0
        %840 = vmatpush1.msra.mxu0 0.0
        %841 = vmatprep.subr.mxu0 0.0
        %842 = vmatpush1.msra.mxu0 0.0
        %843 = vmatprep.subr.mxu0 0.0
        %844 = vmatpush1.msra.mxu0 0.0
        %845 = vmatprep.subr.mxu0 0.0
        %846 = vmatpush1.msra.mxu0 0.0
        %847 = vmatprep.subr.mxu0 0.0
        %848 = vmatpush1.msra.mxu0 0.0
        %849 = vmatprep.subr.mxu0 0.0
        %850 = vmatpush1.msra.mxu0 0.0
        %851 = vmatprep.subr.mxu0 0.0
        %852 = vmatpush1.msra.mxu0 0.0
        %853 = vmatprep.subr.mxu0 0.0
        %854 = vmatpush1.msra.mxu0 0.0
        %855 = vmatprep.subr.mxu0 0.0
        %856 = vmatpush1.msra.mxu0 0.0
        %857 = vmatprep.subr.mxu0 0.0
        %858 = vmatpush1.msra.mxu0 0.0
        %859 = vmatprep.subr.mxu0 0.0
        %860 = vmatpush1.msra.mxu0 0.0
        %861 = vmatprep.subr.mxu0 0.0
        %862 = vmatpush1.msra.mxu0 0.0
        %863 = vmatprep.subr.mxu0 0.0
        %864 = vmatpush1.msra.mxu0 0.0
        %865 = vmatprep.subr.mxu0 0.0
        %866 = vmatpush1.msra.mxu0 0.0
        %867 = vmatprep.subr.mxu0 0.0
        %868 = vmatpush1.msra.mxu0 0.0
        %869 = vmatprep.subr.mxu0 0.0
        %870 = vmatpush1.msra.mxu0 0.0
        %871 = vmatprep.subr.mxu0 0.0
        %872 = vmatpush1.msra.mxu0 0.0
        %873 = vmatprep.mubr.f32.mxu0 0.0
        %874 = vmatmul.mubr.f32.gmra.mrb[0].mxu0 %v807
        %v875 = vpop.f32.mrb[0].mxu0
        %v876 = vadd.f32 %v803, %v875
        %v877 = vpop.f32.mrb[0].mxu0
        %878 = vdwg.mxu0
        %v879 = vld [vmem:[#allocation10] sm:$0xff]
        %v880 = vld [vmem:[#allocation10 + $0x8] sm:$0xff]
        %v881 = vld [vmem:[#allocation10 + $0x10] sm:$0xff]
        %v882 = vld [vmem:[#allocation10 + $0x18] sm:$0xff]
        %v883 = vld [vmem:[#allocation11] sm:$0x1]
        %v885 = vlaneseq
        %v886 = vshrl.u32 %v885, 7
        %v887 = vsub.s32 0, %v886
        %v888 = vrot.slane %v883, %v887
        %vm890 = vcmask 261120
        %v892 = vsel %vm890, %v876, 0
        %894 = vmatprep.subr.mxu0 0.0
        %895 = vmatpush1.msra.mxu0 %v879
        %896 = vmatprep.subr.mxu0 0.0
        %897 = vmatpush1.msra.mxu0 %v880
        %898 = vmatprep.subr.mxu0 0.0
        %899 = vmatpush1.msra.mxu0 %v881
        %900 = vmatprep.subr.mxu0 0.0
        %901 = vmatpush1.msra.mxu0 %v882
        %902 = vmatprep.subr.mxu0 0.0
        %903 = vmatpush1.msra.mxu0 0.0
        %904 = vmatprep.subr.mxu0 0.0
        %905 = vmatpush1.msra.mxu0 0.0
        %906 = vmatprep.subr.mxu0 0.0
        %907 = vmatpush1.msra.mxu0 0.0
        %908 = vmatprep.subr.mxu0 0.0
        %909 = vmatpush1.msra.mxu0 0.0
        %910 = vmatprep.subr.mxu0 0.0
        %911 = vmatpush1.msra.mxu0 0.0
        %912 = vmatprep.subr.mxu0 0.0
        %913 = vmatpush1.msra.mxu0 0.0
        %914 = vmatprep.subr.mxu0 0.0
        %915 = vmatpush1.msra.mxu0 0.0
        %916 = vmatprep.subr.mxu0 0.0
        %917 = vmatpush1.msra.mxu0 0.0
        %918 = vmatprep.subr.mxu0 0.0
        %919 = vmatpush1.msra.mxu0 0.0
        %920 = vmatprep.subr.mxu0 0.0
        %921 = vmatpush1.msra.mxu0 0.0
        %922 = vmatprep.subr.mxu0 0.0
        %923 = vmatpush1.msra.mxu0 0.0
        %924 = vmatprep.subr.mxu0 0.0
        %925 = vmatpush1.msra.mxu0 0.0
        %926 = vmatprep.subr.mxu0 0.0
        %927 = vmatpush1.msra.mxu0 0.0
        %928 = vmatprep.subr.mxu0 0.0
        %929 = vmatpush1.msra.mxu0 0.0
        %930 = vmatprep.subr.mxu0 0.0
        %931 = vmatpush1.msra.mxu0 0.0
        %932 = vmatprep.subr.mxu0 0.0
        %933 = vmatpush1.msra.mxu0 0.0
        %934 = vmatprep.subr.mxu0 0.0
        %935 = vmatpush1.msra.mxu0 0.0
        %936 = vmatprep.subr.mxu0 0.0
        %937 = vmatpush1.msra.mxu0 0.0
        %938 = vmatprep.subr.mxu0 0.0
        %939 = vmatpush1.msra.mxu0 0.0
        %940 = vmatprep.subr.mxu0 0.0
        %941 = vmatpush1.msra.mxu0 0.0
        %942 = vmatprep.subr.mxu0 0.0
        %943 = vmatpush1.msra.mxu0 0.0
        %944 = vmatprep.subr.mxu0 0.0
        %945 = vmatpush1.msra.mxu0 0.0
        %946 = vmatprep.subr.mxu0 0.0
        %947 = vmatpush1.msra.mxu0 0.0
        %948 = vmatprep.subr.mxu0 0.0
        %949 = vmatpush1.msra.mxu0 0.0
        %950 = vmatprep.subr.mxu0 0.0
        %951 = vmatpush1.msra.mxu0 0.0
        %952 = vmatprep.subr.mxu0 0.0
        %953 = vmatpush1.msra.mxu0 0.0
        %954 = vmatprep.subr.mxu0 0.0
        %955 = vmatpush1.msra.mxu0 0.0
        %956 = vmatprep.subr.mxu0 0.0
        %957 = vmatpush1.msra.mxu0 0.0
        %958 = vmatprep.mubr.f32.mxu0 0.0
        %959 = vmatmul.mubr.f32.gmra.mrb[0].mxu0 %v892
        %v960 = vpop.f32.mrb[0].mxu0
        %v961 = vadd.f32 %v888, %v960
        %v962 = vpop.f32.mrb[0].mxu0
        %963 = vdwg.mxu0
        %v964 = vmin.f32 %v961, 0.0
        %vm965 = vcmp.gt.f32.partialorder %v961, 0.0
        %v966 = vmul.f32 %v964, 1.442695
        %v967 = vpow.pop %v966
        %v968 = vsub.f32 %v967, 1.0
        %v969 = vsel %vm965, %v961, %v968
        %v970 = vld [vmem:[%s9] sm:$0xff]
        %v971 = vld [vmem:[%s9 + $0x8] sm:$0xff]
        %v972 = vld [vmem:[%s9 + $0x10] sm:$0xff]
        %v973 = vld [vmem:[%s9 + $0x18] sm:$0xff]
        %v974 = vld [vmem:[%s9 + $0x20] sm:$0xff]
        %v975 = vld [vmem:[%s9 + $0x28] sm:$0xff]
        %v976 = vld [vmem:[%s9 + $0x30] sm:$0xff]
        %v977 = vld [vmem:[%s9 + $0x38] sm:$0xff]
        %v978 = vld [vmem:[%s10] sm:$0x1]
        %v980 = vlaneseq
        %v981 = vshrl.u32 %v980, 7
        %v982 = vsub.s32 0, %v981
        %v983 = vrot.slane %v978, %v982
        %v986 = vsel %vm805, %v969, 0
        %988 = vmatprep.subr.mxu0 0.0
        %989 = vmatpush1.msra.mxu0 %v970
        %990 = vmatprep.subr.mxu0 0.0
        %991 = vmatpush1.msra.mxu0 %v971
        %992 = vmatprep.subr.mxu0 0.0
        %993 = vmatpush1.msra.mxu0 %v972
        %994 = vmatprep.subr.mxu0 0.0
        %995 = vmatpush1.msra.mxu0 %v973
        %996 = vmatprep.subr.mxu0 0.0
        %997 = vmatpush1.msra.mxu0 %v974
        %998 = vmatprep.subr.mxu0 0.0
        %999 = vmatpush1.msra.mxu0 %v975
        %1000 = vmatprep.subr.mxu0 0.0
        %1001 = vmatpush1.msra.mxu0 %v976
        %1002 = vmatprep.subr.mxu0 0.0
        %1003 = vmatpush1.msra.mxu0 %v977
        %1004 = vmatprep.subr.mxu0 0.0
        %1005 = vmatpush1.msra.mxu0 0.0
        %1006 = vmatprep.subr.mxu0 0.0
        %1007 = vmatpush1.msra.mxu0 0.0
        %1008 = vmatprep.subr.mxu0 0.0
        %1009 = vmatpush1.msra.mxu0 0.0
        %1010 = vmatprep.subr.mxu0 0.0
        %1011 = vmatpush1.msra.mxu0 0.0
        %1012 = vmatprep.subr.mxu0 0.0
        %1013 = vmatpush1.msra.mxu0 0.0
        %1014 = vmatprep.subr.mxu0 0.0
        %1015 = vmatpush1.msra.mxu0 0.0
        %1016 = vmatprep.subr.mxu0 0.0
        %1017 = vmatpush1.msra.mxu0 0.0
        %1018 = vmatprep.subr.mxu0 0.0
        %1019 = vmatpush1.msra.mxu0 0.0
        %1020 = vmatprep.subr.mxu0 0.0
        %1021 = vmatpush1.msra.mxu0 0.0
        %1022 = vmatprep.subr.mxu0 0.0
        %1023 = vmatpush1.msra.mxu0 0.0
        %1024 = vmatprep.subr.mxu0 0.0
        %1025 = vmatpush1.msra.mxu0 0.0
        %1026 = vmatprep.subr.mxu0 0.0
        %1027 = vmatpush1.msra.mxu0 0.0
        %1028 = vmatprep.subr.mxu0 0.0
        %1029 = vmatpush1.msra.mxu0 0.0
        %1030 = vmatprep.subr.mxu0 0.0
        %1031 = vmatpush1.msra.mxu0 0.0
        %1032 = vmatprep.subr.mxu0 0.0
        %1033 = vmatpush1.msra.mxu0 0.0
        %1034 = vmatprep.subr.mxu0 0.0
        %1035 = vmatpush1.msra.mxu0 0.0
        %1036 = vmatprep.subr.mxu0 0.0
        %1037 = vmatpush1.msra.mxu0 0.0
        %1038 = vmatprep.subr.mxu0 0.0
        %1039 = vmatpush1.msra.mxu0 0.0
        %1040 = vmatprep.subr.mxu0 0.0
        %1041 = vmatpush1.msra.mxu0 0.0
        %1042 = vmatprep.subr.mxu0 0.0
        %1043 = vmatpush1.msra.mxu0 0.0
        %1044 = vmatprep.subr.mxu0 0.0
        %1045 = vmatpush1.msra.mxu0 0.0
        %1046 = vmatprep.subr.mxu0 0.0
        %1047 = vmatpush1.msra.mxu0 0.0
        %1048 = vmatprep.subr.mxu0 0.0
        %1049 = vmatpush1.msra.mxu0 0.0
        %1050 = vmatprep.subr.mxu0 0.0
        %1051 = vmatpush1.msra.mxu0 0.0
        %1052 = vmatprep.mubr.f32.mxu0 0.0
        %1053 = vmatmul.mubr.f32.gmra.mrb[0].mxu0 %v986
        %v1054 = vpop.f32.mrb[0].mxu0
        %v1055 = vadd.f32 %v983, %v1054
        %v1056 = vpop.f32.mrb[0].mxu0
        %1057 = vdwg.mxu0
        %v1058 = vmin.f32 %v1055, 0.0
        %vm1059 = vcmp.gt.f32.partialorder %v1055, 0.0
        %v1060 = vmul.f32 %v1058, 1.442695
        %v1061 = vpow.pop %v1060
        %v1062 = vsub.f32 %v1061, 1.0
        %v1063 = vsel %vm1059, %v1055, %v1062
        %v1064 = vld [vmem:[#allocation13] sm:$0xff]
        %v1065 = vld [vmem:[#allocation13 + $0x8] sm:$0xff]
        %v1066 = vld [vmem:[#allocation13 + $0x10] sm:$0xff]
        %v1067 = vld [vmem:[#allocation13 + $0x18] sm:$0xff]
        %v1068 = vld [vmem:[#allocation13 + $0x20] sm:$0xff]
        %v1069 = vld [vmem:[#allocation13 + $0x28] sm:$0xff]
        %v1070 = vld [vmem:[#allocation13 + $0x30] sm:$0xff]
        %v1071 = vld [vmem:[#allocation13 + $0x38] sm:$0xff]
        %v1072 = vld [vmem:[#allocation13 + $0x40] sm:$0xff]
        %v1073 = vld [vmem:[#allocation13 + $0x48] sm:$0xff]
        %v1074 = vld [vmem:[#allocation13 + $0x50] sm:$0xff]
        %v1075 = vld [vmem:[#allocation13 + $0x58] sm:$0xff]
        %v1076 = vld [vmem:[#allocation13 + $0x60] sm:$0xff]
        %v1077 = vld [vmem:[#allocation13 + $0x68] sm:$0xff]
        %v1078 = vld [vmem:[#allocation13 + $0x70] sm:$0xff]
        %v1079 = vld [vmem:[#allocation13 + $0x78] sm:$0xff]
        %v1080 = vld [vmem:[#allocation13 + $0x80] sm:$0xff]
        %v1081 = vld [vmem:[#allocation13 + $0x88] sm:$0xff]
        %v1082 = vld [vmem:[#allocation13 + $0x90] sm:$0xff]
        %v1083 = vld [vmem:[#allocation13 + $0x98] sm:$0xff]
        %v1084 = vld [vmem:[#allocation13 + $0xa0] sm:$0xff]
        %v1085 = vld [vmem:[#allocation13 + $0xa8] sm:$0xff]
        %v1086 = vld [vmem:[#allocation13 + $0xb0] sm:$0xff]
        %v1087 = vld [vmem:[#allocation13 + $0xb8] sm:$0xff]
        %v1088 = vld [vmem:[#allocation13 + $0xc0] sm:$0xff]
        %v1089 = vld [vmem:[#allocation13 + $0xc8] sm:$0xff]
        %v1090 = vld [vmem:[#allocation13 + $0xd0] sm:$0xff]
        %v1091 = vld [vmem:[#allocation13 + $0xd8] sm:$0xff]
        %v1092 = vld [vmem:[#allocation13 + $0xe0] sm:$0xff]
        %v1093 = vld [vmem:[#allocation13 + $0xe8] sm:$0xff]
        %v1094 = vld [vmem:[#allocation13 + $0xf0] sm:$0xff]
        %v1095 = vld [vmem:[#allocation13 + $0xf8] sm:$0xff]
        %v1096 = vld [vmem:[%s12] sm:$0x3]
        %v1098 = vlaneseq
        %v1099 = vshrl.u32 %v1098, 7
        %v1100 = vsub.s32 0, %v1099
        %v1101 = vrot.slane %v1096, %v1100
        %v1102 = vlaneseq
        %v1103 = vshrl.u32 %v1102, 7
        %v1104 = vsub.s32 1, %v1103
        %v1105 = vrot.slane %v1096, %v1104
        %1108 = vmatprep.subr.mxu0 %v1065
        %1109 = vmatpush1.msra.mxu0 %v1064
        %1110 = vmatprep.subr.mxu0 %v1067
        %1111 = vmatpush1.msra.mxu0 %v1066
        %1112 = vmatprep.subr.mxu0 %v1069
        %1113 = vmatpush1.msra.mxu0 %v1068
        %1114 = vmatprep.subr.mxu0 %v1071
        %1115 = vmatpush1.msra.mxu0 %v1070
        %1116 = vmatprep.subr.mxu0 %v1073
        %1117 = vmatpush1.msra.mxu0 %v1072
        %1118 = vmatprep.subr.mxu0 %v1075
        %1119 = vmatpush1.msra.mxu0 %v1074
        %1120 = vmatprep.subr.mxu0 %v1077
        %1121 = vmatpush1.msra.mxu0 %v1076
        %1122 = vmatprep.subr.mxu0 %v1079
        %1123 = vmatpush1.msra.mxu0 %v1078
        %1124 = vmatprep.subr.mxu0 %v1081
        %1125 = vmatpush1.msra.mxu0 %v1080
        %1126 = vmatprep.subr.mxu0 %v1083
        %1127 = vmatpush1.msra.mxu0 %v1082
        %1128 = vmatprep.subr.mxu0 %v1085
        %1129 = vmatpush1.msra.mxu0 %v1084
        %1130 = vmatprep.subr.mxu0 %v1087
        %1131 = vmatpush1.msra.mxu0 %v1086
        %1132 = vmatprep.subr.mxu0 %v1089
        %1133 = vmatpush1.msra.mxu0 %v1088
        %1134 = vmatprep.subr.mxu0 %v1091
        %1135 = vmatpush1.msra.mxu0 %v1090
        %1136 = vmatprep.subr.mxu0 %v1093
        %1137 = vmatpush1.msra.mxu0 %v1092
        %1138 = vmatprep.subr.mxu0 %v1095
        %1139 = vmatpush1.msra.mxu0 %v1094
        %1140 = vmatprep.subr.mxu0 0.0
        %1141 = vmatpush1.msra.mxu0 0.0
        %1142 = vmatprep.subr.mxu0 0.0
        %1143 = vmatpush1.msra.mxu0 0.0
        %1144 = vmatprep.subr.mxu0 0.0
        %1145 = vmatpush1.msra.mxu0 0.0
        %1146 = vmatprep.subr.mxu0 0.0
        %1147 = vmatpush1.msra.mxu0 0.0
        %1148 = vmatprep.subr.mxu0 0.0
        %1149 = vmatpush1.msra.mxu0 0.0
        %1150 = vmatprep.subr.mxu0 0.0
        %1151 = vmatpush1.msra.mxu0 0.0
        %1152 = vmatprep.subr.mxu0 0.0
        %1153 = vmatpush1.msra.mxu0 0.0
        %1154 = vmatprep.subr.mxu0 0.0
        %1155 = vmatpush1.msra.mxu0 0.0
        %1156 = vmatprep.subr.mxu0 0.0
        %1157 = vmatpush1.msra.mxu0 0.0
        %1158 = vmatprep.subr.mxu0 0.0
        %1159 = vmatpush1.msra.mxu0 0.0
        %1160 = vmatprep.subr.mxu0 0.0
        %1161 = vmatpush1.msra.mxu0 0.0
        %1162 = vmatprep.subr.mxu0 0.0
        %1163 = vmatpush1.msra.mxu0 0.0
        %1164 = vmatprep.subr.mxu0 0.0
        %1165 = vmatpush1.msra.mxu0 0.0
        %1166 = vmatprep.subr.mxu0 0.0
        %1167 = vmatpush1.msra.mxu0 0.0
        %1168 = vmatprep.subr.mxu0 0.0
        %1169 = vmatpush1.msra.mxu0 0.0
        %1170 = vmatprep.subr.mxu0 0.0
        %1171 = vmatpush1.msra.mxu0 0.0
        %1172 = vmatprep.mubr.f32.mxu0 0.0
        %1173 = vmatmul.mubr.f32.gmra.mrb[0].mxu0 %v1063
        %v1174 = vpop.f32.mrb[0].mxu0
        %v1175 = vadd.f32 %v1101, %v1174
        %v1176 = vpop.f32.mrb[0].mxu0
        %v1177 = vadd.f32 %v1105, %v1176
        %1178 = vdwg.mxu0
        %v1179 = vmul.f32 %v1175, 0.5
        %v1180 = vmul.f32 %v1177, 0.5
        %v1181 = vtanh.pop %v1179
        %v1182 = vtanh.pop %v1180
        %v1183 = vadd.f32 %v1181, 1.0
        %v1184 = vadd.f32 %v1182, 1.0
        %v1185 = vmul.f32 %v1183, 0.5
        %v1186 = vmul.f32 %v1184, 0.5
        %1187 = vst [vmem:[%s566] sm:$0xff] %v1185
        %1188 = vst [vmem:[%s566 + $0x8] sm:$0xff] %v1186
        %1189 = vst.msk [vmem:[%s573] sm:$0xff] %vm890, %v876
        %s1190 = sand.u32 %s324, 1
        %s1191 = scalar_lea.sflag [#allocation4], %s1190
        %s1192 = sand.u32 %s324, 1
        %s1193 = smul.addr %s1192, 16
        %s1194 = scalar_lea.vmem [#allocation14], %s1193
        %s1195 = sand.u32 %s350, 1
        %s1196 = scalar_lea.sflag [#allocation16], %s1195
        %s1197 = sand.u32 %s350, 1
        %s1198 = smul.addr %s1197, 8
        %s1199 = scalar_lea.vmem [#allocation15], %s1198
        // Predicated region
        $region101: #{tpu_custom_call.1} parent=71 // pred_check
          %p1200 = pneg %p334
        $region102: #{tpu_custom_call.1} parent=71 // pred_check_branch
          %1202 = sbr.rel (%p1200) target = $region104
        $region103: #{tpu_custom_call.1} parent=71 // pred_region
          %s1204 = ssub.s32 256, 256
          %1205 = vsyncadd %s1191, %s1204
          %s1206 = smul.addr %s38, 2
          %s1207 = smul.addr %s1206, 128
          %s1208 = scalar_lea.hbm %s13, %s1207
          %s1210 = sshll.u32 %s1194, 4
          %s1211 = int_to_ptr.vmem [resolvable:$true] %s1210
          %1213 = dma.vmem_to_hbm [thread:$0]  %s1211, 256, %s1208, %s1191
        $region104: #{tpu_custom_call.1} parent=71 // pred_fallthru
          _
        // Predicated region
        $region105: #{tpu_custom_call.1} parent=71 // pred_check
          %p1214 = pneg %p360
        $region106: #{tpu_custom_call.1} parent=71 // pred_check_branch
          %1216 = sbr.rel (%p1214) target = $region108
        $region107: #{tpu_custom_call.1} parent=71 // pred_region
          %s1218 = ssub.s32 128, 128
          %1219 = vsyncadd %s1196, %s1218
          %s1220 = smul.addr %s38, 128
          %s1221 = scalar_lea.hbm %s14, %s1220
          %s1223 = sshll.u32 %s1199, 4
          %s1224 = int_to_ptr.vmem [resolvable:$true] %s1223
          %1226 = dma.vmem_to_hbm [thread:$0]  %s1224, 128, %s1221, %s1196
        $region108: #{tpu_custom_call.1} parent=71 // pred_fallthru
          _
      $region72: #{tpu_custom_call.1} parent=5 // pred_fallthru
        _
      %p1227 = scmp.le.s32.totalorder 2, %s33
      // Predicated region
      $region109: #{tpu_custom_call.1} parent=5 // pred_check
        %p1228 = pneg %p1227
      $region110: #{tpu_custom_call.1} parent=5 // pred_check_branch
        %1230 = sbr.rel (%p1228) target = $region112
      $region111: #{tpu_custom_call.1} parent=5 // pred_region
        %s1231 = ssub.s32 %s33, 2
        // Predicated region
        $region113: #{tpu_custom_call.1} parent=111 // pred_check
          %p1232 = pneg %p340
        $region114: #{tpu_custom_call.1} parent=111 // pred_check_branch
          %1234 = sbr.rel (%p1232) target = $region116
        $region115: #{tpu_custom_call.1} parent=111 // pred_region
          %s1235 = sand.u32 %s325, 1
          %s1236 = scalar_lea.sflag [#allocation4], %s1235
          %s1237 = sand.u32 %s325, 1
          %s1238 = smul.addr %s1237, 16
          %s1239 = scalar_lea.vmem [#allocation14], %s1238
          %1240 = dma.done %s1236, 256
        $region116: #{tpu_custom_call.1} parent=111 // pred_fallthru
          _
        // Predicated region
        $region117: #{tpu_custom_call.1} parent=111 // pred_check
          %p1241 = pneg %p366
        $region118: #{tpu_custom_call.1} parent=111 // pred_check_branch
          %1243 = sbr.rel (%p1241) target = $region120
        $region119: #{tpu_custom_call.1} parent=111 // pred_region
          %s1244 = sand.u32 %s351, 1
          %s1245 = scalar_lea.sflag [#allocation16], %s1244
          %s1246 = sand.u32 %s351, 1
          %s1247 = smul.addr %s1246, 8
          %s1248 = scalar_lea.vmem [#allocation15], %s1247
          %1249 = dma.done %s1245, 128
        $region120: #{tpu_custom_call.1} parent=111 // pred_fallthru
          _
      $region112: #{tpu_custom_call.1} parent=5 // pred_fallthru
        _
    $region6: #{tpu_custom_call.1} parent=1 // loop_footer
      %s37 = sadd.s32 1, %s33
    $region7: #{tpu_custom_call.1} parent=1 // loop_footer_branch
      %32 = sbr.rel target = $region3
    $region8: #{tpu_custom_call.1} parent=1 // loop_exit
      _
    %1250 = vsyncpa [#allocation3], 1
    %s1251 = scalar_lea.sflag [#allocation3], 1
    %1252 = vsyncpa %s1251, 1
    %1253 = vsyncpa [#allocation6], 1
    %1254 = vsyncpa [#allocation9], 1
    %1255 = vsyncpa [#allocation12], 1
    %1256 = vsyncpa [#allocation4], 1
    %s1257 = scalar_lea.sflag [#allocation4], 1
    %1258 = vsyncpa %s1257, 1
    %1259 = vsyncpa [#allocation16], 1
    %s1260 = scalar_lea.sflag [#allocation16], 1
    %1261 = vsyncpa %s1260, 1

</llo_original>
